<compile_context>
chip_gen: v7x
topology: tpu7x:2x2x1
jax: 0.10.0
libtpu: 0.0.40
codegen_flags: <defaults>
</compile_context>

<pallas_src>
import functools

import jax
import jax.numpy as jnp
from jax.experimental import pallas as pl
from jax.experimental.pallas import tpu as pltpu

PRIMITIVES = [
    'none', 'max_pool_3x3', 'avg_pool_3x3', 'skip_connect',
    'sep_conv_3x3', 'sep_conv_5x5', 'dil_conv_3x3', 'dil_conv_5x5',
]
_ACTIVE_PRIM_IDX = tuple(i for i, p in enumerate(PRIMITIVES) if p != 'none')
BN_EPS = 1e-5


def _vmem():
    return pl.BlockSpec(memory_space=pltpu.MemorySpace.VMEM)


def _smem():
    return pl.BlockSpec(memory_space=pltpu.MemorySpace.SMEM)


# --------------------------- in-kernel helpers ---------------------------

def _mean_kd(y):
    """Mean over all leading axes (keepdims) -> per-channel statistic."""
    m = y
    for ax in range(y.ndim - 1):
        m = jnp.mean(m, axis=ax, keepdims=True)
    return m


def _bn_kd(y):
    """Training-mode BatchNorm (affine=False): per-channel batch stats."""
    m = _mean_kd(y)
    v = _mean_kd((y - m) * (y - m))
    return (y - m) * jax.lax.rsqrt(v + BN_EPS)


# --------------------------- fused Pallas kernels ---------------------------

def _mm_bn_body(x_ref, w_ref, o_ref, relu_in):
    x = x_ref[...]
    if relu_in:
        x = jnp.maximum(x, 0.0)
    # bf16 MXU operands, f32 accumulate; BN stats in f32.
    y = jnp.dot(x.astype(jnp.bfloat16), w_ref[...].astype(jnp.bfloat16),
                preferred_element_type=jnp.float32)
    o_ref[...] = _bn_kd(y)


def _mm_bn_kernel_relu(x_ref, w_ref, o_ref):
    _mm_bn_body(x_ref, w_ref, o_ref, True)


def _mm_bn_kernel_norelu(x_ref, w_ref, o_ref):
    _mm_bn_body(x_ref, w_ref, o_ref, False)


def _facred_kernel(x1_ref, x2_ref, w1_ref, w2_ref, o_ref):
    """FactorizedReduce: ReLU + two stride-2 1x1 convs + concat + BN, fused."""
    ch = w1_ref.shape[1]

    def half(x_ref, w_ref):
        y = jnp.dot(jnp.maximum(x_ref[...], 0.0).astype(jnp.bfloat16),
                    w_ref[...].astype(jnp.bfloat16),
                    preferred_element_type=jnp.float32)
        return _bn_kd(y)          # per-channel BN == BN of the concat, per half

    o_ref[:, 0:ch] = half(x1_ref, w1_ref)
    o_ref[:, ch:2 * ch] = half(x2_ref, w2_ref)


def _head_kernel(x_ref, w_ref, b_ref, o_ref):
    """Fused AdaptiveAvgPool2d(1) + Linear."""
    hw = x_ref.shape[1]
    pooled = jnp.sum(x_ref[...], axis=1) * (1.0 / hw)            # (N, C)
    o_ref[...] = jnp.dot(pooled, w_ref[...],
                         preferred_element_type=jnp.float32) + b_ref[...]


@functools.lru_cache(maxsize=None)
def _get_stem_kernel(k, cin, H, W):
    """Fused 3x3 stem conv (pad=1, stride=1, bias=False) + affine BatchNorm.
    Taps are sliced in-kernel from per-input-channel padded planes."""
    def kernel(*refs):
        planes = refs[:cin]                      # each (N, H+2, W+2, 1)
        w_ref, g_ref, b_ref, o_ref = refs[cin:cin + 4]
        acc = None
        t = 0
        for ky in range(k):
            for kx in range(k):
                for ci in range(cin):
                    tap = planes[ci][:, ky:ky + H, kx:kx + W, :]   # (N,H,W,1)
                    term = tap * w_ref[t, ci]                      # (1,Cout) bcast
                    acc = term if acc is None else acc + term
                t += 1
        o_ref[...] = _bn_kd(acc) * g_ref[...] + b_ref[...]
    return kernel


@functools.lru_cache(maxsize=None)
def _get_dw_kernel(plan, Ho, Wo, n_phases, relu_in):
    """Fused (ReLU) + depthwise conv; taps are in-kernel unit-stride slices."""
    def kernel(*refs):
        ph = refs[:n_phases]
        w_ref = refs[n_phases]                   # (T, 1, 1, C)
        o_ref = refs[n_phases + 1]
        acc = None
        for t, (p, yo, xo) in enumerate(plan):
            tap = ph[p][:, yo:yo + Ho, xo:xo + Wo, :]
            if relu_in:
                tap = jnp.maximum(tap, 0.0)
            term = tap * w_ref[t]
            acc = term if acc is None else acc + term
        o_ref[...] = acc
    return kernel


@functools.lru_cache(maxsize=None)
def _get_pool_kernel(plan, Ho, Wo, n_phases, is_avg):
    """Fused 3x3 max/avg pool + BatchNorm(affine=False) (MixedOp wraps pools in BN)."""
    def kernel(*refs):
        ph = refs[:n_phases]
        if is_avg:
            inv_ref, o_ref = refs[n_phases], refs[n_phases + 1]
        else:
            o_ref = refs[n_phases]
        acc = None
        for (p, yo, xo) in plan:
            tap = ph[p][:, yo:yo + Ho, xo:xo + Wo, :]
            if acc is None:
                acc = tap
            else:
                acc = acc + tap if is_avg else jnp.maximum(acc, tap)
        if is_avg:
            acc = acc * inv_ref[...]             # count_include_pad=False divisor
        o_ref[...] = _bn_kd(acc)
    return kernel


@functools.lru_cache(maxsize=None)
def _get_node_sum_kernel(n_edges, prim_idx):
    """One kernel per cell node: sum_j sum_prim w[j,prim] * op_out[j,prim].
    The 'none' primitive is skipped (exact zero; matches x.mul(0) for finite x)."""
    n_ops = len(prim_idx)

    def kernel(*refs):
        w_ref = refs[0]                          # (n_edges, len(PRIMITIVES)) SMEM
        op_refs = refs[1:1 + n_edges * n_ops]
        o_ref = refs[1 + n_edges * n_ops]
        acc = None
        r = 0
        for j in range(n_edges):
            for kp in prim_idx:
                term = w_ref[j, kp] * op_refs[r][...]
                acc = term if acc is None else acc + term
                r += 1
        o_ref[...] = acc
    return kernel


# --------------------------- host-side wrappers ---------------------------

def _phase_split(x, k, stride, padding, dilation, pad_value):
    """Pad once and (for stride 2) split into parity phases so every conv/pool tap
    is a unit-stride in-kernel slice.  Returns (phases, plan, Ho, Wo) with
    plan[t] = (phase_index, row_offset, col_offset)."""
    N, H, W, C = x.shape
    Ho = (H + 2 * padding - dilation * (k - 1) - 1) // stride + 1
    Wo = (W + 2 * padding - dilation * (k - 1) - 1) // stride + 1
    xp = jnp.pad(x, ((0, 0), (padding, padding), (padding, padding), (0, 0)),
                 constant_values=pad_value)
    if stride == 1:
        plan = tuple((0, ky * dilation, kx * dilation)
                     for ky in range(k) for kx in range(k))
        return [xp], plan, Ho, Wo
    assert stride == 2
    Hp, Wp = H + 2 * padding, W + 2 * padding
    if Hp % 2:
        xp = jnp.pad(xp, ((0, 0), (0, 1), (0, 0), (0, 0)), constant_values=pad_value)
    if Wp % 2:
        xp = jnp.pad(xp, ((0, 0), (0, 0), (0, 1), (0, 0)), constant_values=pad_value)
    all_phases = [xp[:, py::2, px::2, :] for py in (0, 1) for px in (0, 1)]
    raw_plan = [((ky * dilation) % 2 * 2 + (kx * dilation) % 2,
                 (ky * dilation) // 2, (kx * dilation) // 2)
                for ky in range(k) for kx in range(k)]
    used = sorted({p for (p, _, _) in raw_plan})
    remap = {p: i for i, p in enumerate(used)}
    phases = [all_phases[p] for p in used]
    plan = tuple((remap[p], yo, xo) for (p, yo, xo) in raw_plan)
    return phases, plan, Ho, Wo


@functools.lru_cache(maxsize=None)
def _avgpool_inv_count(H, W, Ho, Wo, stride):
    """Static 1/count map for 3x3 avg pool, pad=1, count_include_pad=False."""
    inv = []
    for h in range(Ho):
        cy = min(h * stride + 1, H - 1) - max(h * stride - 1, 0) + 1
        row = []
        for w in range(Wo):
            cx = min(w * stride + 1, W - 1) - max(w * stride - 1, 0) + 1
            row.append(1.0 / (cy * cx))
        inv.append(row)
    return jnp.asarray(inv, jnp.float32).reshape(1, Ho, Wo, 1)


def stem_conv_bn(x, w, gamma, beta):
    N, H, W, cin = x.shape
    cout, _, k, _ = w.shape
    xp = jnp.pad(x, ((0, 0), (1, 1), (1, 1), (0, 0)))
    planes = [xp[..., ci:ci + 1] for ci in range(cin)]
    wk = jnp.transpose(w, (2, 3, 1, 0)).reshape(k * k, cin, 1, cout)
    kern = _get_stem_kernel(k, cin, H, W)
    return pl.pallas_call(
        kern,
        out_shape=jax.ShapeDtypeStruct((N, H, W, cout), jnp.float32),
        in_specs=[_vmem()] * (cin + 3),
        out_specs=_vmem(),
    )(*planes, wk, gamma.reshape(1, 1, 1, cout), beta.reshape(1, 1, 1, cout))


def pw_conv_bn(x, w_oihw, relu_in):
    """Fused (ReLU) + 1x1 conv (bias=False) + BN(affine=False, batch stats)."""
    N, H, W, cin = x.shape
    cout = w_oihw.shape[0]
    wk = jnp.transpose(w_oihw[:, :, 0, 0], (1, 0))               # (Cin, Cout)
    kern = _mm_bn_kernel_relu if relu_in else _mm_bn_kernel_norelu
    out = pl.pallas_call(
        kern,
        out_shape=jax.ShapeDtypeStruct((N * H * W, cout), jnp.float32),
        in_specs=[_vmem(), _vmem()],
        out_specs=_vmem(),
    )(x.reshape(N * H * W, cin), wk)
    return out.reshape(N, H, W, cout)


def factorized_reduce(x, p):
    N, H, W, cin = x.shape
    Ho, Wo = H // 2, W // 2
    x1 = x[:, ::2, ::2, :].reshape(N * Ho * Wo, cin)
    x2 = x[:, 1::2, 1::2, :].reshape(N * Ho * Wo, cin)
    w1 = jnp.transpose(p['w1'][:, :, 0, 0], (1, 0))
    w2 = jnp.transpose(p['w2'][:, :, 0, 0], (1, 0))
    ch = p['w1'].shape[0]
    out = pl.pallas_call(
        _facred_kernel,
        out_shape=jax.ShapeDtypeStruct((N * Ho * Wo, 2 * ch), jnp.float32),
        in_specs=[_vmem()] * 4,
        out_specs=_vmem(),
    )(x1, x2, w1, w2)
    return out.reshape(N, Ho, Wo, 2 * ch)


def depthwise_conv(x, w_dw, stride, padding, dilation, relu_in):
    N, H, W, C = x.shape
    k = w_dw.shape[2]
    w_tc = jnp.transpose(w_dw[:, 0], (1, 2, 0)).reshape(k * k, 1, 1, C)
    phases, plan, Ho, Wo = _phase_split(x, k, stride, padding, dilation, 0.0)
    kern = _get_dw_kernel(plan, Ho, Wo, len(phases), bool(relu_in))
    return pl.pallas_call(
        kern,
        out_shape=jax.ShapeDtypeStruct((N, Ho, Wo, C), jnp.float32),
        in_specs=[_vmem()] * (len(phases) + 1),
        out_specs=_vmem(),
    )(*phases, w_tc)


def pool_bn(x, stride, kind):
    N, H, W, C = x.shape
    is_avg = kind == 'avg'
    pad_val = 0.0 if is_avg else -jnp.inf
    phases, plan, Ho, Wo = _phase_split(x, 3, stride, 1, 1, pad_val)
    ins = list(phases)
    if is_avg:
        ins.append(_avgpool_inv_count(H, W, Ho, Wo, stride))
    kern = _get_pool_kernel(plan, Ho, Wo, len(phases), is_avg)
    return pl.pallas_call(
        kern,
        out_shape=jax.ShapeDtypeStruct((N, Ho, Wo, C), jnp.float32),
        in_specs=[_vmem()] * len(ins),
        out_specs=_vmem(),
    )(*ins)


def pallas_node_sum(w_rows, op_outs):
    n_edges = int(w_rows.shape[0])
    kern = _get_node_sum_kernel(n_edges, _ACTIVE_PRIM_IDX)
    return pl.pallas_call(
        kern,
        out_shape=jax.ShapeDtypeStruct(op_outs[0].shape, jnp.float32),
        in_specs=[_smem()] + [_vmem()] * len(op_outs),
        out_specs=_vmem(),
    )(w_rows, *op_outs)


def pallas_head(x, w_cn, b_n):
    N, H, W, C = x.shape
    ncls = w_cn.shape[1]
    return pl.pallas_call(
        _head_kernel,
        out_shape=jax.ShapeDtypeStruct((N, ncls), jnp.float32),
        in_specs=[_vmem()] * 3,
        out_specs=_vmem(),
    )(x.reshape(N, H * W, C), w_cn, b_n.reshape(1, ncls))


# ----------------------------- DARTS op modules -----------------------------

def relu_conv_bn(x, p):                 # ReLUConvBN 1x1, stride 1, affine=False
    return pw_conv_bn(x, p['w'], relu_in=True)


def sep_conv(x, p, k, stride, padding):
    y = depthwise_conv(x, p['dw1'], stride, padding, 1, relu_in=True)
    y = pw_conv_bn(y, p['pw1'], relu_in=False)
    y = depthwise_conv(y, p['dw2'], 1, padding, 1, relu_in=True)
    return pw_conv_bn(y, p['pw2'], relu_in=False)


def dil_conv(x, p, stride, padding, dilation):
    y = depthwise_conv(x, p['dw'], stride, padding, dilation, relu_in=True)
    return pw_conv_bn(y, p['pw'], relu_in=False)


def edge_op_outputs(x, ep, stride):
    """Outputs of the 7 non-'none' primitives, in PRIMITIVES[1:] order."""
    return [
        pool_bn(x, stride, 'max'),                                  # max_pool_3x3
        pool_bn(x, stride, 'avg'),                                  # avg_pool_3x3
        x if stride == 1 else factorized_reduce(x, ep[3]),          # skip_connect
        sep_conv(x, ep[4], 3, stride, 1),                           # sep_conv_3x3
        sep_conv(x, ep[5], 5, stride, 2),                           # sep_conv_5x5
        dil_conv(x, ep[6], stride, 2, 2),                           # dil_conv_3x3
        dil_conv(x, ep[7], stride, 4, 2),                           # dil_conv_5x5
    ]


def cell_forward(s0, s1, weights, cfg, p):
    if cfg['reduction_prev']:
        s0 = factorized_reduce(s0, p['pre0'])
    else:
        s0 = relu_conv_bn(s0, p['pre0'])
    s1 = relu_conv_bn(s1, p['pre1'])
    states = [s0, s1]
    offset = 0
    for _ in range(cfg['steps']):
        op_outs = []
        for j, h in enumerate(states):
            stride = 2 if cfg['reduction'] and j < 2 else 1
            op_outs.extend(edge_op_outputs(h, p['ops'][offset + j], stride))
        s = pallas_node_sum(weights[offset:offset + len(states)], op_outs)
        offset += len(states)
        states.append(s)
    return jnp.concatenate(states[-cfg['multiplier']:], axis=-1)


# ----------------------------- params / network -----------------------------

def _rnd(key, shape, scale=0.1):
    return scale * jax.random.normal(key, shape, jnp.float32)


def make_edge_params(key, C, stride):
    keys = jax.random.split(key, len(PRIMITIVES))
    params = []
    for kk, prim in zip(keys, PRIMITIVES):
        if prim == 'skip_connect' and stride != 1:
            k1, k2 = jax.random.split(kk)
            params.append({'w1': _rnd(k1, (C // 2, C, 1, 1)),
                           'w2': _rnd(k2, (C // 2, C, 1, 1))})
        elif prim.startswith('sep_conv'):
            k = 3 if prim.endswith('3x3') else 5
            k1, k2, k3, k4 = jax.random.split(kk, 4)
            params.append({'dw1': _rnd(k1, (C, 1, k, k)),
                           'pw1': _rnd(k2, (C, C, 1, 1)),
                           'dw2': _rnd(k3, (C, 1, k, k)),
                           'pw2': _rnd(k4, (C, C, 1, 1))})
        elif prim.startswith('dil_conv'):
            k = 3 if prim.endswith('3x3') else 5
            k1, k2 = jax.random.split(kk)
            params.append({'dw': _rnd(k1, (C, 1, k, k)),
                           'pw': _rnd(k2, (C, C, 1, 1))})
        else:
            params.append({})
    return params


def init_network(key, C=4, num_classes=10, layers=3, steps=4,
                 multiplier=4, stem_multiplier=3):
    keys = jax.random.split(key, layers + 4)
    C_curr = stem_multiplier * C
    params = {'stem_w': _rnd(keys[0], (C_curr, 3, 3, 3)),
              'stem_bn_g': jnp.ones((C_curr,), jnp.float32),
              'stem_bn_b': jnp.zeros((C_curr,), jnp.float32)}
    C_pp, C_p, C_curr = C_curr, C_curr, C
    cells_cfg, cells_p = [], []
    reduction_prev = False
    n_edges = sum(2 + s for s in range(steps))     # 14 for steps=4
    for i in range(layers):
        reduction = i in [layers // 3, 2 * layers // 3]
        if reduction:
            C_curr *= 2
        ckeys = jax.random.split(keys[1 + i], 3)
        if reduction_prev:
            kk = jax.random.split(ckeys[0])
            pre0 = {'w1': _rnd(kk[0], (C_curr // 2, C_pp, 1, 1)),
                    'w2': _rnd(kk[1], (C_curr // 2, C_pp, 1, 1))}
        else:
            pre0 = {'w': _rnd(ckeys[0], (C_curr, C_pp, 1, 1))}
        pre1 = {'w': _rnd(ckeys[1], (C_curr, C_p, 1, 1))}
        ekeys = jax.random.split(ckeys[2], n_edges)
        ops, idx = [], 0
        for s in range(steps):
            for j in range(2 + s):
                stride = 2 if reduction and j < 2 else 1
                ops.append(make_edge_params(ekeys[idx], C_curr, stride))
                idx += 1
        cells_cfg.append({'reduction': reduction, 'reduction_prev': reduction_prev,
                          'steps': steps, 'multiplier': multiplier})
        cells_p.append({'pre0': pre0, 'pre1': pre1, 'ops': ops})
        reduction_prev = reduction
        C_pp, C_p = C_p, multiplier * C_curr
    params['alphas_normal'] = 1e-3 * jax.random.normal(
        keys[layers + 1], (n_edges, len(PRIMITIVES)), jnp.float32)
    params['alphas_reduce'] = 1e-3 * jax.random.normal(
        keys[layers + 2], (n_edges, len(PRIMITIVES)), jnp.float32)
    params['cls_w'] = _rnd(keys[layers + 3], (C_p, num_classes))   # stored as W.T
    params['cls_b'] = jnp.zeros((num_classes,), jnp.float32)
    params['cells'] = cells_p
    return params, cells_cfg


def network_forward(params, cells_cfg, x_nchw):
    # NCHW -> NHWC once at the boundary (channels on TPU lanes).
    x = jnp.transpose(x_nchw, (0, 2, 3, 1)).astype(jnp.float32)
    s = stem_conv_bn(x, params['stem_w'], params['stem_bn_g'], params['stem_bn_b'])
    s0 = s1 = s
    w_normal = jax.nn.softmax(params['alphas_normal'], axis=-1)
    w_reduce = jax.nn.softmax(params['alphas_reduce'], axis=-1)
    for cfg, cp in zip(cells_cfg, params['cells']):
        w = w_reduce if cfg['reduction'] else w_normal
        s0, s1 = s1, cell_forward(s0, s1, w, cfg, cp)
    return pallas_head(s1, params['cls_w'], params['cls_b'])


if __name__ == "__main__":
    key = jax.random.PRNGKey(0)
    kp, kx = jax.random.split(key)
    params, cfg = init_network(kp, C=4, num_classes=10, layers=3,
                               steps=4, multiplier=4, stem_multiplier=3)
    x = jax.random.normal(kx, (2, 3, 8, 8), jnp.float32)   # NCHW, like PyTorch
    logits = network_forward(params, cfg, x)
    jax.block_until_ready(logits)
    assert logits.shape == (2, 10) and logits.dtype == jnp.float32
    assert bool(jnp.all(jnp.isfinite(logits)))
    print("KERNEL_OK")
</pallas_src>

<mosaic_0001>
module attributes {stable_mosaic.version = 11 : i64} {
  func.func @kernel(%arg0: memref<2x10x10x1xf32, #tpu.memory_space<vmem>>, %arg1: memref<2x10x10x1xf32, #tpu.memory_space<vmem>>, %arg2: memref<2x10x10x1xf32, #tpu.memory_space<vmem>>, %arg3: memref<9x3x1x12xf32, #tpu.memory_space<vmem>>, %arg4: memref<1x1x1x12xf32, #tpu.memory_space<vmem>>, %arg5: memref<1x1x1x12xf32, #tpu.memory_space<vmem>>, %arg6: memref<2x8x8x12xf32, #tpu.memory_space<vmem>>) attributes {dimension_semantics = [], scalar_prefetch = 0 : i64, scratch_operands = 0 : i64, tpu.core_type = #tpu.core_type<tc>} {
    %c0 = arith.constant 0 : index
    %c0_0 = arith.constant 0 : index
    %c0_1 = arith.constant 0 : index
    %c0_2 = arith.constant 0 : index
    %0 = vector.load %arg0[%c0, %c0_0, %c0_1, %c0_2] : memref<2x10x10x1xf32, #tpu.memory_space<vmem>>, vector<2x8x8x1xf32>
    %c0_3 = arith.constant 0 : index
    %c0_4 = arith.constant 0 : index
    %c0_5 = arith.constant 0 : index
    %c0_6 = arith.constant 0 : index
    %1 = vector.load %arg3[%c0_3, %c0_4, %c0_5, %c0_6] : memref<9x3x1x12xf32, #tpu.memory_space<vmem>>, vector<1x1x1x12xf32>
    %2 = vector.shape_cast %1 : vector<1x1x1x12xf32> to vector<1x12xf32>
    %3 = vector.shape_cast %2 : vector<1x12xf32> to vector<1x1x1x12xf32>
    %4 = vector.broadcast %0 : vector<2x8x8x1xf32> to vector<2x8x8x12xf32>
    %5 = vector.broadcast %3 : vector<1x1x1x12xf32> to vector<2x8x8x12xf32>
    %6 = arith.mulf %4, %5 : vector<2x8x8x12xf32>
    %c0_7 = arith.constant 0 : index
    %c0_8 = arith.constant 0 : index
    %c0_9 = arith.constant 0 : index
    %c0_10 = arith.constant 0 : index
    %7 = vector.load %arg1[%c0_7, %c0_8, %c0_9, %c0_10] : memref<2x10x10x1xf32, #tpu.memory_space<vmem>>, vector<2x8x8x1xf32>
    %c0_11 = arith.constant 0 : index
    %c1 = arith.constant 1 : index
    %c0_12 = arith.constant 0 : index
    %c0_13 = arith.constant 0 : index
    %8 = vector.load %arg3[%c0_11, %c1, %c0_12, %c0_13] : memref<9x3x1x12xf32, #tpu.memory_space<vmem>>, vector<1x1x1x12xf32>
    %9 = vector.shape_cast %8 : vector<1x1x1x12xf32> to vector<1x12xf32>
    %10 = vector.shape_cast %9 : vector<1x12xf32> to vector<1x1x1x12xf32>
    %11 = vector.broadcast %7 : vector<2x8x8x1xf32> to vector<2x8x8x12xf32>
    %12 = vector.broadcast %10 : vector<1x1x1x12xf32> to vector<2x8x8x12xf32>
    %13 = arith.mulf %11, %12 : vector<2x8x8x12xf32>
    %14 = arith.addf %6, %13 : vector<2x8x8x12xf32>
    %c0_14 = arith.constant 0 : index
    %c0_15 = arith.constant 0 : index
    %c0_16 = arith.constant 0 : index
    %c0_17 = arith.constant 0 : index
    %15 = vector.load %arg2[%c0_14, %c0_15, %c0_16, %c0_17] : memref<2x10x10x1xf32, #tpu.memory_space<vmem>>, vector<2x8x8x1xf32>
    %c0_18 = arith.constant 0 : index
    %c2 = arith.constant 2 : index
    %c0_19 = arith.constant 0 : index
    %c0_20 = arith.constant 0 : index
    %16 = vector.load %arg3[%c0_18, %c2, %c0_19, %c0_20] : memref<9x3x1x12xf32, #tpu.memory_space<vmem>>, vector<1x1x1x12xf32>
    %17 = vector.shape_cast %16 : vector<1x1x1x12xf32> to vector<1x12xf32>
    %18 = vector.shape_cast %17 : vector<1x12xf32> to vector<1x1x1x12xf32>
    %19 = vector.broadcast %15 : vector<2x8x8x1xf32> to vector<2x8x8x12xf32>
    %20 = vector.broadcast %18 : vector<1x1x1x12xf32> to vector<2x8x8x12xf32>
    %21 = arith.mulf %19, %20 : vector<2x8x8x12xf32>
    %22 = arith.addf %14, %21 : vector<2x8x8x12xf32>
    %c0_21 = arith.constant 0 : index
    %c0_22 = arith.constant 0 : index
    %c1_23 = arith.constant 1 : index
    %c0_24 = arith.constant 0 : index
    %23 = vector.load %arg0[%c0_21, %c0_22, %c1_23, %c0_24] : memref<2x10x10x1xf32, #tpu.memory_space<vmem>>, vector<2x8x8x1xf32>
    %c1_25 = arith.constant 1 : index
    %c0_26 = arith.constant 0 : index
    %c0_27 = arith.constant 0 : index
    %c0_28 = arith.constant 0 : index
    %24 = vector.load %arg3[%c1_25, %c0_26, %c0_27, %c0_28] : memref<9x3x1x12xf32, #tpu.memory_space<vmem>>, vector<1x1x1x12xf32>
    %25 = vector.shape_cast %24 : vector<1x1x1x12xf32> to vector<1x12xf32>
    %26 = vector.shape_cast %25 : vector<1x12xf32> to vector<1x1x1x12xf32>
    %27 = vector.broadcast %23 : vector<2x8x8x1xf32> to vector<2x8x8x12xf32>
    %28 = vector.broadcast %26 : vector<1x1x1x12xf32> to vector<2x8x8x12xf32>
    %29 = arith.mulf %27, %28 : vector<2x8x8x12xf32>
    %30 = arith.addf %22, %29 : vector<2x8x8x12xf32>
    %c0_29 = arith.constant 0 : index
    %c0_30 = arith.constant 0 : index
    %c1_31 = arith.constant 1 : index
    %c0_32 = arith.constant 0 : index
    %31 = vector.load %arg1[%c0_29, %c0_30, %c1_31, %c0_32] : memref<2x10x10x1xf32, #tpu.memory_space<vmem>>, vector<2x8x8x1xf32>
    %c1_33 = arith.constant 1 : index
    %c1_34 = arith.constant 1 : index
    %c0_35 = arith.constant 0 : index
    %c0_36 = arith.constant 0 : index
    %32 = vector.load %arg3[%c1_33, %c1_34, %c0_35, %c0_36] : memref<9x3x1x12xf32, #tpu.memory_space<vmem>>, vector<1x1x1x12xf32>
    %33 = vector.shape_cast %32 : vector<1x1x1x12xf32> to vector<1x12xf32>
    %34 = vector.shape_cast %33 : vector<1x12xf32> to vector<1x1x1x12xf32>
    %35 = vector.broadcast %31 : vector<2x8x8x1xf32> to vector<2x8x8x12xf32>
    %36 = vector.broadcast %34 : vector<1x1x1x12xf32> to vector<2x8x8x12xf32>
    %37 = arith.mulf %35, %36 : vector<2x8x8x12xf32>
    %38 = arith.addf %30, %37 : vector<2x8x8x12xf32>
    %c0_37 = arith.constant 0 : index
    %c0_38 = arith.constant 0 : index
    %c1_39 = arith.constant 1 : index
    %c0_40 = arith.constant 0 : index
    %39 = vector.load %arg2[%c0_37, %c0_38, %c1_39, %c0_40] : memref<2x10x10x1xf32, #tpu.memory_space<vmem>>, vector<2x8x8x1xf32>
    %c1_41 = arith.constant 1 : index
    %c2_42 = arith.constant 2 : index
    %c0_43 = arith.constant 0 : index
    %c0_44 = arith.constant 0 : index
    %40 = vector.load %arg3[%c1_41, %c2_42, %c0_43, %c0_44] : memref<9x3x1x12xf32, #tpu.memory_space<vmem>>, vector<1x1x1x12xf32>
    %41 = vector.shape_cast %40 : vector<1x1x1x12xf32> to vector<1x12xf32>
    %42 = vector.shape_cast %41 : vector<1x12xf32> to vector<1x1x1x12xf32>
    %43 = vector.broadcast %39 : vector<2x8x8x1xf32> to vector<2x8x8x12xf32>
    %44 = vector.broadcast %42 : vector<1x1x1x12xf32> to vector<2x8x8x12xf32>
    %45 = arith.mulf %43, %44 : vector<2x8x8x12xf32>
    %46 = arith.addf %38, %45 : vector<2x8x8x12xf32>
    %c0_45 = arith.constant 0 : index
    %c0_46 = arith.constant 0 : index
    %c2_47 = arith.constant 2 : index
    %c0_48 = arith.constant 0 : index
    %47 = vector.load %arg0[%c0_45, %c0_46, %c2_47, %c0_48] : memref<2x10x10x1xf32, #tpu.memory_space<vmem>>, vector<2x8x8x1xf32>
    %c2_49 = arith.constant 2 : index
    %c0_50 = arith.constant 0 : index
    %c0_51 = arith.constant 0 : index
    %c0_52 = arith.constant 0 : index
    %48 = vector.load %arg3[%c2_49, %c0_50, %c0_51, %c0_52] : memref<9x3x1x12xf32, #tpu.memory_space<vmem>>, vector<1x1x1x12xf32>
    %49 = vector.shape_cast %48 : vector<1x1x1x12xf32> to vector<1x12xf32>
    %50 = vector.shape_cast %49 : vector<1x12xf32> to vector<1x1x1x12xf32>
    %51 = vector.broadcast %47 : vector<2x8x8x1xf32> to vector<2x8x8x12xf32>
    %52 = vector.broadcast %50 : vector<1x1x1x12xf32> to vector<2x8x8x12xf32>
    %53 = arith.mulf %51, %52 : vector<2x8x8x12xf32>
    %54 = arith.addf %46, %53 : vector<2x8x8x12xf32>
    %c0_53 = arith.constant 0 : index
    %c0_54 = arith.constant 0 : index
    %c2_55 = arith.constant 2 : index
    %c0_56 = arith.constant 0 : index
    %55 = vector.load %arg1[%c0_53, %c0_54, %c2_55, %c0_56] : memref<2x10x10x1xf32, #tpu.memory_space<vmem>>, vector<2x8x8x1xf32>
    %c2_57 = arith.constant 2 : index
    %c1_58 = arith.constant 1 : index
    %c0_59 = arith.constant 0 : index
    %c0_60 = arith.constant 0 : index
    %56 = vector.load %arg3[%c2_57, %c1_58, %c0_59, %c0_60] : memref<9x3x1x12xf32, #tpu.memory_space<vmem>>, vector<1x1x1x12xf32>
    %57 = vector.shape_cast %56 : vector<1x1x1x12xf32> to vector<1x12xf32>
    %58 = vector.shape_cast %57 : vector<1x12xf32> to vector<1x1x1x12xf32>
    %59 = vector.broadcast %55 : vector<2x8x8x1xf32> to vector<2x8x8x12xf32>
    %60 = vector.broadcast %58 : vector<1x1x1x12xf32> to vector<2x8x8x12xf32>
    %61 = arith.mulf %59, %60 : vector<2x8x8x12xf32>
    %62 = arith.addf %54, %61 : vector<2x8x8x12xf32>
    %c0_61 = arith.constant 0 : index
    %c0_62 = arith.constant 0 : index
    %c2_63 = arith.constant 2 : index
    %c0_64 = arith.constant 0 : index
    %63 = vector.load %arg2[%c0_61, %c0_62, %c2_63, %c0_64] : memref<2x10x10x1xf32, #tpu.memory_space<vmem>>, vector<2x8x8x1xf32>
    %c2_65 = arith.constant 2 : index
    %c2_66 = arith.constant 2 : index
    %c0_67 = arith.constant 0 : index
    %c0_68 = arith.constant 0 : index
    %64 = vector.load %arg3[%c2_65, %c2_66, %c0_67, %c0_68] : memref<9x3x1x12xf32, #tpu.memory_space<vmem>>, vector<1x1x1x12xf32>
    %65 = vector.shape_cast %64 : vector<1x1x1x12xf32> to vector<1x12xf32>
    %66 = vector.shape_cast %65 : vector<1x12xf32> to vector<1x1x1x12xf32>
    %67 = vector.broadcast %63 : vector<2x8x8x1xf32> to vector<2x8x8x12xf32>
    %68 = vector.broadcast %66 : vector<1x1x1x12xf32> to vector<2x8x8x12xf32>
    %69 = arith.mulf %67, %68 : vector<2x8x8x12xf32>
    %70 = arith.addf %62, %69 : vector<2x8x8x12xf32>
    %c0_69 = arith.constant 0 : index
    %c1_70 = arith.constant 1 : index
    %c0_71 = arith.constant 0 : index
    %c0_72 = arith.constant 0 : index
    %71 = vector.load %arg0[%c0_69, %c1_70, %c0_71, %c0_72] : memref<2x10x10x1xf32, #tpu.memory_space<vmem>>, vector<2x8x8x1xf32>
    %c3 = arith.constant 3 : index
    %c0_73 = arith.constant 0 : index
    %c0_74 = arith.constant 0 : index
    %c0_75 = arith.constant 0 : index
    %72 = vector.load %arg3[%c3, %c0_73, %c0_74, %c0_75] : memref<9x3x1x12xf32, #tpu.memory_space<vmem>>, vector<1x1x1x12xf32>
    %73 = vector.shape_cast %72 : vector<1x1x1x12xf32> to vector<1x12xf32>
    %74 = vector.shape_cast %73 : vector<1x12xf32> to vector<1x1x1x12xf32>
    %75 = vector.broadcast %71 : vector<2x8x8x1xf32> to vector<2x8x8x12xf32>
    %76 = vector.broadcast %74 : vector<1x1x1x12xf32> to vector<2x8x8x12xf32>
    %77 = arith.mulf %75, %76 : vector<2x8x8x12xf32>
    %78 = arith.addf %70, %77 : vector<2x8x8x12xf32>
    %c0_76 = arith.constant 0 : index
    %c1_77 = arith.constant 1 : index
    %c0_78 = arith.constant 0 : index
    %c0_79 = arith.constant 0 : index
    %79 = vector.load %arg1[%c0_76, %c1_77, %c0_78, %c0_79] : memref<2x10x10x1xf32, #tpu.memory_space<vmem>>, vector<2x8x8x1xf32>
    %c3_80 = arith.constant 3 : index
    %c1_81 = arith.constant 1 : index
    %c0_82 = arith.constant 0 : index
    %c0_83 = arith.constant 0 : index
    %80 = vector.load %arg3[%c3_80, %c1_81, %c0_82, %c0_83] : memref<9x3x1x12xf32, #tpu.memory_space<vmem>>, vector<1x1x1x12xf32>
    %81 = vector.shape_cast %80 : vector<1x1x1x12xf32> to vector<1x12xf32>
    %82 = vector.shape_cast %81 : vector<1x12xf32> to vector<1x1x1x12xf32>
    %83 = vector.broadcast %79 : vector<2x8x8x1xf32> to vector<2x8x8x12xf32>
    %84 = vector.broadcast %82 : vector<1x1x1x12xf32> to vector<2x8x8x12xf32>
    %85 = arith.mulf %83, %84 : vector<2x8x8x12xf32>
    %86 = arith.addf %78, %85 : vector<2x8x8x12xf32>
    %c0_84 = arith.constant 0 : index
    %c1_85 = arith.constant 1 : index
    %c0_86 = arith.constant 0 : index
    %c0_87 = arith.constant 0 : index
    %87 = vector.load %arg2[%c0_84, %c1_85, %c0_86, %c0_87] : memref<2x10x10x1xf32, #tpu.memory_space<vmem>>, vector<2x8x8x1xf32>
    %c3_88 = arith.constant 3 : index
    %c2_89 = arith.constant 2 : index
    %c0_90 = arith.constant 0 : index
    %c0_91 = arith.constant 0 : index
    %88 = vector.load %arg3[%c3_88, %c2_89, %c0_90, %c0_91] : memref<9x3x1x12xf32, #tpu.memory_space<vmem>>, vector<1x1x1x12xf32>
    %89 = vector.shape_cast %88 : vector<1x1x1x12xf32> to vector<1x12xf32>
    %90 = vector.shape_cast %89 : vector<1x12xf32> to vector<1x1x1x12xf32>
    %91 = vector.broadcast %87 : vector<2x8x8x1xf32> to vector<2x8x8x12xf32>
    %92 = vector.broadcast %90 : vector<1x1x1x12xf32> to vector<2x8x8x12xf32>
    %93 = arith.mulf %91, %92 : vector<2x8x8x12xf32>
    %94 = arith.addf %86, %93 : vector<2x8x8x12xf32>
    %c0_92 = arith.constant 0 : index
    %c1_93 = arith.constant 1 : index
    %c1_94 = arith.constant 1 : index
    %c0_95 = arith.constant 0 : index
    %95 = vector.load %arg0[%c0_92, %c1_93, %c1_94, %c0_95] : memref<2x10x10x1xf32, #tpu.memory_space<vmem>>, vector<2x8x8x1xf32>
    %c4 = arith.constant 4 : index
    %c0_96 = arith.constant 0 : index
    %c0_97 = arith.constant 0 : index
    %c0_98 = arith.constant 0 : index
    %96 = vector.load %arg3[%c4, %c0_96, %c0_97, %c0_98] : memref<9x3x1x12xf32, #tpu.memory_space<vmem>>, vector<1x1x1x12xf32>
    %97 = vector.shape_cast %96 : vector<1x1x1x12xf32> to vector<1x12xf32>
    %98 = vector.shape_cast %97 : vector<1x12xf32> to vector<1x1x1x12xf32>
    %99 = vector.broadcast %95 : vector<2x8x8x1xf32> to vector<2x8x8x12xf32>
    %100 = vector.broadcast %98 : vector<1x1x1x12xf32> to vector<2x8x8x12xf32>
    %101 = arith.mulf %99, %100 : vector<2x8x8x12xf32>
    %102 = arith.addf %94, %101 : vector<2x8x8x12xf32>
    %c0_99 = arith.constant 0 : index
    %c1_100 = arith.constant 1 : index
    %c1_101 = arith.constant 1 : index
    %c0_102 = arith.constant 0 : index
    %103 = vector.load %arg1[%c0_99, %c1_100, %c1_101, %c0_102] : memref<2x10x10x1xf32, #tpu.memory_space<vmem>>, vector<2x8x8x1xf32>
    %c4_103 = arith.constant 4 : index
    %c1_104 = arith.constant 1 : index
    %c0_105 = arith.constant 0 : index
    %c0_106 = arith.constant 0 : index
    %104 = vector.load %arg3[%c4_103, %c1_104, %c0_105, %c0_106] : memref<9x3x1x12xf32, #tpu.memory_space<vmem>>, vector<1x1x1x12xf32>
    %105 = vector.shape_cast %104 : vector<1x1x1x12xf32> to vector<1x12xf32>
    %106 = vector.shape_cast %105 : vector<1x12xf32> to vector<1x1x1x12xf32>
    %107 = vector.broadcast %103 : vector<2x8x8x1xf32> to vector<2x8x8x12xf32>
    %108 = vector.broadcast %106 : vector<1x1x1x12xf32> to vector<2x8x8x12xf32>
    %109 = arith.mulf %107, %108 : vector<2x8x8x12xf32>
    %110 = arith.addf %102, %109 : vector<2x8x8x12xf32>
    %c0_107 = arith.constant 0 : index
    %c1_108 = arith.constant 1 : index
    %c1_109 = arith.constant 1 : index
    %c0_110 = arith.constant 0 : index
    %111 = vector.load %arg2[%c0_107, %c1_108, %c1_109, %c0_110] : memref<2x10x10x1xf32, #tpu.memory_space<vmem>>, vector<2x8x8x1xf32>
    %c4_111 = arith.constant 4 : index
    %c2_112 = arith.constant 2 : index
    %c0_113 = arith.constant 0 : index
    %c0_114 = arith.constant 0 : index
    %112 = vector.load %arg3[%c4_111, %c2_112, %c0_113, %c0_114] : memref<9x3x1x12xf32, #tpu.memory_space<vmem>>, vector<1x1x1x12xf32>
    %113 = vector.shape_cast %112 : vector<1x1x1x12xf32> to vector<1x12xf32>
    %114 = vector.shape_cast %113 : vector<1x12xf32> to vector<1x1x1x12xf32>
    %115 = vector.broadcast %111 : vector<2x8x8x1xf32> to vector<2x8x8x12xf32>
    %116 = vector.broadcast %114 : vector<1x1x1x12xf32> to vector<2x8x8x12xf32>
    %117 = arith.mulf %115, %116 : vector<2x8x8x12xf32>
    %118 = arith.addf %110, %117 : vector<2x8x8x12xf32>
    %c0_115 = arith.constant 0 : index
    %c1_116 = arith.constant 1 : index
    %c2_117 = arith.constant 2 : index
    %c0_118 = arith.constant 0 : index
    %119 = vector.load %arg0[%c0_115, %c1_116, %c2_117, %c0_118] : memref<2x10x10x1xf32, #tpu.memory_space<vmem>>, vector<2x8x8x1xf32>
    %c5 = arith.constant 5 : index
    %c0_119 = arith.constant 0 : index
    %c0_120 = arith.constant 0 : index
    %c0_121 = arith.constant 0 : index
    %120 = vector.load %arg3[%c5, %c0_119, %c0_120, %c0_121] : memref<9x3x1x12xf32, #tpu.memory_space<vmem>>, vector<1x1x1x12xf32>
    %121 = vector.shape_cast %120 : vector<1x1x1x12xf32> to vector<1x12xf32>
    %122 = vector.shape_cast %121 : vector<1x12xf32> to vector<1x1x1x12xf32>
    %123 = vector.broadcast %119 : vector<2x8x8x1xf32> to vector<2x8x8x12xf32>
    %124 = vector.broadcast %122 : vector<1x1x1x12xf32> to vector<2x8x8x12xf32>
    %125 = arith.mulf %123, %124 : vector<2x8x8x12xf32>
    %126 = arith.addf %118, %125 : vector<2x8x8x12xf32>
    %c0_122 = arith.constant 0 : index
    %c1_123 = arith.constant 1 : index
    %c2_124 = arith.constant 2 : index
    %c0_125 = arith.constant 0 : index
    %127 = vector.load %arg1[%c0_122, %c1_123, %c2_124, %c0_125] : memref<2x10x10x1xf32, #tpu.memory_space<vmem>>, vector<2x8x8x1xf32>
    %c5_126 = arith.constant 5 : index
    %c1_127 = arith.constant 1 : index
    %c0_128 = arith.constant 0 : index
    %c0_129 = arith.constant 0 : index
    %128 = vector.load %arg3[%c5_126, %c1_127, %c0_128, %c0_129] : memref<9x3x1x12xf32, #tpu.memory_space<vmem>>, vector<1x1x1x12xf32>
    %129 = vector.shape_cast %128 : vector<1x1x1x12xf32> to vector<1x12xf32>
    %130 = vector.shape_cast %129 : vector<1x12xf32> to vector<1x1x1x12xf32>
    %131 = vector.broadcast %127 : vector<2x8x8x1xf32> to vector<2x8x8x12xf32>
    %132 = vector.broadcast %130 : vector<1x1x1x12xf32> to vector<2x8x8x12xf32>
    %133 = arith.mulf %131, %132 : vector<2x8x8x12xf32>
    %134 = arith.addf %126, %133 : vector<2x8x8x12xf32>
    %c0_130 = arith.constant 0 : index
    %c1_131 = arith.constant 1 : index
    %c2_132 = arith.constant 2 : index
    %c0_133 = arith.constant 0 : index
    %135 = vector.load %arg2[%c0_130, %c1_131, %c2_132, %c0_133] : memref<2x10x10x1xf32, #tpu.memory_space<vmem>>, vector<2x8x8x1xf32>
    %c5_134 = arith.constant 5 : index
    %c2_135 = arith.constant 2 : index
    %c0_136 = arith.constant 0 : index
    %c0_137 = arith.constant 0 : index
    %136 = vector.load %arg3[%c5_134, %c2_135, %c0_136, %c0_137] : memref<9x3x1x12xf32, #tpu.memory_space<vmem>>, vector<1x1x1x12xf32>
    %137 = vector.shape_cast %136 : vector<1x1x1x12xf32> to vector<1x12xf32>
    %138 = vector.shape_cast %137 : vector<1x12xf32> to vector<1x1x1x12xf32>
    %139 = vector.broadcast %135 : vector<2x8x8x1xf32> to vector<2x8x8x12xf32>
    %140 = vector.broadcast %138 : vector<1x1x1x12xf32> to vector<2x8x8x12xf32>
    %141 = arith.mulf %139, %140 : vector<2x8x8x12xf32>
    %142 = arith.addf %134, %141 : vector<2x8x8x12xf32>
    %c0_138 = arith.constant 0 : index
    %c2_139 = arith.constant 2 : index
    %c0_140 = arith.constant 0 : index
    %c0_141 = arith.constant 0 : index
    %143 = vector.load %arg0[%c0_138, %c2_139, %c0_140, %c0_141] : memref<2x10x10x1xf32, #tpu.memory_space<vmem>>, vector<2x8x8x1xf32>
    %c6 = arith.constant 6 : index
    %c0_142 = arith.constant 0 : index
    %c0_143 = arith.constant 0 : index
    %c0_144 = arith.constant 0 : index
    %144 = vector.load %arg3[%c6, %c0_142, %c0_143, %c0_144] : memref<9x3x1x12xf32, #tpu.memory_space<vmem>>, vector<1x1x1x12xf32>
    %145 = vector.shape_cast %144 : vector<1x1x1x12xf32> to vector<1x12xf32>
    %146 = vector.shape_cast %145 : vector<1x12xf32> to vector<1x1x1x12xf32>
    %147 = vector.broadcast %143 : vector<2x8x8x1xf32> to vector<2x8x8x12xf32>
    %148 = vector.broadcast %146 : vector<1x1x1x12xf32> to vector<2x8x8x12xf32>
    %149 = arith.mulf %147, %148 : vector<2x8x8x12xf32>
    %150 = arith.addf %142, %149 : vector<2x8x8x12xf32>
    %c0_145 = arith.constant 0 : index
    %c2_146 = arith.constant 2 : index
    %c0_147 = arith.constant 0 : index
    %c0_148 = arith.constant 0 : index
    %151 = vector.load %arg1[%c0_145, %c2_146, %c0_147, %c0_148] : memref<2x10x10x1xf32, #tpu.memory_space<vmem>>, vector<2x8x8x1xf32>
    %c6_149 = arith.constant 6 : index
    %c1_150 = arith.constant 1 : index
    %c0_151 = arith.constant 0 : index
    %c0_152 = arith.constant 0 : index
    %152 = vector.load %arg3[%c6_149, %c1_150, %c0_151, %c0_152] : memref<9x3x1x12xf32, #tpu.memory_space<vmem>>, vector<1x1x1x12xf32>
    %153 = vector.shape_cast %152 : vector<1x1x1x12xf32> to vector<1x12xf32>
    %154 = vector.shape_cast %153 : vector<1x12xf32> to vector<1x1x1x12xf32>
    %155 = vector.broadcast %151 : vector<2x8x8x1xf32> to vector<2x8x8x12xf32>
    %156 = vector.broadcast %154 : vector<1x1x1x12xf32> to vector<2x8x8x12xf32>
    %157 = arith.mulf %155, %156 : vector<2x8x8x12xf32>
    %158 = arith.addf %150, %157 : vector<2x8x8x12xf32>
    %c0_153 = arith.constant 0 : index
    %c2_154 = arith.constant 2 : index
    %c0_155 = arith.constant 0 : index
    %c0_156 = arith.constant 0 : index
    %159 = vector.load %arg2[%c0_153, %c2_154, %c0_155, %c0_156] : memref<2x10x10x1xf32, #tpu.memory_space<vmem>>, vector<2x8x8x1xf32>
    %c6_157 = arith.constant 6 : index
    %c2_158 = arith.constant 2 : index
    %c0_159 = arith.constant 0 : index
    %c0_160 = arith.constant 0 : index
    %160 = vector.load %arg3[%c6_157, %c2_158, %c0_159, %c0_160] : memref<9x3x1x12xf32, #tpu.memory_space<vmem>>, vector<1x1x1x12xf32>
    %161 = vector.shape_cast %160 : vector<1x1x1x12xf32> to vector<1x12xf32>
    %162 = vector.shape_cast %161 : vector<1x12xf32> to vector<1x1x1x12xf32>
    %163 = vector.broadcast %159 : vector<2x8x8x1xf32> to vector<2x8x8x12xf32>
    %164 = vector.broadcast %162 : vector<1x1x1x12xf32> to vector<2x8x8x12xf32>
    %165 = arith.mulf %163, %164 : vector<2x8x8x12xf32>
    %166 = arith.addf %158, %165 : vector<2x8x8x12xf32>
    %c0_161 = arith.constant 0 : index
    %c2_162 = arith.constant 2 : index
    %c1_163 = arith.constant 1 : index
    %c0_164 = arith.constant 0 : index
    %167 = vector.load %arg0[%c0_161, %c2_162, %c1_163, %c0_164] : memref<2x10x10x1xf32, #tpu.memory_space<vmem>>, vector<2x8x8x1xf32>
    %c7 = arith.constant 7 : index
    %c0_165 = arith.constant 0 : index
    %c0_166 = arith.constant 0 : index
    %c0_167 = arith.constant 0 : index
    %168 = vector.load %arg3[%c7, %c0_165, %c0_166, %c0_167] : memref<9x3x1x12xf32, #tpu.memory_space<vmem>>, vector<1x1x1x12xf32>
    %169 = vector.shape_cast %168 : vector<1x1x1x12xf32> to vector<1x12xf32>
    %170 = vector.shape_cast %169 : vector<1x12xf32> to vector<1x1x1x12xf32>
    %171 = vector.broadcast %167 : vector<2x8x8x1xf32> to vector<2x8x8x12xf32>
    %172 = vector.broadcast %170 : vector<1x1x1x12xf32> to vector<2x8x8x12xf32>
    %173 = arith.mulf %171, %172 : vector<2x8x8x12xf32>
    %174 = arith.addf %166, %173 : vector<2x8x8x12xf32>
    %c0_168 = arith.constant 0 : index
    %c2_169 = arith.constant 2 : index
    %c1_170 = arith.constant 1 : index
    %c0_171 = arith.constant 0 : index
    %175 = vector.load %arg1[%c0_168, %c2_169, %c1_170, %c0_171] : memref<2x10x10x1xf32, #tpu.memory_space<vmem>>, vector<2x8x8x1xf32>
    %c7_172 = arith.constant 7 : index
    %c1_173 = arith.constant 1 : index
    %c0_174 = arith.constant 0 : index
    %c0_175 = arith.constant 0 : index
    %176 = vector.load %arg3[%c7_172, %c1_173, %c0_174, %c0_175] : memref<9x3x1x12xf32, #tpu.memory_space<vmem>>, vector<1x1x1x12xf32>
    %177 = vector.shape_cast %176 : vector<1x1x1x12xf32> to vector<1x12xf32>
    %178 = vector.shape_cast %177 : vector<1x12xf32> to vector<1x1x1x12xf32>
    %179 = vector.broadcast %175 : vector<2x8x8x1xf32> to vector<2x8x8x12xf32>
    %180 = vector.broadcast %178 : vector<1x1x1x12xf32> to vector<2x8x8x12xf32>
    %181 = arith.mulf %179, %180 : vector<2x8x8x12xf32>
    %182 = arith.addf %174, %181 : vector<2x8x8x12xf32>
    %c0_176 = arith.constant 0 : index
    %c2_177 = arith.constant 2 : index
    %c1_178 = arith.constant 1 : index
    %c0_179 = arith.constant 0 : index
    %183 = vector.load %arg2[%c0_176, %c2_177, %c1_178, %c0_179] : memref<2x10x10x1xf32, #tpu.memory_space<vmem>>, vector<2x8x8x1xf32>
    %c7_180 = arith.constant 7 : index
    %c2_181 = arith.constant 2 : index
    %c0_182 = arith.constant 0 : index
    %c0_183 = arith.constant 0 : index
    %184 = vector.load %arg3[%c7_180, %c2_181, %c0_182, %c0_183] : memref<9x3x1x12xf32, #tpu.memory_space<vmem>>, vector<1x1x1x12xf32>
    %185 = vector.shape_cast %184 : vector<1x1x1x12xf32> to vector<1x12xf32>
    %186 = vector.shape_cast %185 : vector<1x12xf32> to vector<1x1x1x12xf32>
    %187 = vector.broadcast %183 : vector<2x8x8x1xf32> to vector<2x8x8x12xf32>
    %188 = vector.broadcast %186 : vector<1x1x1x12xf32> to vector<2x8x8x12xf32>
    %189 = arith.mulf %187, %188 : vector<2x8x8x12xf32>
    %190 = arith.addf %182, %189 : vector<2x8x8x12xf32>
    %c0_184 = arith.constant 0 : index
    %c2_185 = arith.constant 2 : index
    %c2_186 = arith.constant 2 : index
    %c0_187 = arith.constant 0 : index
    %191 = vector.load %arg0[%c0_184, %c2_185, %c2_186, %c0_187] : memref<2x10x10x1xf32, #tpu.memory_space<vmem>>, vector<2x8x8x1xf32>
    %c8 = arith.constant 8 : index
    %c0_188 = arith.constant 0 : index
    %c0_189 = arith.constant 0 : index
    %c0_190 = arith.constant 0 : index
    %192 = vector.load %arg3[%c8, %c0_188, %c0_189, %c0_190] : memref<9x3x1x12xf32, #tpu.memory_space<vmem>>, vector<1x1x1x12xf32>
    %193 = vector.shape_cast %192 : vector<1x1x1x12xf32> to vector<1x12xf32>
    %194 = vector.shape_cast %193 : vector<1x12xf32> to vector<1x1x1x12xf32>
    %195 = vector.broadcast %191 : vector<2x8x8x1xf32> to vector<2x8x8x12xf32>
    %196 = vector.broadcast %194 : vector<1x1x1x12xf32> to vector<2x8x8x12xf32>
    %197 = arith.mulf %195, %196 : vector<2x8x8x12xf32>
    %198 = arith.addf %190, %197 : vector<2x8x8x12xf32>
    %c0_191 = arith.constant 0 : index
    %c2_192 = arith.constant 2 : index
    %c2_193 = arith.constant 2 : index
    %c0_194 = arith.constant 0 : index
    %199 = vector.load %arg1[%c0_191, %c2_192, %c2_193, %c0_194] : memref<2x10x10x1xf32, #tpu.memory_space<vmem>>, vector<2x8x8x1xf32>
    %c8_195 = arith.constant 8 : index
    %c1_196 = arith.constant 1 : index
    %c0_197 = arith.constant 0 : index
    %c0_198 = arith.constant 0 : index
    %200 = vector.load %arg3[%c8_195, %c1_196, %c0_197, %c0_198] : memref<9x3x1x12xf32, #tpu.memory_space<vmem>>, vector<1x1x1x12xf32>
    %201 = vector.shape_cast %200 : vector<1x1x1x12xf32> to vector<1x12xf32>
    %202 = vector.shape_cast %201 : vector<1x12xf32> to vector<1x1x1x12xf32>
    %203 = vector.broadcast %199 : vector<2x8x8x1xf32> to vector<2x8x8x12xf32>
    %204 = vector.broadcast %202 : vector<1x1x1x12xf32> to vector<2x8x8x12xf32>
    %205 = arith.mulf %203, %204 : vector<2x8x8x12xf32>
    %206 = arith.addf %198, %205 : vector<2x8x8x12xf32>
    %c0_199 = arith.constant 0 : index
    %c2_200 = arith.constant 2 : index
    %c2_201 = arith.constant 2 : index
    %c0_202 = arith.constant 0 : index
    %207 = vector.load %arg2[%c0_199, %c2_200, %c2_201, %c0_202] : memref<2x10x10x1xf32, #tpu.memory_space<vmem>>, vector<2x8x8x1xf32>
    %c8_203 = arith.constant 8 : index
    %c2_204 = arith.constant 2 : index
    %c0_205 = arith.constant 0 : index
    %c0_206 = arith.constant 0 : index
    %208 = vector.load %arg3[%c8_203, %c2_204, %c0_205, %c0_206] : memref<9x3x1x12xf32, #tpu.memory_space<vmem>>, vector<1x1x1x12xf32>
    %209 = vector.shape_cast %208 : vector<1x1x1x12xf32> to vector<1x12xf32>
    %210 = vector.shape_cast %209 : vector<1x12xf32> to vector<1x1x1x12xf32>
    %211 = vector.broadcast %207 : vector<2x8x8x1xf32> to vector<2x8x8x12xf32>
    %212 = vector.broadcast %210 : vector<1x1x1x12xf32> to vector<2x8x8x12xf32>
    %213 = arith.mulf %211, %212 : vector<2x8x8x12xf32>
    %214 = arith.addf %206, %213 : vector<2x8x8x12xf32>
    %cst = arith.constant dense<0.000000e+00> : vector<8x8x12xf32>
    %215 = vector.multi_reduction <add>, %214, %cst [0] : vector<2x8x8x12xf32> to vector<8x8x12xf32>
    %216 = vector.shape_cast %215 : vector<8x8x12xf32> to vector<1x8x8x12xf32>
    %cst_207 = arith.constant 2.000000e+00 : f32
    %217 = vector.broadcast %cst_207 : f32 to vector<1x8x8x12xf32>
    %218 = arith.divf %216, %217 : vector<1x8x8x12xf32>
    %cst_208 = arith.constant dense<0.000000e+00> : vector<1x8x12xf32>
    %219 = vector.multi_reduction <add>, %218, %cst_208 [1] : vector<1x8x8x12xf32> to vector<1x8x12xf32>
    %220 = vector.shape_cast %219 : vector<1x8x12xf32> to vector<1x1x8x12xf32>
    %cst_209 = arith.constant 8.000000e+00 : f32
    %221 = vector.broadcast %cst_209 : f32 to vector<1x1x8x12xf32>
    %222 = arith.divf %220, %221 : vector<1x1x8x12xf32>
    %cst_210 = arith.constant dense<0.000000e+00> : vector<1x1x12xf32>
    %223 = vector.multi_reduction <add>, %222, %cst_210 [2] : vector<1x1x8x12xf32> to vector<1x1x12xf32>
    %224 = vector.shape_cast %223 : vector<1x1x12xf32> to vector<1x1x1x12xf32>
    %cst_211 = arith.constant 8.000000e+00 : f32
    %225 = vector.broadcast %cst_211 : f32 to vector<1x1x1x12xf32>
    %226 = arith.divf %224, %225 : vector<1x1x1x12xf32>
    %227 = vector.broadcast %226 : vector<1x1x1x12xf32> to vector<2x8x8x12xf32>
    %228 = arith.subf %214, %227 : vector<2x8x8x12xf32>
    %229 = vector.broadcast %226 : vector<1x1x1x12xf32> to vector<2x8x8x12xf32>
    %230 = arith.subf %214, %229 : vector<2x8x8x12xf32>
    %231 = arith.mulf %228, %230 : vector<2x8x8x12xf32>
    %cst_212 = arith.constant dense<0.000000e+00> : vector<8x8x12xf32>
    %232 = vector.multi_reduction <add>, %231, %cst_212 [0] : vector<2x8x8x12xf32> to vector<8x8x12xf32>
    %233 = vector.shape_cast %232 : vector<8x8x12xf32> to vector<1x8x8x12xf32>
    %cst_213 = arith.constant 2.000000e+00 : f32
    %234 = vector.broadcast %cst_213 : f32 to vector<1x8x8x12xf32>
    %235 = arith.divf %233, %234 : vector<1x8x8x12xf32>
    %cst_214 = arith.constant dense<0.000000e+00> : vector<1x8x12xf32>
    %236 = vector.multi_reduction <add>, %235, %cst_214 [1] : vector<1x8x8x12xf32> to vector<1x8x12xf32>
    %237 = vector.shape_cast %236 : vector<1x8x12xf32> to vector<1x1x8x12xf32>
    %cst_215 = arith.constant 8.000000e+00 : f32
    %238 = vector.broadcast %cst_215 : f32 to vector<1x1x8x12xf32>
    %239 = arith.divf %237, %238 : vector<1x1x8x12xf32>
    %cst_216 = arith.constant dense<0.000000e+00> : vector<1x1x12xf32>
    %240 = vector.multi_reduction <add>, %239, %cst_216 [2] : vector<1x1x8x12xf32> to vector<1x1x12xf32>
    %241 = vector.shape_cast %240 : vector<1x1x12xf32> to vector<1x1x1x12xf32>
    %cst_217 = arith.constant 8.000000e+00 : f32
    %242 = vector.broadcast %cst_217 : f32 to vector<1x1x1x12xf32>
    %243 = arith.divf %241, %242 : vector<1x1x1x12xf32>
    %244 = vector.broadcast %226 : vector<1x1x1x12xf32> to vector<2x8x8x12xf32>
    %245 = arith.subf %214, %244 : vector<2x8x8x12xf32>
    %cst_218 = arith.constant 9.99999974E-6 : f32
    %246 = vector.broadcast %cst_218 : f32 to vector<1x1x1x12xf32>
    %247 = arith.addf %243, %246 : vector<1x1x1x12xf32>
    %248 = math.rsqrt %247 : vector<1x1x1x12xf32>
    %249 = vector.broadcast %248 : vector<1x1x1x12xf32> to vector<2x8x8x12xf32>
    %250 = arith.mulf %245, %249 : vector<2x8x8x12xf32>
    %c0_219 = arith.constant 0 : index
    %c0_220 = arith.constant 0 : index
    %c0_221 = arith.constant 0 : index
    %c0_222 = arith.constant 0 : index
    %251 = vector.load %arg4[%c0_219, %c0_220, %c0_221, %c0_222] : memref<1x1x1x12xf32, #tpu.memory_space<vmem>>, vector<1x1x1x12xf32>
    %252 = vector.broadcast %251 : vector<1x1x1x12xf32> to vector<2x8x8x12xf32>
    %253 = arith.mulf %250, %252 : vector<2x8x8x12xf32>
    %c0_223 = arith.constant 0 : index
    %c0_224 = arith.constant 0 : index
    %c0_225 = arith.constant 0 : index
    %c0_226 = arith.constant 0 : index
    %254 = vector.load %arg5[%c0_223, %c0_224, %c0_225, %c0_226] : memref<1x1x1x12xf32, #tpu.memory_space<vmem>>, vector<1x1x1x12xf32>
    %255 = vector.broadcast %254 : vector<1x1x1x12xf32> to vector<2x8x8x12xf32>
    %256 = arith.addf %253, %255 : vector<2x8x8x12xf32>
    %c0_227 = arith.constant 0 : index
    %c0_228 = arith.constant 0 : index
    %c0_229 = arith.constant 0 : index
    %c0_230 = arith.constant 0 : index
    %257 = vector.load %arg6[%c0_227, %c0_228, %c0_229, %c0_230] : memref<2x8x8x12xf32, #tpu.memory_space<vmem>>, vector<2x8x8x12xf32>
    tpu.vector_store %arg6[%c0_227, %c0_228, %c0_229, %c0_230], %256 {strides = array<i32>} : memref<2x8x8x12xf32, #tpu.memory_space<vmem>>, vector<2x8x8x12xf32>,
    return
  }
}

</mosaic_0001>

<llo_original>
// kernel: tpu_custom_call.1
$region0: #{tpu_custom_call.1}
  #allocation0 [shape = 'u32[]', space=smem, size = 0x4, offset = 0x4, fixed_abs, tag = 'smem constant byte address 0x4 - core index']
  #allocation1 [shape = 'u32[144,128]{1,0:T(1,128)}', space=vmem, size = 0x12000, scoped, tag = 'internal scratch']
  %s0 = inlined_call_operand.vmem [shape: f32[2,10,10,1], index: 0, kind: input, shape index: {}]
  %s1 = inlined_call_operand.vmem [shape: f32[2,10,10,1], index: 1, kind: input, shape index: {}]
  %s2 = inlined_call_operand.vmem [shape: f32[2,10,10,1], index: 2, kind: input, shape index: {}]
  %s3 = inlined_call_operand.vmem [shape: f32[9,3,1,12], index: 3, kind: input, shape index: {}]
  %s4 = inlined_call_operand.vmem [shape: f32[1,1,1,12], index: 4, kind: input, shape index: {}]
  %s5 = inlined_call_operand.vmem [shape: f32[1,1,1,12], index: 5, kind: input, shape index: {}]
  %s6 = inlined_call_operand.hbm [shape: f32[2,8,8,12], index: 6, kind: output, shape index: {}]
  %s7 = sld [smem:[#allocation0]]
  $region34: #{tpu_custom_call.1} parent=0
    _
  %s9 = ssub.s32 1, %s7
  %s10 = scalar_select 0, %s9, %s7
  $region1: #{tpu_custom_call.1} parent=0
    #allocation2 [shape = 'u8[65536]{0}', space=vmem, size = 0x10000, scoped, tag = 'output window, operand 0, single buffered']
    #allocation3 [shape = 's32[1]{0}', space=sflag, size = 0x4, scoped, tag = 'scoped memory for tpu_custom_call.1']
    %11 = vsyncpa [#allocation3], 0
    // Predicated region
    $region2: #{tpu_custom_call.1} parent=1 // pred_check
      _
    $region3: #{tpu_custom_call.1} parent=1 // pred_check_branch
      %13 = sbr.rel (0) target = $region5
    $region4: #{tpu_custom_call.1} parent=1 // pred_region
      _
    $region5: #{tpu_custom_call.1} parent=1 // pred_fallthru
      _
    // Predicated region
    $region6: #{tpu_custom_call.1} parent=1 // pred_check
      _
    $region7: #{tpu_custom_call.1} parent=1 // pred_check_branch
      %15 = sbr.rel (0) target = $region9
    $region8: #{tpu_custom_call.1} parent=1 // pred_region
      _
    $region9: #{tpu_custom_call.1} parent=1 // pred_fallthru
      _
    // Predicated region
    $region10: #{tpu_custom_call.1} parent=1 // pred_check
      _
    $region11: #{tpu_custom_call.1} parent=1 // pred_check_branch
      %17 = sbr.rel (0) target = $region13
    $region12: #{tpu_custom_call.1} parent=1 // pred_region
      _
    $region13: #{tpu_custom_call.1} parent=1 // pred_fallthru
      _
    // Predicated region
    $region14: #{tpu_custom_call.1} parent=1 // pred_check
      _
    $region15: #{tpu_custom_call.1} parent=1 // pred_check_branch
      %19 = sbr.rel (0) target = $region17
    $region16: #{tpu_custom_call.1} parent=1 // pred_region
      _
    $region17: #{tpu_custom_call.1} parent=1 // pred_fallthru
      _
    // Predicated region
    $region18: #{tpu_custom_call.1} parent=1 // pred_check
      _
    $region19: #{tpu_custom_call.1} parent=1 // pred_check_branch
      %21 = sbr.rel (0) target = $region21
    $region20: #{tpu_custom_call.1} parent=1 // pred_region
      _
    $region21: #{tpu_custom_call.1} parent=1 // pred_fallthru
      _
    // Predicated region
    $region22: #{tpu_custom_call.1} parent=1 // pred_check
      _
    $region23: #{tpu_custom_call.1} parent=1 // pred_check_branch
      %23 = sbr.rel (0) target = $region25
    $region24: #{tpu_custom_call.1} parent=1 // pred_region
      _
    $region25: #{tpu_custom_call.1} parent=1 // pred_fallthru
      _
    %v24 = vld [vmem:[%s0] sm:$0xff]
    %v25 = vld [vmem:[%s0 + $0x10] sm:$0xff]
    %v26 = vld [vmem:[%s0 + $0x20] sm:$0xff]
    %v27 = vld [vmem:[%s0 + $0x30] sm:$0xff]
    %v28 = vld [vmem:[%s0 + $0x40] sm:$0xff]
    %v29 = vld [vmem:[%s0 + $0x50] sm:$0xff]
    %v30 = vld [vmem:[%s0 + $0x60] sm:$0xff]
    %v31 = vld [vmem:[%s0 + $0x70] sm:$0xff]
    %v32 = vld [vmem:[%s0 + $0xa0] sm:$0xff]
    %v33 = vld [vmem:[%s0 + $0xb0] sm:$0xff]
    %v34 = vld [vmem:[%s0 + $0xc0] sm:$0xff]
    %v35 = vld [vmem:[%s0 + $0xd0] sm:$0xff]
    %v36 = vld [vmem:[%s0 + $0xe0] sm:$0xff]
    %v37 = vld [vmem:[%s0 + $0xf0] sm:$0xff]
    %v38 = vld [vmem:[%s0 + $0x100] sm:$0xff]
    %v39 = vld [vmem:[%s0 + $0x110] sm:$0xff]
    %v40 = vld [vmem:[%s3] sm:$0x1]
    %42 = vset.pattern.permute.xlu0 0
    %43 = vperm.xlu0 %42, %v24
    %v44 = vpop.permute.xlu0 %43
    %47 = vset.pattern.permute.xlu0 0
    %48 = vperm.xlu0 %47, %v25
    %v49 = vpop.permute.xlu0 %48
    %52 = vset.pattern.permute.xlu0 0
    %53 = vperm.xlu0 %52, %v26
    %v54 = vpop.permute.xlu0 %53
    %57 = vset.pattern.permute.xlu0 0
    %58 = vperm.xlu0 %57, %v27
    %v59 = vpop.permute.xlu0 %58
    %62 = vset.pattern.permute.xlu0 0
    %63 = vperm.xlu0 %62, %v28
    %v64 = vpop.permute.xlu0 %63
    %67 = vset.pattern.permute.xlu0 0
    %68 = vperm.xlu0 %67, %v29
    %v69 = vpop.permute.xlu0 %68
    %72 = vset.pattern.permute.xlu0 0
    %73 = vperm.xlu0 %72, %v30
    %v74 = vpop.permute.xlu0 %73
    %77 = vset.pattern.permute.xlu0 0
    %78 = vperm.xlu0 %77, %v31
    %v79 = vpop.permute.xlu0 %78
    %82 = vset.pattern.permute.xlu0 0
    %83 = vperm.xlu0 %82, %v32
    %v84 = vpop.permute.xlu0 %83
    %87 = vset.pattern.permute.xlu0 0
    %88 = vperm.xlu0 %87, %v33
    %v89 = vpop.permute.xlu0 %88
    %92 = vset.pattern.permute.xlu0 0
    %93 = vperm.xlu0 %92, %v34
    %v94 = vpop.permute.xlu0 %93
    %97 = vset.pattern.permute.xlu0 0
    %98 = vperm.xlu0 %97, %v35
    %v99 = vpop.permute.xlu0 %98
    %102 = vset.pattern.permute.xlu0 0
    %103 = vperm.xlu0 %102, %v36
    %v104 = vpop.permute.xlu0 %103
    %107 = vset.pattern.permute.xlu0 0
    %108 = vperm.xlu0 %107, %v37
    %v109 = vpop.permute.xlu0 %108
    %112 = vset.pattern.permute.xlu0 0
    %113 = vperm.xlu0 %112, %v38
    %v114 = vpop.permute.xlu0 %113
    %117 = vset.pattern.permute.xlu0 0
    %118 = vperm.xlu0 %117, %v39
    %v119 = vpop.permute.xlu0 %118
    %v122 = vlaneseq
    %v123 = vshrl.u32 %v122, 7
    %v124 = vsub.s32 0, %v123
    %v125 = vrot.slane %v40, %v124
    %v127 = vmul.f32 %v44, %v125
    %v128 = vmul.f32 %v49, %v125
    %v129 = vmul.f32 %v54, %v125
    %v130 = vmul.f32 %v59, %v125
    %v131 = vmul.f32 %v64, %v125
    %v132 = vmul.f32 %v69, %v125
    %v133 = vmul.f32 %v74, %v125
    %v134 = vmul.f32 %v79, %v125
    %v135 = vmul.f32 %v84, %v125
    %v136 = vmul.f32 %v89, %v125
    %v137 = vmul.f32 %v94, %v125
    %v138 = vmul.f32 %v99, %v125
    %v139 = vmul.f32 %v104, %v125
    %v140 = vmul.f32 %v109, %v125
    %v141 = vmul.f32 %v114, %v125
    %v142 = vmul.f32 %v119, %v125
    %v143 = vld [vmem:[%s1] sm:$0xff]
    %v144 = vld [vmem:[%s1 + $0x10] sm:$0xff]
    %v145 = vld [vmem:[%s1 + $0x20] sm:$0xff]
    %v146 = vld [vmem:[%s1 + $0x30] sm:$0xff]
    %v147 = vld [vmem:[%s1 + $0x40] sm:$0xff]
    %v148 = vld [vmem:[%s1 + $0x50] sm:$0xff]
    %v149 = vld [vmem:[%s1 + $0x60] sm:$0xff]
    %v150 = vld [vmem:[%s1 + $0x70] sm:$0xff]
    %v151 = vld [vmem:[%s1 + $0xa0] sm:$0xff]
    %v152 = vld [vmem:[%s1 + $0xb0] sm:$0xff]
    %v153 = vld [vmem:[%s1 + $0xc0] sm:$0xff]
    %v154 = vld [vmem:[%s1 + $0xd0] sm:$0xff]
    %v155 = vld [vmem:[%s1 + $0xe0] sm:$0xff]
    %v156 = vld [vmem:[%s1 + $0xf0] sm:$0xff]
    %v157 = vld [vmem:[%s1 + $0x100] sm:$0xff]
    %v158 = vld [vmem:[%s1 + $0x110] sm:$0xff]
    %s159 = scalar_lea.vmem %s3, 1
    %v160 = vld [vmem:[%s159] sm:$0x1]
    %162 = vset.pattern.permute.xlu0 0
    %163 = vperm.xlu0 %162, %v143
    %v164 = vpop.permute.xlu0 %163
    %167 = vset.pattern.permute.xlu0 0
    %168 = vperm.xlu0 %167, %v144
    %v169 = vpop.permute.xlu0 %168
    %172 = vset.pattern.permute.xlu0 0
    %173 = vperm.xlu0 %172, %v145
    %v174 = vpop.permute.xlu0 %173
    %177 = vset.pattern.permute.xlu0 0
    %178 = vperm.xlu0 %177, %v146
    %v179 = vpop.permute.xlu0 %178
    %182 = vset.pattern.permute.xlu0 0
    %183 = vperm.xlu0 %182, %v147
    %v184 = vpop.permute.xlu0 %183
    %187 = vset.pattern.permute.xlu0 0
    %188 = vperm.xlu0 %187, %v148
    %v189 = vpop.permute.xlu0 %188
    %192 = vset.pattern.permute.xlu0 0
    %193 = vperm.xlu0 %192, %v149
    %v194 = vpop.permute.xlu0 %193
    %197 = vset.pattern.permute.xlu0 0
    %198 = vperm.xlu0 %197, %v150
    %v199 = vpop.permute.xlu0 %198
    %202 = vset.pattern.permute.xlu0 0
    %203 = vperm.xlu0 %202, %v151
    %v204 = vpop.permute.xlu0 %203
    %207 = vset.pattern.permute.xlu0 0
    %208 = vperm.xlu0 %207, %v152
    %v209 = vpop.permute.xlu0 %208
    %212 = vset.pattern.permute.xlu0 0
    %213 = vperm.xlu0 %212, %v153
    %v214 = vpop.permute.xlu0 %213
    %217 = vset.pattern.permute.xlu0 0
    %218 = vperm.xlu0 %217, %v154
    %v219 = vpop.permute.xlu0 %218
    %222 = vset.pattern.permute.xlu0 0
    %223 = vperm.xlu0 %222, %v155
    %v224 = vpop.permute.xlu0 %223
    %227 = vset.pattern.permute.xlu0 0
    %228 = vperm.xlu0 %227, %v156
    %v229 = vpop.permute.xlu0 %228
    %232 = vset.pattern.permute.xlu0 0
    %233 = vperm.xlu0 %232, %v157
    %v234 = vpop.permute.xlu0 %233
    %237 = vset.pattern.permute.xlu0 0
    %238 = vperm.xlu0 %237, %v158
    %v239 = vpop.permute.xlu0 %238
    %v242 = vlaneseq
    %v243 = vshrl.u32 %v242, 7
    %v244 = vsub.s32 0, %v243
    %v245 = vrot.slane %v160, %v244
    %v247 = vmul.f32 %v164, %v245
    %v248 = vmul.f32 %v169, %v245
    %v249 = vmul.f32 %v174, %v245
    %v250 = vmul.f32 %v179, %v245
    %v251 = vmul.f32 %v184, %v245
    %v252 = vmul.f32 %v189, %v245
    %v253 = vmul.f32 %v194, %v245
    %v254 = vmul.f32 %v199, %v245
    %v255 = vmul.f32 %v204, %v245
    %v256 = vmul.f32 %v209, %v245
    %v257 = vmul.f32 %v214, %v245
    %v258 = vmul.f32 %v219, %v245
    %v259 = vmul.f32 %v224, %v245
    %v260 = vmul.f32 %v229, %v245
    %v261 = vmul.f32 %v234, %v245
    %v262 = vmul.f32 %v239, %v245
    %v263 = vadd.f32 %v127, %v247
    %v264 = vadd.f32 %v128, %v248
    %v265 = vadd.f32 %v129, %v249
    %v266 = vadd.f32 %v130, %v250
    %v267 = vadd.f32 %v131, %v251
    %v268 = vadd.f32 %v132, %v252
    %v269 = vadd.f32 %v133, %v253
    %v270 = vadd.f32 %v134, %v254
    %v271 = vadd.f32 %v135, %v255
    %v272 = vadd.f32 %v136, %v256
    %v273 = vadd.f32 %v137, %v257
    %v274 = vadd.f32 %v138, %v258
    %v275 = vadd.f32 %v139, %v259
    %v276 = vadd.f32 %v140, %v260
    %v277 = vadd.f32 %v141, %v261
    %v278 = vadd.f32 %v142, %v262
    %v279 = vld [vmem:[%s2] sm:$0xff]
    %v280 = vld [vmem:[%s2 + $0x10] sm:$0xff]
    %v281 = vld [vmem:[%s2 + $0x20] sm:$0xff]
    %v282 = vld [vmem:[%s2 + $0x30] sm:$0xff]
    %v283 = vld [vmem:[%s2 + $0x40] sm:$0xff]
    %v284 = vld [vmem:[%s2 + $0x50] sm:$0xff]
    %v285 = vld [vmem:[%s2 + $0x60] sm:$0xff]
    %v286 = vld [vmem:[%s2 + $0x70] sm:$0xff]
    %v287 = vld [vmem:[%s2 + $0xa0] sm:$0xff]
    %v288 = vld [vmem:[%s2 + $0xb0] sm:$0xff]
    %v289 = vld [vmem:[%s2 + $0xc0] sm:$0xff]
    %v290 = vld [vmem:[%s2 + $0xd0] sm:$0xff]
    %v291 = vld [vmem:[%s2 + $0xe0] sm:$0xff]
    %v292 = vld [vmem:[%s2 + $0xf0] sm:$0xff]
    %v293 = vld [vmem:[%s2 + $0x100] sm:$0xff]
    %v294 = vld [vmem:[%s2 + $0x110] sm:$0xff]
    %s295 = scalar_lea.vmem %s3, 2
    %v296 = vld [vmem:[%s295] sm:$0x1]
    %298 = vset.pattern.permute.xlu0 0
    %299 = vperm.xlu0 %298, %v279
    %v300 = vpop.permute.xlu0 %299
    %303 = vset.pattern.permute.xlu0 0
    %304 = vperm.xlu0 %303, %v280
    %v305 = vpop.permute.xlu0 %304
    %308 = vset.pattern.permute.xlu0 0
    %309 = vperm.xlu0 %308, %v281
    %v310 = vpop.permute.xlu0 %309
    %313 = vset.pattern.permute.xlu0 0
    %314 = vperm.xlu0 %313, %v282
    %v315 = vpop.permute.xlu0 %314
    %318 = vset.pattern.permute.xlu0 0
    %319 = vperm.xlu0 %318, %v283
    %v320 = vpop.permute.xlu0 %319
    %323 = vset.pattern.permute.xlu0 0
    %324 = vperm.xlu0 %323, %v284
    %v325 = vpop.permute.xlu0 %324
    %328 = vset.pattern.permute.xlu0 0
    %329 = vperm.xlu0 %328, %v285
    %v330 = vpop.permute.xlu0 %329
    %333 = vset.pattern.permute.xlu0 0
    %334 = vperm.xlu0 %333, %v286
    %v335 = vpop.permute.xlu0 %334
    %338 = vset.pattern.permute.xlu0 0
    %339 = vperm.xlu0 %338, %v287
    %v340 = vpop.permute.xlu0 %339
    %343 = vset.pattern.permute.xlu0 0
    %344 = vperm.xlu0 %343, %v288
    %v345 = vpop.permute.xlu0 %344
    %348 = vset.pattern.permute.xlu0 0
    %349 = vperm.xlu0 %348, %v289
    %v350 = vpop.permute.xlu0 %349
    %353 = vset.pattern.permute.xlu0 0
    %354 = vperm.xlu0 %353, %v290
    %v355 = vpop.permute.xlu0 %354
    %358 = vset.pattern.permute.xlu0 0
    %359 = vperm.xlu0 %358, %v291
    %v360 = vpop.permute.xlu0 %359
    %363 = vset.pattern.permute.xlu0 0
    %364 = vperm.xlu0 %363, %v292
    %v365 = vpop.permute.xlu0 %364
    %368 = vset.pattern.permute.xlu0 0
    %369 = vperm.xlu0 %368, %v293
    %v370 = vpop.permute.xlu0 %369
    %373 = vset.pattern.permute.xlu0 0
    %374 = vperm.xlu0 %373, %v294
    %v375 = vpop.permute.xlu0 %374
    %v378 = vlaneseq
    %v379 = vshrl.u32 %v378, 7
    %v380 = vsub.s32 0, %v379
    %v381 = vrot.slane %v296, %v380
    %v383 = vmul.f32 %v300, %v381
    %v384 = vmul.f32 %v305, %v381
    %v385 = vmul.f32 %v310, %v381
    %v386 = vmul.f32 %v315, %v381
    %v387 = vmul.f32 %v320, %v381
    %v388 = vmul.f32 %v325, %v381
    %v389 = vmul.f32 %v330, %v381
    %v390 = vmul.f32 %v335, %v381
    %v391 = vmul.f32 %v340, %v381
    %v392 = vmul.f32 %v345, %v381
    %v393 = vmul.f32 %v350, %v381
    %v394 = vmul.f32 %v355, %v381
    %v395 = vmul.f32 %v360, %v381
    %v396 = vmul.f32 %v365, %v381
    %v397 = vmul.f32 %v370, %v381
    %v398 = vmul.f32 %v375, %v381
    %v399 = vadd.f32 %v263, %v383
    %v400 = vadd.f32 %v264, %v384
    %v401 = vadd.f32 %v265, %v385
    %v402 = vadd.f32 %v266, %v386
    %v403 = vadd.f32 %v267, %v387
    %v404 = vadd.f32 %v268, %v388
    %v405 = vadd.f32 %v269, %v389
    %v406 = vadd.f32 %v270, %v390
    %v407 = vadd.f32 %v271, %v391
    %v408 = vadd.f32 %v272, %v392
    %v409 = vadd.f32 %v273, %v393
    %v410 = vadd.f32 %v274, %v394
    %v411 = vadd.f32 %v275, %v395
    %v412 = vadd.f32 %v276, %v396
    %v413 = vadd.f32 %v277, %v397
    %v414 = vadd.f32 %v278, %v398
    %v415 = vld [vmem:[%s0 + $0x1] sm:$0xff]
    %v416 = vld [vmem:[%s0 + $0x11] sm:$0xff]
    %v417 = vld [vmem:[%s0 + $0x21] sm:$0xff]
    %v418 = vld [vmem:[%s0 + $0x31] sm:$0xff]
    %v419 = vld [vmem:[%s0 + $0x41] sm:$0xff]
    %v420 = vld [vmem:[%s0 + $0x51] sm:$0xff]
    %v421 = vld [vmem:[%s0 + $0x61] sm:$0xff]
    %v422 = vld [vmem:[%s0 + $0x71] sm:$0xff]
    %v423 = vld [vmem:[%s0 + $0xa1] sm:$0xff]
    %v424 = vld [vmem:[%s0 + $0xb1] sm:$0xff]
    %v425 = vld [vmem:[%s0 + $0xc1] sm:$0xff]
    %v426 = vld [vmem:[%s0 + $0xd1] sm:$0xff]
    %v427 = vld [vmem:[%s0 + $0xe1] sm:$0xff]
    %v428 = vld [vmem:[%s0 + $0xf1] sm:$0xff]
    %v429 = vld [vmem:[%s0 + $0x101] sm:$0xff]
    %v430 = vld [vmem:[%s0 + $0x111] sm:$0xff]
    %s431 = scalar_lea.vmem %s3, 3
    %v432 = vld [vmem:[%s431] sm:$0x1]
    %434 = vset.pattern.permute.xlu0 0
    %435 = vperm.xlu0 %434, %v415
    %v436 = vpop.permute.xlu0 %435
    %439 = vset.pattern.permute.xlu0 0
    %440 = vperm.xlu0 %439, %v416
    %v441 = vpop.permute.xlu0 %440
    %444 = vset.pattern.permute.xlu0 0
    %445 = vperm.xlu0 %444, %v417
    %v446 = vpop.permute.xlu0 %445
    %449 = vset.pattern.permute.xlu0 0
    %450 = vperm.xlu0 %449, %v418
    %v451 = vpop.permute.xlu0 %450
    %454 = vset.pattern.permute.xlu0 0
    %455 = vperm.xlu0 %454, %v419
    %v456 = vpop.permute.xlu0 %455
    %459 = vset.pattern.permute.xlu0 0
    %460 = vperm.xlu0 %459, %v420
    %v461 = vpop.permute.xlu0 %460
    %464 = vset.pattern.permute.xlu0 0
    %465 = vperm.xlu0 %464, %v421
    %v466 = vpop.permute.xlu0 %465
    %469 = vset.pattern.permute.xlu0 0
    %470 = vperm.xlu0 %469, %v422
    %v471 = vpop.permute.xlu0 %470
    %474 = vset.pattern.permute.xlu0 0
    %475 = vperm.xlu0 %474, %v423
    %v476 = vpop.permute.xlu0 %475
    %479 = vset.pattern.permute.xlu0 0
    %480 = vperm.xlu0 %479, %v424
    %v481 = vpop.permute.xlu0 %480
    %484 = vset.pattern.permute.xlu0 0
    %485 = vperm.xlu0 %484, %v425
    %v486 = vpop.permute.xlu0 %485
    %489 = vset.pattern.permute.xlu0 0
    %490 = vperm.xlu0 %489, %v426
    %v491 = vpop.permute.xlu0 %490
    %494 = vset.pattern.permute.xlu0 0
    %495 = vperm.xlu0 %494, %v427
    %v496 = vpop.permute.xlu0 %495
    %499 = vset.pattern.permute.xlu0 0
    %500 = vperm.xlu0 %499, %v428
    %v501 = vpop.permute.xlu0 %500
    %504 = vset.pattern.permute.xlu0 0
    %505 = vperm.xlu0 %504, %v429
    %v506 = vpop.permute.xlu0 %505
    %509 = vset.pattern.permute.xlu0 0
    %510 = vperm.xlu0 %509, %v430
    %v511 = vpop.permute.xlu0 %510
    %v514 = vlaneseq
    %v515 = vshrl.u32 %v514, 7
    %v516 = vsub.s32 0, %v515
    %v517 = vrot.slane %v432, %v516
    %v519 = vmul.f32 %v436, %v517
    %v520 = vmul.f32 %v441, %v517
    %v521 = vmul.f32 %v446, %v517
    %v522 = vmul.f32 %v451, %v517
    %v523 = vmul.f32 %v456, %v517
    %v524 = vmul.f32 %v461, %v517
    %v525 = vmul.f32 %v466, %v517
    %v526 = vmul.f32 %v471, %v517
    %v527 = vmul.f32 %v476, %v517
    %v528 = vmul.f32 %v481, %v517
    %v529 = vmul.f32 %v486, %v517
    %v530 = vmul.f32 %v491, %v517
    %v531 = vmul.f32 %v496, %v517
    %v532 = vmul.f32 %v501, %v517
    %v533 = vmul.f32 %v506, %v517
    %v534 = vmul.f32 %v511, %v517
    %v535 = vadd.f32 %v399, %v519
    %v536 = vadd.f32 %v400, %v520
    %v537 = vadd.f32 %v401, %v521
    %v538 = vadd.f32 %v402, %v522
    %v539 = vadd.f32 %v403, %v523
    %v540 = vadd.f32 %v404, %v524
    %v541 = vadd.f32 %v405, %v525
    %v542 = vadd.f32 %v406, %v526
    %v543 = vadd.f32 %v407, %v527
    %v544 = vadd.f32 %v408, %v528
    %v545 = vadd.f32 %v409, %v529
    %v546 = vadd.f32 %v410, %v530
    %v547 = vadd.f32 %v411, %v531
    %v548 = vadd.f32 %v412, %v532
    %v549 = vadd.f32 %v413, %v533
    %v550 = vadd.f32 %v414, %v534
    %v551 = vld [vmem:[%s1 + $0x1] sm:$0xff]
    %v552 = vld [vmem:[%s1 + $0x11] sm:$0xff]
    %v553 = vld [vmem:[%s1 + $0x21] sm:$0xff]
    %v554 = vld [vmem:[%s1 + $0x31] sm:$0xff]
    %v555 = vld [vmem:[%s1 + $0x41] sm:$0xff]
    %v556 = vld [vmem:[%s1 + $0x51] sm:$0xff]
    %v557 = vld [vmem:[%s1 + $0x61] sm:$0xff]
    %v558 = vld [vmem:[%s1 + $0x71] sm:$0xff]
    %v559 = vld [vmem:[%s1 + $0xa1] sm:$0xff]
    %v560 = vld [vmem:[%s1 + $0xb1] sm:$0xff]
    %v561 = vld [vmem:[%s1 + $0xc1] sm:$0xff]
    %v562 = vld [vmem:[%s1 + $0xd1] sm:$0xff]
    %v563 = vld [vmem:[%s1 + $0xe1] sm:$0xff]
    %v564 = vld [vmem:[%s1 + $0xf1] sm:$0xff]
    %v565 = vld [vmem:[%s1 + $0x101] sm:$0xff]
    %v566 = vld [vmem:[%s1 + $0x111] sm:$0xff]
    %s567 = scalar_lea.vmem %s3, 4
    %v568 = vld [vmem:[%s567] sm:$0x1]
    %570 = vset.pattern.permute.xlu0 0
    %571 = vperm.xlu0 %570, %v551
    %v572 = vpop.permute.xlu0 %571
    %575 = vset.pattern.permute.xlu0 0
    %576 = vperm.xlu0 %575, %v552
    %v577 = vpop.permute.xlu0 %576
    %580 = vset.pattern.permute.xlu0 0
    %581 = vperm.xlu0 %580, %v553
    %v582 = vpop.permute.xlu0 %581
    %585 = vset.pattern.permute.xlu0 0
    %586 = vperm.xlu0 %585, %v554
    %v587 = vpop.permute.xlu0 %586
    %590 = vset.pattern.permute.xlu0 0
    %591 = vperm.xlu0 %590, %v555
    %v592 = vpop.permute.xlu0 %591
    %595 = vset.pattern.permute.xlu0 0
    %596 = vperm.xlu0 %595, %v556
    %v597 = vpop.permute.xlu0 %596
    %600 = vset.pattern.permute.xlu0 0
    %601 = vperm.xlu0 %600, %v557
    %v602 = vpop.permute.xlu0 %601
    %605 = vset.pattern.permute.xlu0 0
    %606 = vperm.xlu0 %605, %v558
    %v607 = vpop.permute.xlu0 %606
    %610 = vset.pattern.permute.xlu0 0
    %611 = vperm.xlu0 %610, %v559
    %v612 = vpop.permute.xlu0 %611
    %615 = vset.pattern.permute.xlu0 0
    %616 = vperm.xlu0 %615, %v560
    %v617 = vpop.permute.xlu0 %616
    %620 = vset.pattern.permute.xlu0 0
    %621 = vperm.xlu0 %620, %v561
    %v622 = vpop.permute.xlu0 %621
    %625 = vset.pattern.permute.xlu0 0
    %626 = vperm.xlu0 %625, %v562
    %v627 = vpop.permute.xlu0 %626
    %630 = vset.pattern.permute.xlu0 0
    %631 = vperm.xlu0 %630, %v563
    %v632 = vpop.permute.xlu0 %631
    %635 = vset.pattern.permute.xlu0 0
    %636 = vperm.xlu0 %635, %v564
    %v637 = vpop.permute.xlu0 %636
    %640 = vset.pattern.permute.xlu0 0
    %641 = vperm.xlu0 %640, %v565
    %v642 = vpop.permute.xlu0 %641
    %645 = vset.pattern.permute.xlu0 0
    %646 = vperm.xlu0 %645, %v566
    %v647 = vpop.permute.xlu0 %646
    %v650 = vlaneseq
    %v651 = vshrl.u32 %v650, 7
    %v652 = vsub.s32 0, %v651
    %v653 = vrot.slane %v568, %v652
    %v655 = vmul.f32 %v572, %v653
    %v656 = vmul.f32 %v577, %v653
    %v657 = vmul.f32 %v582, %v653
    %v658 = vmul.f32 %v587, %v653
    %v659 = vmul.f32 %v592, %v653
    %v660 = vmul.f32 %v597, %v653
    %v661 = vmul.f32 %v602, %v653
    %v662 = vmul.f32 %v607, %v653
    %v663 = vmul.f32 %v612, %v653
    %v664 = vmul.f32 %v617, %v653
    %v665 = vmul.f32 %v622, %v653
    %v666 = vmul.f32 %v627, %v653
    %v667 = vmul.f32 %v632, %v653
    %v668 = vmul.f32 %v637, %v653
    %v669 = vmul.f32 %v642, %v653
    %v670 = vmul.f32 %v647, %v653
    %v671 = vadd.f32 %v535, %v655
    %v672 = vadd.f32 %v536, %v656
    %v673 = vadd.f32 %v537, %v657
    %v674 = vadd.f32 %v538, %v658
    %v675 = vadd.f32 %v539, %v659
    %v676 = vadd.f32 %v540, %v660
    %v677 = vadd.f32 %v541, %v661
    %v678 = vadd.f32 %v542, %v662
    %v679 = vadd.f32 %v543, %v663
    %v680 = vadd.f32 %v544, %v664
    %v681 = vadd.f32 %v545, %v665
    %v682 = vadd.f32 %v546, %v666
    %v683 = vadd.f32 %v547, %v667
    %v684 = vadd.f32 %v548, %v668
    %v685 = vadd.f32 %v549, %v669
    %v686 = vadd.f32 %v550, %v670
    %v687 = vld [vmem:[%s2 + $0x1] sm:$0xff]
    %v688 = vld [vmem:[%s2 + $0x11] sm:$0xff]
    %v689 = vld [vmem:[%s2 + $0x21] sm:$0xff]
    %v690 = vld [vmem:[%s2 + $0x31] sm:$0xff]
    %v691 = vld [vmem:[%s2 + $0x41] sm:$0xff]
    %v692 = vld [vmem:[%s2 + $0x51] sm:$0xff]
    %v693 = vld [vmem:[%s2 + $0x61] sm:$0xff]
    %v694 = vld [vmem:[%s2 + $0x71] sm:$0xff]
    %v695 = vld [vmem:[%s2 + $0xa1] sm:$0xff]
    %v696 = vld [vmem:[%s2 + $0xb1] sm:$0xff]
    %v697 = vld [vmem:[%s2 + $0xc1] sm:$0xff]
    %v698 = vld [vmem:[%s2 + $0xd1] sm:$0xff]
    %v699 = vld [vmem:[%s2 + $0xe1] sm:$0xff]
    %v700 = vld [vmem:[%s2 + $0xf1] sm:$0xff]
    %v701 = vld [vmem:[%s2 + $0x101] sm:$0xff]
    %v702 = vld [vmem:[%s2 + $0x111] sm:$0xff]
    %s703 = scalar_lea.vmem %s3, 5
    %v704 = vld [vmem:[%s703] sm:$0x1]
    %706 = vset.pattern.permute.xlu0 0
    %707 = vperm.xlu0 %706, %v687
    %v708 = vpop.permute.xlu0 %707
    %711 = vset.pattern.permute.xlu0 0
    %712 = vperm.xlu0 %711, %v688
    %v713 = vpop.permute.xlu0 %712
    %716 = vset.pattern.permute.xlu0 0
    %717 = vperm.xlu0 %716, %v689
    %v718 = vpop.permute.xlu0 %717
    %721 = vset.pattern.permute.xlu0 0
    %722 = vperm.xlu0 %721, %v690
    %v723 = vpop.permute.xlu0 %722
    %726 = vset.pattern.permute.xlu0 0
    %727 = vperm.xlu0 %726, %v691
    %v728 = vpop.permute.xlu0 %727
    %731 = vset.pattern.permute.xlu0 0
    %732 = vperm.xlu0 %731, %v692
    %v733 = vpop.permute.xlu0 %732
    %736 = vset.pattern.permute.xlu0 0
    %737 = vperm.xlu0 %736, %v693
    %v738 = vpop.permute.xlu0 %737
    %741 = vset.pattern.permute.xlu0 0
    %742 = vperm.xlu0 %741, %v694
    %v743 = vpop.permute.xlu0 %742
    %746 = vset.pattern.permute.xlu0 0
    %747 = vperm.xlu0 %746, %v695
    %v748 = vpop.permute.xlu0 %747
    %751 = vset.pattern.permute.xlu0 0
    %752 = vperm.xlu0 %751, %v696
    %v753 = vpop.permute.xlu0 %752
    %756 = vset.pattern.permute.xlu0 0
    %757 = vperm.xlu0 %756, %v697
    %v758 = vpop.permute.xlu0 %757
    %761 = vset.pattern.permute.xlu0 0
    %762 = vperm.xlu0 %761, %v698
    %v763 = vpop.permute.xlu0 %762
    %766 = vset.pattern.permute.xlu0 0
    %767 = vperm.xlu0 %766, %v699
    %v768 = vpop.permute.xlu0 %767
    %771 = vset.pattern.permute.xlu0 0
    %772 = vperm.xlu0 %771, %v700
    %v773 = vpop.permute.xlu0 %772
    %776 = vset.pattern.permute.xlu0 0
    %777 = vperm.xlu0 %776, %v701
    %v778 = vpop.permute.xlu0 %777
    %781 = vset.pattern.permute.xlu0 0
    %782 = vperm.xlu0 %781, %v702
    %v783 = vpop.permute.xlu0 %782
    %v786 = vlaneseq
    %v787 = vshrl.u32 %v786, 7
    %v788 = vsub.s32 0, %v787
    %v789 = vrot.slane %v704, %v788
    %v791 = vmul.f32 %v708, %v789
    %v792 = vmul.f32 %v713, %v789
    %v793 = vmul.f32 %v718, %v789
    %v794 = vmul.f32 %v723, %v789
    %v795 = vmul.f32 %v728, %v789
    %v796 = vmul.f32 %v733, %v789
    %v797 = vmul.f32 %v738, %v789
    %v798 = vmul.f32 %v743, %v789
    %v799 = vmul.f32 %v748, %v789
    %v800 = vmul.f32 %v753, %v789
    %v801 = vmul.f32 %v758, %v789
    %v802 = vmul.f32 %v763, %v789
    %v803 = vmul.f32 %v768, %v789
    %v804 = vmul.f32 %v773, %v789
    %v805 = vmul.f32 %v778, %v789
    %v806 = vmul.f32 %v783, %v789
    %v807 = vadd.f32 %v671, %v791
    %v808 = vadd.f32 %v672, %v792
    %v809 = vadd.f32 %v673, %v793
    %v810 = vadd.f32 %v674, %v794
    %v811 = vadd.f32 %v675, %v795
    %v812 = vadd.f32 %v676, %v796
    %v813 = vadd.f32 %v677, %v797
    %v814 = vadd.f32 %v678, %v798
    %v815 = vadd.f32 %v679, %v799
    %v816 = vadd.f32 %v680, %v800
    %v817 = vadd.f32 %v681, %v801
    %v818 = vadd.f32 %v682, %v802
    %v819 = vadd.f32 %v683, %v803
    %v820 = vadd.f32 %v684, %v804
    %v821 = vadd.f32 %v685, %v805
    %v822 = vadd.f32 %v686, %v806
    %v823 = vld [vmem:[%s0 + $0x2] sm:$0xff]
    %v824 = vld [vmem:[%s0 + $0x12] sm:$0xff]
    %v825 = vld [vmem:[%s0 + $0x22] sm:$0xff]
    %v826 = vld [vmem:[%s0 + $0x32] sm:$0xff]
    %v827 = vld [vmem:[%s0 + $0x42] sm:$0xff]
    %v828 = vld [vmem:[%s0 + $0x52] sm:$0xff]
    %v829 = vld [vmem:[%s0 + $0x62] sm:$0xff]
    %v830 = vld [vmem:[%s0 + $0x72] sm:$0xff]
    %v831 = vld [vmem:[%s0 + $0xa2] sm:$0xff]
    %v832 = vld [vmem:[%s0 + $0xb2] sm:$0xff]
    %v833 = vld [vmem:[%s0 + $0xc2] sm:$0xff]
    %v834 = vld [vmem:[%s0 + $0xd2] sm:$0xff]
    %v835 = vld [vmem:[%s0 + $0xe2] sm:$0xff]
    %v836 = vld [vmem:[%s0 + $0xf2] sm:$0xff]
    %v837 = vld [vmem:[%s0 + $0x102] sm:$0xff]
    %v838 = vld [vmem:[%s0 + $0x112] sm:$0xff]
    %s839 = scalar_lea.vmem %s3, 6
    %v840 = vld [vmem:[%s839] sm:$0x1]
    %842 = vset.pattern.permute.xlu0 0
    %843 = vperm.xlu0 %842, %v823
    %v844 = vpop.permute.xlu0 %843
    %847 = vset.pattern.permute.xlu0 0
    %848 = vperm.xlu0 %847, %v824
    %v849 = vpop.permute.xlu0 %848
    %852 = vset.pattern.permute.xlu0 0
    %853 = vperm.xlu0 %852, %v825
    %v854 = vpop.permute.xlu0 %853
    %857 = vset.pattern.permute.xlu0 0
    %858 = vperm.xlu0 %857, %v826
    %v859 = vpop.permute.xlu0 %858
    %862 = vset.pattern.permute.xlu0 0
    %863 = vperm.xlu0 %862, %v827
    %v864 = vpop.permute.xlu0 %863
    %867 = vset.pattern.permute.xlu0 0
    %868 = vperm.xlu0 %867, %v828
    %v869 = vpop.permute.xlu0 %868
    %872 = vset.pattern.permute.xlu0 0
    %873 = vperm.xlu0 %872, %v829
    %v874 = vpop.permute.xlu0 %873
    %877 = vset.pattern.permute.xlu0 0
    %878 = vperm.xlu0 %877, %v830
    %v879 = vpop.permute.xlu0 %878
    %882 = vset.pattern.permute.xlu0 0
    %883 = vperm.xlu0 %882, %v831
    %v884 = vpop.permute.xlu0 %883
    %887 = vset.pattern.permute.xlu0 0
    %888 = vperm.xlu0 %887, %v832
    %v889 = vpop.permute.xlu0 %888
    %892 = vset.pattern.permute.xlu0 0
    %893 = vperm.xlu0 %892, %v833
    %v894 = vpop.permute.xlu0 %893
    %897 = vset.pattern.permute.xlu0 0
    %898 = vperm.xlu0 %897, %v834
    %v899 = vpop.permute.xlu0 %898
    %902 = vset.pattern.permute.xlu0 0
    %903 = vperm.xlu0 %902, %v835
    %v904 = vpop.permute.xlu0 %903
    %907 = vset.pattern.permute.xlu0 0
    %908 = vperm.xlu0 %907, %v836
    %v909 = vpop.permute.xlu0 %908
    %912 = vset.pattern.permute.xlu0 0
    %913 = vperm.xlu0 %912, %v837
    %v914 = vpop.permute.xlu0 %913
    %917 = vset.pattern.permute.xlu0 0
    %918 = vperm.xlu0 %917, %v838
    %v919 = vpop.permute.xlu0 %918
    %v922 = vlaneseq
    %v923 = vshrl.u32 %v922, 7
    %v924 = vsub.s32 0, %v923
    %v925 = vrot.slane %v840, %v924
    %v927 = vmul.f32 %v844, %v925
    %v928 = vmul.f32 %v849, %v925
    %v929 = vmul.f32 %v854, %v925
    %v930 = vmul.f32 %v859, %v925
    %v931 = vmul.f32 %v864, %v925
    %v932 = vmul.f32 %v869, %v925
    %v933 = vmul.f32 %v874, %v925
    %v934 = vmul.f32 %v879, %v925
    %v935 = vmul.f32 %v884, %v925
    %v936 = vmul.f32 %v889, %v925
    %v937 = vmul.f32 %v894, %v925
    %v938 = vmul.f32 %v899, %v925
    %v939 = vmul.f32 %v904, %v925
    %v940 = vmul.f32 %v909, %v925
    %v941 = vmul.f32 %v914, %v925
    %v942 = vmul.f32 %v919, %v925
    %v943 = vadd.f32 %v807, %v927
    %v944 = vadd.f32 %v808, %v928
    %v945 = vadd.f32 %v809, %v929
    %v946 = vadd.f32 %v810, %v930
    %v947 = vadd.f32 %v811, %v931
    %v948 = vadd.f32 %v812, %v932
    %v949 = vadd.f32 %v813, %v933
    %v950 = vadd.f32 %v814, %v934
    %v951 = vadd.f32 %v815, %v935
    %v952 = vadd.f32 %v816, %v936
    %v953 = vadd.f32 %v817, %v937
    %v954 = vadd.f32 %v818, %v938
    %v955 = vadd.f32 %v819, %v939
    %v956 = vadd.f32 %v820, %v940
    %v957 = vadd.f32 %v821, %v941
    %v958 = vadd.f32 %v822, %v942
    %v959 = vld [vmem:[%s1 + $0x2] sm:$0xff]
    %v960 = vld [vmem:[%s1 + $0x12] sm:$0xff]
    %v961 = vld [vmem:[%s1 + $0x22] sm:$0xff]
    %v962 = vld [vmem:[%s1 + $0x32] sm:$0xff]
    %v963 = vld [vmem:[%s1 + $0x42] sm:$0xff]
    %v964 = vld [vmem:[%s1 + $0x52] sm:$0xff]
    %v965 = vld [vmem:[%s1 + $0x62] sm:$0xff]
    %v966 = vld [vmem:[%s1 + $0x72] sm:$0xff]
    %v967 = vld [vmem:[%s1 + $0xa2] sm:$0xff]
    %v968 = vld [vmem:[%s1 + $0xb2] sm:$0xff]
    %v969 = vld [vmem:[%s1 + $0xc2] sm:$0xff]
    %v970 = vld [vmem:[%s1 + $0xd2] sm:$0xff]
    %v971 = vld [vmem:[%s1 + $0xe2] sm:$0xff]
    %v972 = vld [vmem:[%s1 + $0xf2] sm:$0xff]
    %v973 = vld [vmem:[%s1 + $0x102] sm:$0xff]
    %v974 = vld [vmem:[%s1 + $0x112] sm:$0xff]
    %s975 = scalar_lea.vmem %s3, 7
    %v976 = vld [vmem:[%s975] sm:$0x1]
    %978 = vset.pattern.permute.xlu0 0
    %979 = vperm.xlu0 %978, %v959
    %v980 = vpop.permute.xlu0 %979
    %983 = vset.pattern.permute.xlu0 0
    %984 = vperm.xlu0 %983, %v960
    %v985 = vpop.permute.xlu0 %984
    %988 = vset.pattern.permute.xlu0 0
    %989 = vperm.xlu0 %988, %v961
    %v990 = vpop.permute.xlu0 %989
    %993 = vset.pattern.permute.xlu0 0
    %994 = vperm.xlu0 %993, %v962
    %v995 = vpop.permute.xlu0 %994
    %998 = vset.pattern.permute.xlu0 0
    %999 = vperm.xlu0 %998, %v963
    %v1000 = vpop.permute.xlu0 %999
    %1003 = vset.pattern.permute.xlu0 0
    %1004 = vperm.xlu0 %1003, %v964
    %v1005 = vpop.permute.xlu0 %1004
    %1008 = vset.pattern.permute.xlu0 0
    %1009 = vperm.xlu0 %1008, %v965
    %v1010 = vpop.permute.xlu0 %1009
    %1013 = vset.pattern.permute.xlu0 0
    %1014 = vperm.xlu0 %1013, %v966
    %v1015 = vpop.permute.xlu0 %1014
    %1018 = vset.pattern.permute.xlu0 0
    %1019 = vperm.xlu0 %1018, %v967
    %v1020 = vpop.permute.xlu0 %1019
    %1023 = vset.pattern.permute.xlu0 0
    %1024 = vperm.xlu0 %1023, %v968
    %v1025 = vpop.permute.xlu0 %1024
    %1028 = vset.pattern.permute.xlu0 0
    %1029 = vperm.xlu0 %1028, %v969
    %v1030 = vpop.permute.xlu0 %1029
    %1033 = vset.pattern.permute.xlu0 0
    %1034 = vperm.xlu0 %1033, %v970
    %v1035 = vpop.permute.xlu0 %1034
    %1038 = vset.pattern.permute.xlu0 0
    %1039 = vperm.xlu0 %1038, %v971
    %v1040 = vpop.permute.xlu0 %1039
    %1043 = vset.pattern.permute.xlu0 0
    %1044 = vperm.xlu0 %1043, %v972
    %v1045 = vpop.permute.xlu0 %1044
    %1048 = vset.pattern.permute.xlu0 0
    %1049 = vperm.xlu0 %1048, %v973
    %v1050 = vpop.permute.xlu0 %1049
    %1053 = vset.pattern.permute.xlu0 0
    %1054 = vperm.xlu0 %1053, %v974
    %v1055 = vpop.permute.xlu0 %1054
    %v1058 = vlaneseq
    %v1059 = vshrl.u32 %v1058, 7
    %v1060 = vsub.s32 0, %v1059
    %v1061 = vrot.slane %v976, %v1060
    %v1063 = vmul.f32 %v980, %v1061
    %v1064 = vmul.f32 %v985, %v1061
    %v1065 = vmul.f32 %v990, %v1061
    %v1066 = vmul.f32 %v995, %v1061
    %v1067 = vmul.f32 %v1000, %v1061
    %v1068 = vmul.f32 %v1005, %v1061
    %v1069 = vmul.f32 %v1010, %v1061
    %v1070 = vmul.f32 %v1015, %v1061
    %v1071 = vmul.f32 %v1020, %v1061
    %v1072 = vmul.f32 %v1025, %v1061
    %v1073 = vmul.f32 %v1030, %v1061
    %v1074 = vmul.f32 %v1035, %v1061
    %v1075 = vmul.f32 %v1040, %v1061
    %v1076 = vmul.f32 %v1045, %v1061
    %v1077 = vmul.f32 %v1050, %v1061
    %v1078 = vmul.f32 %v1055, %v1061
    %v1079 = vadd.f32 %v943, %v1063
    %v1080 = vadd.f32 %v944, %v1064
    %v1081 = vadd.f32 %v945, %v1065
    %v1082 = vadd.f32 %v946, %v1066
    %v1083 = vadd.f32 %v947, %v1067
    %v1084 = vadd.f32 %v948, %v1068
    %v1085 = vadd.f32 %v949, %v1069
    %v1086 = vadd.f32 %v950, %v1070
    %v1087 = vadd.f32 %v951, %v1071
    %v1088 = vadd.f32 %v952, %v1072
    %v1089 = vadd.f32 %v953, %v1073
    %v1090 = vadd.f32 %v954, %v1074
    %v1091 = vadd.f32 %v955, %v1075
    %v1092 = vadd.f32 %v956, %v1076
    %v1093 = vadd.f32 %v957, %v1077
    %v1094 = vadd.f32 %v958, %v1078
    %v1095 = vld [vmem:[%s2 + $0x2] sm:$0xff]
    %v1096 = vld [vmem:[%s2 + $0x12] sm:$0xff]
    %v1097 = vld [vmem:[%s2 + $0x22] sm:$0xff]
    %v1098 = vld [vmem:[%s2 + $0x32] sm:$0xff]
    %v1099 = vld [vmem:[%s2 + $0x42] sm:$0xff]
    %v1100 = vld [vmem:[%s2 + $0x52] sm:$0xff]
    %v1101 = vld [vmem:[%s2 + $0x62] sm:$0xff]
    %v1102 = vld [vmem:[%s2 + $0x72] sm:$0xff]
    %v1103 = vld [vmem:[%s2 + $0xa2] sm:$0xff]
    %v1104 = vld [vmem:[%s2 + $0xb2] sm:$0xff]
    %v1105 = vld [vmem:[%s2 + $0xc2] sm:$0xff]
    %v1106 = vld [vmem:[%s2 + $0xd2] sm:$0xff]
    %v1107 = vld [vmem:[%s2 + $0xe2] sm:$0xff]
    %v1108 = vld [vmem:[%s2 + $0xf2] sm:$0xff]
    %v1109 = vld [vmem:[%s2 + $0x102] sm:$0xff]
    %v1110 = vld [vmem:[%s2 + $0x112] sm:$0xff]
    %s1111 = scalar_lea.vmem %s3, 8
    %v1112 = vld [vmem:[%s1111] sm:$0x1]
    %1114 = vset.pattern.permute.xlu0 0
    %1115 = vperm.xlu0 %1114, %v1095
    %v1116 = vpop.permute.xlu0 %1115
    %1119 = vset.pattern.permute.xlu0 0
    %1120 = vperm.xlu0 %1119, %v1096
    %v1121 = vpop.permute.xlu0 %1120
    %1124 = vset.pattern.permute.xlu0 0
    %1125 = vperm.xlu0 %1124, %v1097
    %v1126 = vpop.permute.xlu0 %1125
    %1129 = vset.pattern.permute.xlu0 0
    %1130 = vperm.xlu0 %1129, %v1098
    %v1131 = vpop.permute.xlu0 %1130
    %1134 = vset.pattern.permute.xlu0 0
    %1135 = vperm.xlu0 %1134, %v1099
    %v1136 = vpop.permute.xlu0 %1135
    %1139 = vset.pattern.permute.xlu0 0
    %1140 = vperm.xlu0 %1139, %v1100
    %v1141 = vpop.permute.xlu0 %1140
    %1144 = vset.pattern.permute.xlu0 0
    %1145 = vperm.xlu0 %1144, %v1101
    %v1146 = vpop.permute.xlu0 %1145
    %1149 = vset.pattern.permute.xlu0 0
    %1150 = vperm.xlu0 %1149, %v1102
    %v1151 = vpop.permute.xlu0 %1150
    %1154 = vset.pattern.permute.xlu0 0
    %1155 = vperm.xlu0 %1154, %v1103
    %v1156 = vpop.permute.xlu0 %1155
    %1159 = vset.pattern.permute.xlu0 0
    %1160 = vperm.xlu0 %1159, %v1104
    %v1161 = vpop.permute.xlu0 %1160
    %1164 = vset.pattern.permute.xlu0 0
    %1165 = vperm.xlu0 %1164, %v1105
    %v1166 = vpop.permute.xlu0 %1165
    %1169 = vset.pattern.permute.xlu0 0
    %1170 = vperm.xlu0 %1169, %v1106
    %v1171 = vpop.permute.xlu0 %1170
    %1174 = vset.pattern.permute.xlu0 0
    %1175 = vperm.xlu0 %1174, %v1107
    %v1176 = vpop.permute.xlu0 %1175
    %1179 = vset.pattern.permute.xlu0 0
    %1180 = vperm.xlu0 %1179, %v1108
    %v1181 = vpop.permute.xlu0 %1180
    %1184 = vset.pattern.permute.xlu0 0
    %1185 = vperm.xlu0 %1184, %v1109
    %v1186 = vpop.permute.xlu0 %1185
    %1189 = vset.pattern.permute.xlu0 0
    %1190 = vperm.xlu0 %1189, %v1110
    %v1191 = vpop.permute.xlu0 %1190
    %v1194 = vlaneseq
    %v1195 = vshrl.u32 %v1194, 7
    %v1196 = vsub.s32 0, %v1195
    %v1197 = vrot.slane %v1112, %v1196
    %v1199 = vmul.f32 %v1116, %v1197
    %v1200 = vmul.f32 %v1121, %v1197
    %v1201 = vmul.f32 %v1126, %v1197
    %v1202 = vmul.f32 %v1131, %v1197
    %v1203 = vmul.f32 %v1136, %v1197
    %v1204 = vmul.f32 %v1141, %v1197
    %v1205 = vmul.f32 %v1146, %v1197
    %v1206 = vmul.f32 %v1151, %v1197
    %v1207 = vmul.f32 %v1156, %v1197
    %v1208 = vmul.f32 %v1161, %v1197
    %v1209 = vmul.f32 %v1166, %v1197
    %v1210 = vmul.f32 %v1171, %v1197
    %v1211 = vmul.f32 %v1176, %v1197
    %v1212 = vmul.f32 %v1181, %v1197
    %v1213 = vmul.f32 %v1186, %v1197
    %v1214 = vmul.f32 %v1191, %v1197
    %v1215 = vadd.f32 %v1079, %v1199
    %v1216 = vadd.f32 %v1080, %v1200
    %v1217 = vadd.f32 %v1081, %v1201
    %v1218 = vadd.f32 %v1082, %v1202
    %v1219 = vadd.f32 %v1083, %v1203
    %v1220 = vadd.f32 %v1084, %v1204
    %v1221 = vadd.f32 %v1085, %v1205
    %v1222 = vadd.f32 %v1086, %v1206
    %v1223 = vadd.f32 %v1087, %v1207
    %v1224 = vadd.f32 %v1088, %v1208
    %v1225 = vadd.f32 %v1089, %v1209
    %v1226 = vadd.f32 %v1090, %v1210
    %v1227 = vadd.f32 %v1091, %v1211
    %v1228 = vadd.f32 %v1092, %v1212
    %v1229 = vadd.f32 %v1093, %v1213
    %v1230 = vadd.f32 %v1094, %v1214
    %s1231 = scalar_lea.vmem %s0, 16
    %v1232 = vld [vmem:[%s1231] sm:$0xff]
    %v1233 = vld [vmem:[%s1231 + $0x10] sm:$0xff]
    %v1234 = vld [vmem:[%s1231 + $0x20] sm:$0xff]
    %v1235 = vld [vmem:[%s1231 + $0x30] sm:$0xff]
    %v1236 = vld [vmem:[%s1231 + $0x40] sm:$0xff]
    %v1237 = vld [vmem:[%s1231 + $0x50] sm:$0xff]
    %v1238 = vld [vmem:[%s1231 + $0x60] sm:$0xff]
    %v1239 = vld [vmem:[%s1231 + $0x70] sm:$0xff]
    %v1240 = vld [vmem:[%s1231 + $0xa0] sm:$0xff]
    %v1241 = vld [vmem:[%s1231 + $0xb0] sm:$0xff]
    %v1242 = vld [vmem:[%s1231 + $0xc0] sm:$0xff]
    %v1243 = vld [vmem:[%s1231 + $0xd0] sm:$0xff]
    %v1244 = vld [vmem:[%s1231 + $0xe0] sm:$0xff]
    %v1245 = vld [vmem:[%s1231 + $0xf0] sm:$0xff]
    %v1246 = vld [vmem:[%s1231 + $0x100] sm:$0xff]
    %v1247 = vld [vmem:[%s1231 + $0x110] sm:$0xff]
    %s1248 = scalar_lea.vmem %s3, 9
    %v1249 = vld [vmem:[%s1248] sm:$0x1]
    %1251 = vset.pattern.permute.xlu0 0
    %1252 = vperm.xlu0 %1251, %v1232
    %v1253 = vpop.permute.xlu0 %1252
    %1256 = vset.pattern.permute.xlu0 0
    %1257 = vperm.xlu0 %1256, %v1233
    %v1258 = vpop.permute.xlu0 %1257
    %1261 = vset.pattern.permute.xlu0 0
    %1262 = vperm.xlu0 %1261, %v1234
    %v1263 = vpop.permute.xlu0 %1262
    %1266 = vset.pattern.permute.xlu0 0
    %1267 = vperm.xlu0 %1266, %v1235
    %v1268 = vpop.permute.xlu0 %1267
    %1271 = vset.pattern.permute.xlu0 0
    %1272 = vperm.xlu0 %1271, %v1236
    %v1273 = vpop.permute.xlu0 %1272
    %1276 = vset.pattern.permute.xlu0 0
    %1277 = vperm.xlu0 %1276, %v1237
    %v1278 = vpop.permute.xlu0 %1277
    %1281 = vset.pattern.permute.xlu0 0
    %1282 = vperm.xlu0 %1281, %v1238
    %v1283 = vpop.permute.xlu0 %1282
    %1286 = vset.pattern.permute.xlu0 0
    %1287 = vperm.xlu0 %1286, %v1239
    %v1288 = vpop.permute.xlu0 %1287
    %1291 = vset.pattern.permute.xlu0 0
    %1292 = vperm.xlu0 %1291, %v1240
    %v1293 = vpop.permute.xlu0 %1292
    %1296 = vset.pattern.permute.xlu0 0
    %1297 = vperm.xlu0 %1296, %v1241
    %v1298 = vpop.permute.xlu0 %1297
    %1301 = vset.pattern.permute.xlu0 0
    %1302 = vperm.xlu0 %1301, %v1242
    %v1303 = vpop.permute.xlu0 %1302
    %1306 = vset.pattern.permute.xlu0 0
    %1307 = vperm.xlu0 %1306, %v1243
    %v1308 = vpop.permute.xlu0 %1307
    %1311 = vset.pattern.permute.xlu0 0
    %1312 = vperm.xlu0 %1311, %v1244
    %v1313 = vpop.permute.xlu0 %1312
    %1316 = vset.pattern.permute.xlu0 0
    %1317 = vperm.xlu0 %1316, %v1245
    %v1318 = vpop.permute.xlu0 %1317
    %1321 = vset.pattern.permute.xlu0 0
    %1322 = vperm.xlu0 %1321, %v1246
    %v1323 = vpop.permute.xlu0 %1322
    %1326 = vset.pattern.permute.xlu0 0
    %1327 = vperm.xlu0 %1326, %v1247
    %v1328 = vpop.permute.xlu0 %1327
    %v1331 = vlaneseq
    %v1332 = vshrl.u32 %v1331, 7
    %v1333 = vsub.s32 0, %v1332
    %v1334 = vrot.slane %v1249, %v1333
    %v1336 = vmul.f32 %v1253, %v1334
    %v1337 = vmul.f32 %v1258, %v1334
    %v1338 = vmul.f32 %v1263, %v1334
    %v1339 = vmul.f32 %v1268, %v1334
    %v1340 = vmul.f32 %v1273, %v1334
    %v1341 = vmul.f32 %v1278, %v1334
    %v1342 = vmul.f32 %v1283, %v1334
    %v1343 = vmul.f32 %v1288, %v1334
    %v1344 = vmul.f32 %v1293, %v1334
    %v1345 = vmul.f32 %v1298, %v1334
    %v1346 = vmul.f32 %v1303, %v1334
    %v1347 = vmul.f32 %v1308, %v1334
    %v1348 = vmul.f32 %v1313, %v1334
    %v1349 = vmul.f32 %v1318, %v1334
    %v1350 = vmul.f32 %v1323, %v1334
    %v1351 = vmul.f32 %v1328, %v1334
    %v1352 = vadd.f32 %v1215, %v1336
    %v1353 = vadd.f32 %v1216, %v1337
    %v1354 = vadd.f32 %v1217, %v1338
    %v1355 = vadd.f32 %v1218, %v1339
    %v1356 = vadd.f32 %v1219, %v1340
    %v1357 = vadd.f32 %v1220, %v1341
    %v1358 = vadd.f32 %v1221, %v1342
    %v1359 = vadd.f32 %v1222, %v1343
    %v1360 = vadd.f32 %v1223, %v1344
    %v1361 = vadd.f32 %v1224, %v1345
    %v1362 = vadd.f32 %v1225, %v1346
    %v1363 = vadd.f32 %v1226, %v1347
    %v1364 = vadd.f32 %v1227, %v1348
    %v1365 = vadd.f32 %v1228, %v1349
    %v1366 = vadd.f32 %v1229, %v1350
    %v1367 = vadd.f32 %v1230, %v1351
    %s1368 = scalar_lea.vmem %s1, 16
    %v1369 = vld [vmem:[%s1368] sm:$0xff]
    %v1370 = vld [vmem:[%s1368 + $0x10] sm:$0xff]
    %v1371 = vld [vmem:[%s1368 + $0x20] sm:$0xff]
    %v1372 = vld [vmem:[%s1368 + $0x30] sm:$0xff]
    %v1373 = vld [vmem:[%s1368 + $0x40] sm:$0xff]
    %v1374 = vld [vmem:[%s1368 + $0x50] sm:$0xff]
    %v1375 = vld [vmem:[%s1368 + $0x60] sm:$0xff]
    %v1376 = vld [vmem:[%s1368 + $0x70] sm:$0xff]
    %v1377 = vld [vmem:[%s1368 + $0xa0] sm:$0xff]
    %v1378 = vld [vmem:[%s1368 + $0xb0] sm:$0xff]
    %v1379 = vld [vmem:[%s1368 + $0xc0] sm:$0xff]
    %v1380 = vld [vmem:[%s1368 + $0xd0] sm:$0xff]
    %v1381 = vld [vmem:[%s1368 + $0xe0] sm:$0xff]
    %v1382 = vld [vmem:[%s1368 + $0xf0] sm:$0xff]
    %v1383 = vld [vmem:[%s1368 + $0x100] sm:$0xff]
    %v1384 = vld [vmem:[%s1368 + $0x110] sm:$0xff]
    %s1385 = scalar_lea.vmem %s3, 10
    %v1386 = vld [vmem:[%s1385] sm:$0x1]
    %1388 = vset.pattern.permute.xlu0 0
    %1389 = vperm.xlu0 %1388, %v1369
    %v1390 = vpop.permute.xlu0 %1389
    %1393 = vset.pattern.permute.xlu0 0
    %1394 = vperm.xlu0 %1393, %v1370
    %v1395 = vpop.permute.xlu0 %1394
    %1398 = vset.pattern.permute.xlu0 0
    %1399 = vperm.xlu0 %1398, %v1371
    %v1400 = vpop.permute.xlu0 %1399
    %1403 = vset.pattern.permute.xlu0 0
    %1404 = vperm.xlu0 %1403, %v1372
    %v1405 = vpop.permute.xlu0 %1404
    %1408 = vset.pattern.permute.xlu0 0
    %1409 = vperm.xlu0 %1408, %v1373
    %v1410 = vpop.permute.xlu0 %1409
    %1413 = vset.pattern.permute.xlu0 0
    %1414 = vperm.xlu0 %1413, %v1374
    %v1415 = vpop.permute.xlu0 %1414
    %1418 = vset.pattern.permute.xlu0 0
    %1419 = vperm.xlu0 %1418, %v1375
    %v1420 = vpop.permute.xlu0 %1419
    %1423 = vset.pattern.permute.xlu0 0
    %1424 = vperm.xlu0 %1423, %v1376
    %v1425 = vpop.permute.xlu0 %1424
    %1428 = vset.pattern.permute.xlu0 0
    %1429 = vperm.xlu0 %1428, %v1377
    %v1430 = vpop.permute.xlu0 %1429
    %1433 = vset.pattern.permute.xlu0 0
    %1434 = vperm.xlu0 %1433, %v1378
    %v1435 = vpop.permute.xlu0 %1434
    %1438 = vset.pattern.permute.xlu0 0
    %1439 = vperm.xlu0 %1438, %v1379
    %v1440 = vpop.permute.xlu0 %1439
    %1443 = vset.pattern.permute.xlu0 0
    %1444 = vperm.xlu0 %1443, %v1380
    %v1445 = vpop.permute.xlu0 %1444
    %1448 = vset.pattern.permute.xlu0 0
    %1449 = vperm.xlu0 %1448, %v1381
    %v1450 = vpop.permute.xlu0 %1449
    %1453 = vset.pattern.permute.xlu0 0
    %1454 = vperm.xlu0 %1453, %v1382
    %v1455 = vpop.permute.xlu0 %1454
    %1458 = vset.pattern.permute.xlu0 0
    %1459 = vperm.xlu0 %1458, %v1383
    %v1460 = vpop.permute.xlu0 %1459
    %1463 = vset.pattern.permute.xlu0 0
    %1464 = vperm.xlu0 %1463, %v1384
    %v1465 = vpop.permute.xlu0 %1464
    %v1468 = vlaneseq
    %v1469 = vshrl.u32 %v1468, 7
    %v1470 = vsub.s32 0, %v1469
    %v1471 = vrot.slane %v1386, %v1470
    %v1473 = vmul.f32 %v1390, %v1471
    %v1474 = vmul.f32 %v1395, %v1471
    %v1475 = vmul.f32 %v1400, %v1471
    %v1476 = vmul.f32 %v1405, %v1471
    %v1477 = vmul.f32 %v1410, %v1471
    %v1478 = vmul.f32 %v1415, %v1471
    %v1479 = vmul.f32 %v1420, %v1471
    %v1480 = vmul.f32 %v1425, %v1471
    %v1481 = vmul.f32 %v1430, %v1471
    %v1482 = vmul.f32 %v1435, %v1471
    %v1483 = vmul.f32 %v1440, %v1471
    %v1484 = vmul.f32 %v1445, %v1471
    %v1485 = vmul.f32 %v1450, %v1471
    %v1486 = vmul.f32 %v1455, %v1471
    %v1487 = vmul.f32 %v1460, %v1471
    %v1488 = vmul.f32 %v1465, %v1471
    %v1489 = vadd.f32 %v1352, %v1473
    %v1490 = vadd.f32 %v1353, %v1474
    %v1491 = vadd.f32 %v1354, %v1475
    %v1492 = vadd.f32 %v1355, %v1476
    %v1493 = vadd.f32 %v1356, %v1477
    %v1494 = vadd.f32 %v1357, %v1478
    %v1495 = vadd.f32 %v1358, %v1479
    %v1496 = vadd.f32 %v1359, %v1480
    %v1497 = vadd.f32 %v1360, %v1481
    %v1498 = vadd.f32 %v1361, %v1482
    %v1499 = vadd.f32 %v1362, %v1483
    %v1500 = vadd.f32 %v1363, %v1484
    %v1501 = vadd.f32 %v1364, %v1485
    %v1502 = vadd.f32 %v1365, %v1486
    %v1503 = vadd.f32 %v1366, %v1487
    %v1504 = vadd.f32 %v1367, %v1488
    %s1505 = scalar_lea.vmem %s2, 16
    %v1506 = vld [vmem:[%s1505] sm:$0xff]
    %v1507 = vld [vmem:[%s1505 + $0x10] sm:$0xff]
    %v1508 = vld [vmem:[%s1505 + $0x20] sm:$0xff]
    %v1509 = vld [vmem:[%s1505 + $0x30] sm:$0xff]
    %v1510 = vld [vmem:[%s1505 + $0x40] sm:$0xff]
    %v1511 = vld [vmem:[%s1505 + $0x50] sm:$0xff]
    %v1512 = vld [vmem:[%s1505 + $0x60] sm:$0xff]
    %v1513 = vld [vmem:[%s1505 + $0x70] sm:$0xff]
    %v1514 = vld [vmem:[%s1505 + $0xa0] sm:$0xff]
    %v1515 = vld [vmem:[%s1505 + $0xb0] sm:$0xff]
    %v1516 = vld [vmem:[%s1505 + $0xc0] sm:$0xff]
    %v1517 = vld [vmem:[%s1505 + $0xd0] sm:$0xff]
    %v1518 = vld [vmem:[%s1505 + $0xe0] sm:$0xff]
    %v1519 = vld [vmem:[%s1505 + $0xf0] sm:$0xff]
    %v1520 = vld [vmem:[%s1505 + $0x100] sm:$0xff]
    %v1521 = vld [vmem:[%s1505 + $0x110] sm:$0xff]
    %s1522 = scalar_lea.vmem %s3, 11
    %v1523 = vld [vmem:[%s1522] sm:$0x1]
    %1525 = vset.pattern.permute.xlu0 0
    %1526 = vperm.xlu0 %1525, %v1506
    %v1527 = vpop.permute.xlu0 %1526
    %1530 = vset.pattern.permute.xlu0 0
    %1531 = vperm.xlu0 %1530, %v1507
    %v1532 = vpop.permute.xlu0 %1531
    %1535 = vset.pattern.permute.xlu0 0
    %1536 = vperm.xlu0 %1535, %v1508
    %v1537 = vpop.permute.xlu0 %1536
    %1540 = vset.pattern.permute.xlu0 0
    %1541 = vperm.xlu0 %1540, %v1509
    %v1542 = vpop.permute.xlu0 %1541
    %1545 = vset.pattern.permute.xlu0 0
    %1546 = vperm.xlu0 %1545, %v1510
    %v1547 = vpop.permute.xlu0 %1546
    %1550 = vset.pattern.permute.xlu0 0
    %1551 = vperm.xlu0 %1550, %v1511
    %v1552 = vpop.permute.xlu0 %1551
    %1555 = vset.pattern.permute.xlu0 0
    %1556 = vperm.xlu0 %1555, %v1512
    %v1557 = vpop.permute.xlu0 %1556
    %1560 = vset.pattern.permute.xlu0 0
    %1561 = vperm.xlu0 %1560, %v1513
    %v1562 = vpop.permute.xlu0 %1561
    %1565 = vset.pattern.permute.xlu0 0
    %1566 = vperm.xlu0 %1565, %v1514
    %v1567 = vpop.permute.xlu0 %1566
    %1570 = vset.pattern.permute.xlu0 0
    %1571 = vperm.xlu0 %1570, %v1515
    %v1572 = vpop.permute.xlu0 %1571
    %1575 = vset.pattern.permute.xlu0 0
    %1576 = vperm.xlu0 %1575, %v1516
    %v1577 = vpop.permute.xlu0 %1576
    %1580 = vset.pattern.permute.xlu0 0
    %1581 = vperm.xlu0 %1580, %v1517
    %v1582 = vpop.permute.xlu0 %1581
    %1585 = vset.pattern.permute.xlu0 0
    %1586 = vperm.xlu0 %1585, %v1518
    %v1587 = vpop.permute.xlu0 %1586
    %1590 = vset.pattern.permute.xlu0 0
    %1591 = vperm.xlu0 %1590, %v1519
    %v1592 = vpop.permute.xlu0 %1591
    %1595 = vset.pattern.permute.xlu0 0
    %1596 = vperm.xlu0 %1595, %v1520
    %v1597 = vpop.permute.xlu0 %1596
    %1600 = vset.pattern.permute.xlu0 0
    %1601 = vperm.xlu0 %1600, %v1521
    %v1602 = vpop.permute.xlu0 %1601
    %v1605 = vlaneseq
    %v1606 = vshrl.u32 %v1605, 7
    %v1607 = vsub.s32 0, %v1606
    %v1608 = vrot.slane %v1523, %v1607
    %v1610 = vmul.f32 %v1527, %v1608
    %v1611 = vmul.f32 %v1532, %v1608
    %v1612 = vmul.f32 %v1537, %v1608
    %v1613 = vmul.f32 %v1542, %v1608
    %v1614 = vmul.f32 %v1547, %v1608
    %v1615 = vmul.f32 %v1552, %v1608
    %v1616 = vmul.f32 %v1557, %v1608
    %v1617 = vmul.f32 %v1562, %v1608
    %v1618 = vmul.f32 %v1567, %v1608
    %v1619 = vmul.f32 %v1572, %v1608
    %v1620 = vmul.f32 %v1577, %v1608
    %v1621 = vmul.f32 %v1582, %v1608
    %v1622 = vmul.f32 %v1587, %v1608
    %v1623 = vmul.f32 %v1592, %v1608
    %v1624 = vmul.f32 %v1597, %v1608
    %v1625 = vmul.f32 %v1602, %v1608
    %v1626 = vadd.f32 %v1489, %v1610
    %v1627 = vadd.f32 %v1490, %v1611
    %v1628 = vadd.f32 %v1491, %v1612
    %v1629 = vadd.f32 %v1492, %v1613
    %v1630 = vadd.f32 %v1493, %v1614
    %v1631 = vadd.f32 %v1494, %v1615
    %v1632 = vadd.f32 %v1495, %v1616
    %v1633 = vadd.f32 %v1496, %v1617
    %v1634 = vadd.f32 %v1497, %v1618
    %v1635 = vadd.f32 %v1498, %v1619
    %v1636 = vadd.f32 %v1499, %v1620
    %v1637 = vadd.f32 %v1500, %v1621
    %v1638 = vadd.f32 %v1501, %v1622
    %v1639 = vadd.f32 %v1502, %v1623
    %v1640 = vadd.f32 %v1503, %v1624
    %v1641 = vadd.f32 %v1504, %v1625
    %v1642 = vld [vmem:[%s1231 + $0x1] sm:$0xff]
    %v1643 = vld [vmem:[%s1231 + $0x11] sm:$0xff]
    %v1644 = vld [vmem:[%s1231 + $0x21] sm:$0xff]
    %v1645 = vld [vmem:[%s1231 + $0x31] sm:$0xff]
    %v1646 = vld [vmem:[%s1231 + $0x41] sm:$0xff]
    %v1647 = vld [vmem:[%s1231 + $0x51] sm:$0xff]
    %v1648 = vld [vmem:[%s1231 + $0x61] sm:$0xff]
    %v1649 = vld [vmem:[%s1231 + $0x71] sm:$0xff]
    %v1650 = vld [vmem:[%s1231 + $0xa1] sm:$0xff]
    %v1651 = vld [vmem:[%s1231 + $0xb1] sm:$0xff]
    %v1652 = vld [vmem:[%s1231 + $0xc1] sm:$0xff]
    %v1653 = vld [vmem:[%s1231 + $0xd1] sm:$0xff]
    %v1654 = vld [vmem:[%s1231 + $0xe1] sm:$0xff]
    %v1655 = vld [vmem:[%s1231 + $0xf1] sm:$0xff]
    %v1656 = vld [vmem:[%s1231 + $0x101] sm:$0xff]
    %v1657 = vld [vmem:[%s1231 + $0x111] sm:$0xff]
    %s1658 = scalar_lea.vmem %s3, 12
    %v1659 = vld [vmem:[%s1658] sm:$0x1]
    %1661 = vset.pattern.permute.xlu0 0
    %1662 = vperm.xlu0 %1661, %v1642
    %v1663 = vpop.permute.xlu0 %1662
    %1666 = vset.pattern.permute.xlu0 0
    %1667 = vperm.xlu0 %1666, %v1643
    %v1668 = vpop.permute.xlu0 %1667
    %1671 = vset.pattern.permute.xlu0 0
    %1672 = vperm.xlu0 %1671, %v1644
    %v1673 = vpop.permute.xlu0 %1672
    %1676 = vset.pattern.permute.xlu0 0
    %1677 = vperm.xlu0 %1676, %v1645
    %v1678 = vpop.permute.xlu0 %1677
    %1681 = vset.pattern.permute.xlu0 0
    %1682 = vperm.xlu0 %1681, %v1646
    %v1683 = vpop.permute.xlu0 %1682
    %1686 = vset.pattern.permute.xlu0 0
    %1687 = vperm.xlu0 %1686, %v1647
    %v1688 = vpop.permute.xlu0 %1687
    %1691 = vset.pattern.permute.xlu0 0
    %1692 = vperm.xlu0 %1691, %v1648
    %v1693 = vpop.permute.xlu0 %1692
    %1696 = vset.pattern.permute.xlu0 0
    %1697 = vperm.xlu0 %1696, %v1649
    %v1698 = vpop.permute.xlu0 %1697
    %1701 = vset.pattern.permute.xlu0 0
    %1702 = vperm.xlu0 %1701, %v1650
    %v1703 = vpop.permute.xlu0 %1702
    %1706 = vset.pattern.permute.xlu0 0
    %1707 = vperm.xlu0 %1706, %v1651
    %v1708 = vpop.permute.xlu0 %1707
    %1711 = vset.pattern.permute.xlu0 0
    %1712 = vperm.xlu0 %1711, %v1652
    %v1713 = vpop.permute.xlu0 %1712
    %1716 = vset.pattern.permute.xlu0 0
    %1717 = vperm.xlu0 %1716, %v1653
    %v1718 = vpop.permute.xlu0 %1717
    %1721 = vset.pattern.permute.xlu0 0
    %1722 = vperm.xlu0 %1721, %v1654
    %v1723 = vpop.permute.xlu0 %1722
    %1726 = vset.pattern.permute.xlu0 0
    %1727 = vperm.xlu0 %1726, %v1655
    %v1728 = vpop.permute.xlu0 %1727
    %1731 = vset.pattern.permute.xlu0 0
    %1732 = vperm.xlu0 %1731, %v1656
    %v1733 = vpop.permute.xlu0 %1732
    %1736 = vset.pattern.permute.xlu0 0
    %1737 = vperm.xlu0 %1736, %v1657
    %v1738 = vpop.permute.xlu0 %1737
    %v1741 = vlaneseq
    %v1742 = vshrl.u32 %v1741, 7
    %v1743 = vsub.s32 0, %v1742
    %v1744 = vrot.slane %v1659, %v1743
    %v1746 = vmul.f32 %v1663, %v1744
    %v1747 = vmul.f32 %v1668, %v1744
    %v1748 = vmul.f32 %v1673, %v1744
    %v1749 = vmul.f32 %v1678, %v1744
    %v1750 = vmul.f32 %v1683, %v1744
    %v1751 = vmul.f32 %v1688, %v1744
    %v1752 = vmul.f32 %v1693, %v1744
    %v1753 = vmul.f32 %v1698, %v1744
    %v1754 = vmul.f32 %v1703, %v1744
    %v1755 = vmul.f32 %v1708, %v1744
    %v1756 = vmul.f32 %v1713, %v1744
    %v1757 = vmul.f32 %v1718, %v1744
    %v1758 = vmul.f32 %v1723, %v1744
    %v1759 = vmul.f32 %v1728, %v1744
    %v1760 = vmul.f32 %v1733, %v1744
    %v1761 = vmul.f32 %v1738, %v1744
    %v1762 = vadd.f32 %v1626, %v1746
    %v1763 = vadd.f32 %v1627, %v1747
    %v1764 = vadd.f32 %v1628, %v1748
    %v1765 = vadd.f32 %v1629, %v1749
    %v1766 = vadd.f32 %v1630, %v1750
    %v1767 = vadd.f32 %v1631, %v1751
    %v1768 = vadd.f32 %v1632, %v1752
    %v1769 = vadd.f32 %v1633, %v1753
    %v1770 = vadd.f32 %v1634, %v1754
    %v1771 = vadd.f32 %v1635, %v1755
    %v1772 = vadd.f32 %v1636, %v1756
    %v1773 = vadd.f32 %v1637, %v1757
    %v1774 = vadd.f32 %v1638, %v1758
    %v1775 = vadd.f32 %v1639, %v1759
    %v1776 = vadd.f32 %v1640, %v1760
    %v1777 = vadd.f32 %v1641, %v1761
    %v1778 = vld [vmem:[%s1368 + $0x1] sm:$0xff]
    %v1779 = vld [vmem:[%s1368 + $0x11] sm:$0xff]
    %v1780 = vld [vmem:[%s1368 + $0x21] sm:$0xff]
    %v1781 = vld [vmem:[%s1368 + $0x31] sm:$0xff]
    %v1782 = vld [vmem:[%s1368 + $0x41] sm:$0xff]
    %v1783 = vld [vmem:[%s1368 + $0x51] sm:$0xff]
    %v1784 = vld [vmem:[%s1368 + $0x61] sm:$0xff]
    %v1785 = vld [vmem:[%s1368 + $0x71] sm:$0xff]
    %v1786 = vld [vmem:[%s1368 + $0xa1] sm:$0xff]
    %v1787 = vld [vmem:[%s1368 + $0xb1] sm:$0xff]
    %v1788 = vld [vmem:[%s1368 + $0xc1] sm:$0xff]
    %v1789 = vld [vmem:[%s1368 + $0xd1] sm:$0xff]
    %v1790 = vld [vmem:[%s1368 + $0xe1] sm:$0xff]
    %v1791 = vld [vmem:[%s1368 + $0xf1] sm:$0xff]
    %v1792 = vld [vmem:[%s1368 + $0x101] sm:$0xff]
    %v1793 = vld [vmem:[%s1368 + $0x111] sm:$0xff]
    %s1794 = scalar_lea.vmem %s3, 13
    %v1795 = vld [vmem:[%s1794] sm:$0x1]
    %1797 = vset.pattern.permute.xlu0 0
    %1798 = vperm.xlu0 %1797, %v1778
    %v1799 = vpop.permute.xlu0 %1798
    %1802 = vset.pattern.permute.xlu0 0
    %1803 = vperm.xlu0 %1802, %v1779
    %v1804 = vpop.permute.xlu0 %1803
    %1807 = vset.pattern.permute.xlu0 0
    %1808 = vperm.xlu0 %1807, %v1780
    %v1809 = vpop.permute.xlu0 %1808
    %1812 = vset.pattern.permute.xlu0 0
    %1813 = vperm.xlu0 %1812, %v1781
    %v1814 = vpop.permute.xlu0 %1813
    %1817 = vset.pattern.permute.xlu0 0
    %1818 = vperm.xlu0 %1817, %v1782
    %v1819 = vpop.permute.xlu0 %1818
    %1822 = vset.pattern.permute.xlu0 0
    %1823 = vperm.xlu0 %1822, %v1783
    %v1824 = vpop.permute.xlu0 %1823
    %1827 = vset.pattern.permute.xlu0 0
    %1828 = vperm.xlu0 %1827, %v1784
    %v1829 = vpop.permute.xlu0 %1828
    %1832 = vset.pattern.permute.xlu0 0
    %1833 = vperm.xlu0 %1832, %v1785
    %v1834 = vpop.permute.xlu0 %1833
    %1837 = vset.pattern.permute.xlu0 0
    %1838 = vperm.xlu0 %1837, %v1786
    %v1839 = vpop.permute.xlu0 %1838
    %1842 = vset.pattern.permute.xlu0 0
    %1843 = vperm.xlu0 %1842, %v1787
    %v1844 = vpop.permute.xlu0 %1843
    %1847 = vset.pattern.permute.xlu0 0
    %1848 = vperm.xlu0 %1847, %v1788
    %v1849 = vpop.permute.xlu0 %1848
    %1852 = vset.pattern.permute.xlu0 0
    %1853 = vperm.xlu0 %1852, %v1789
    %v1854 = vpop.permute.xlu0 %1853
    %1857 = vset.pattern.permute.xlu0 0
    %1858 = vperm.xlu0 %1857, %v1790
    %v1859 = vpop.permute.xlu0 %1858
    %1862 = vset.pattern.permute.xlu0 0
    %1863 = vperm.xlu0 %1862, %v1791
    %v1864 = vpop.permute.xlu0 %1863
    %1867 = vset.pattern.permute.xlu0 0
    %1868 = vperm.xlu0 %1867, %v1792
    %v1869 = vpop.permute.xlu0 %1868
    %1872 = vset.pattern.permute.xlu0 0
    %1873 = vperm.xlu0 %1872, %v1793
    %v1874 = vpop.permute.xlu0 %1873
    %v1877 = vlaneseq
    %v1878 = vshrl.u32 %v1877, 7
    %v1879 = vsub.s32 0, %v1878
    %v1880 = vrot.slane %v1795, %v1879
    %v1882 = vmul.f32 %v1799, %v1880
    %v1883 = vmul.f32 %v1804, %v1880
    %v1884 = vmul.f32 %v1809, %v1880
    %v1885 = vmul.f32 %v1814, %v1880
    %v1886 = vmul.f32 %v1819, %v1880
    %v1887 = vmul.f32 %v1824, %v1880
    %v1888 = vmul.f32 %v1829, %v1880
    %v1889 = vmul.f32 %v1834, %v1880
    %v1890 = vmul.f32 %v1839, %v1880
    %v1891 = vmul.f32 %v1844, %v1880
    %v1892 = vmul.f32 %v1849, %v1880
    %v1893 = vmul.f32 %v1854, %v1880
    %v1894 = vmul.f32 %v1859, %v1880
    %v1895 = vmul.f32 %v1864, %v1880
    %v1896 = vmul.f32 %v1869, %v1880
    %v1897 = vmul.f32 %v1874, %v1880
    %v1898 = vadd.f32 %v1762, %v1882
    %v1899 = vadd.f32 %v1763, %v1883
    %v1900 = vadd.f32 %v1764, %v1884
    %v1901 = vadd.f32 %v1765, %v1885
    %v1902 = vadd.f32 %v1766, %v1886
    %v1903 = vadd.f32 %v1767, %v1887
    %v1904 = vadd.f32 %v1768, %v1888
    %v1905 = vadd.f32 %v1769, %v1889
    %v1906 = vadd.f32 %v1770, %v1890
    %v1907 = vadd.f32 %v1771, %v1891
    %v1908 = vadd.f32 %v1772, %v1892
    %v1909 = vadd.f32 %v1773, %v1893
    %v1910 = vadd.f32 %v1774, %v1894
    %v1911 = vadd.f32 %v1775, %v1895
    %v1912 = vadd.f32 %v1776, %v1896
    %v1913 = vadd.f32 %v1777, %v1897
    %v1914 = vld [vmem:[%s1505 + $0x1] sm:$0xff]
    %v1915 = vld [vmem:[%s1505 + $0x11] sm:$0xff]
    %v1916 = vld [vmem:[%s1505 + $0x21] sm:$0xff]
    %v1917 = vld [vmem:[%s1505 + $0x31] sm:$0xff]
    %v1918 = vld [vmem:[%s1505 + $0x41] sm:$0xff]
    %v1919 = vld [vmem:[%s1505 + $0x51] sm:$0xff]
    %v1920 = vld [vmem:[%s1505 + $0x61] sm:$0xff]
    %v1921 = vld [vmem:[%s1505 + $0x71] sm:$0xff]
    %v1922 = vld [vmem:[%s1505 + $0xa1] sm:$0xff]
    %v1923 = vld [vmem:[%s1505 + $0xb1] sm:$0xff]
    %v1924 = vld [vmem:[%s1505 + $0xc1] sm:$0xff]
    %v1925 = vld [vmem:[%s1505 + $0xd1] sm:$0xff]
    %v1926 = vld [vmem:[%s1505 + $0xe1] sm:$0xff]
    %v1927 = vld [vmem:[%s1505 + $0xf1] sm:$0xff]
    %v1928 = vld [vmem:[%s1505 + $0x101] sm:$0xff]
    %v1929 = vld [vmem:[%s1505 + $0x111] sm:$0xff]
    %s1930 = scalar_lea.vmem %s3, 14
    %v1931 = vld [vmem:[%s1930] sm:$0x1]
    %1933 = vset.pattern.permute.xlu0 0
    %1934 = vperm.xlu0 %1933, %v1914
    %v1935 = vpop.permute.xlu0 %1934
    %1938 = vset.pattern.permute.xlu0 0
    %1939 = vperm.xlu0 %1938, %v1915
    %v1940 = vpop.permute.xlu0 %1939
    %1943 = vset.pattern.permute.xlu0 0
    %1944 = vperm.xlu0 %1943, %v1916
    %v1945 = vpop.permute.xlu0 %1944
    %1948 = vset.pattern.permute.xlu0 0
    %1949 = vperm.xlu0 %1948, %v1917
    %v1950 = vpop.permute.xlu0 %1949
    %1953 = vset.pattern.permute.xlu0 0
    %1954 = vperm.xlu0 %1953, %v1918
    %v1955 = vpop.permute.xlu0 %1954
    %1958 = vset.pattern.permute.xlu0 0
    %1959 = vperm.xlu0 %1958, %v1919
    %v1960 = vpop.permute.xlu0 %1959
    %1963 = vset.pattern.permute.xlu0 0
    %1964 = vperm.xlu0 %1963, %v1920
    %v1965 = vpop.permute.xlu0 %1964
    %1968 = vset.pattern.permute.xlu0 0
    %1969 = vperm.xlu0 %1968, %v1921
    %v1970 = vpop.permute.xlu0 %1969
    %1973 = vset.pattern.permute.xlu0 0
    %1974 = vperm.xlu0 %1973, %v1922
    %v1975 = vpop.permute.xlu0 %1974
    %1978 = vset.pattern.permute.xlu0 0
    %1979 = vperm.xlu0 %1978, %v1923
    %v1980 = vpop.permute.xlu0 %1979
    %1983 = vset.pattern.permute.xlu0 0
    %1984 = vperm.xlu0 %1983, %v1924
    %v1985 = vpop.permute.xlu0 %1984
    %1988 = vset.pattern.permute.xlu0 0
    %1989 = vperm.xlu0 %1988, %v1925
    %v1990 = vpop.permute.xlu0 %1989
    %1993 = vset.pattern.permute.xlu0 0
    %1994 = vperm.xlu0 %1993, %v1926
    %v1995 = vpop.permute.xlu0 %1994
    %1998 = vset.pattern.permute.xlu0 0
    %1999 = vperm.xlu0 %1998, %v1927
    %v2000 = vpop.permute.xlu0 %1999
    %2003 = vset.pattern.permute.xlu0 0
    %2004 = vperm.xlu0 %2003, %v1928
    %v2005 = vpop.permute.xlu0 %2004
    %2008 = vset.pattern.permute.xlu0 0
    %2009 = vperm.xlu0 %2008, %v1929
    %v2010 = vpop.permute.xlu0 %2009
    %v2013 = vlaneseq
    %v2014 = vshrl.u32 %v2013, 7
    %v2015 = vsub.s32 0, %v2014
    %v2016 = vrot.slane %v1931, %v2015
    %v2018 = vmul.f32 %v1935, %v2016
    %v2019 = vmul.f32 %v1940, %v2016
    %v2020 = vmul.f32 %v1945, %v2016
    %v2021 = vmul.f32 %v1950, %v2016
    %v2022 = vmul.f32 %v1955, %v2016
    %v2023 = vmul.f32 %v1960, %v2016
    %v2024 = vmul.f32 %v1965, %v2016
    %v2025 = vmul.f32 %v1970, %v2016
    %v2026 = vmul.f32 %v1975, %v2016
    %v2027 = vmul.f32 %v1980, %v2016
    %v2028 = vmul.f32 %v1985, %v2016
    %v2029 = vmul.f32 %v1990, %v2016
    %v2030 = vmul.f32 %v1995, %v2016
    %v2031 = vmul.f32 %v2000, %v2016
    %v2032 = vmul.f32 %v2005, %v2016
    %v2033 = vmul.f32 %v2010, %v2016
    %v2034 = vadd.f32 %v1898, %v2018
    %v2035 = vadd.f32 %v1899, %v2019
    %v2036 = vadd.f32 %v1900, %v2020
    %v2037 = vadd.f32 %v1901, %v2021
    %v2038 = vadd.f32 %v1902, %v2022
    %v2039 = vadd.f32 %v1903, %v2023
    %v2040 = vadd.f32 %v1904, %v2024
    %v2041 = vadd.f32 %v1905, %v2025
    %v2042 = vadd.f32 %v1906, %v2026
    %v2043 = vadd.f32 %v1907, %v2027
    %v2044 = vadd.f32 %v1908, %v2028
    %v2045 = vadd.f32 %v1909, %v2029
    %v2046 = vadd.f32 %v1910, %v2030
    %v2047 = vadd.f32 %v1911, %v2031
    %v2048 = vadd.f32 %v1912, %v2032
    %v2049 = vadd.f32 %v1913, %v2033
    %v2050 = vld [vmem:[%s1231 + $0x2] sm:$0xff]
    %v2051 = vld [vmem:[%s1231 + $0x12] sm:$0xff]
    %v2052 = vld [vmem:[%s1231 + $0x22] sm:$0xff]
    %v2053 = vld [vmem:[%s1231 + $0x32] sm:$0xff]
    %v2054 = vld [vmem:[%s1231 + $0x42] sm:$0xff]
    %v2055 = vld [vmem:[%s1231 + $0x52] sm:$0xff]
    %v2056 = vld [vmem:[%s1231 + $0x62] sm:$0xff]
    %v2057 = vld [vmem:[%s1231 + $0x72] sm:$0xff]
    %v2058 = vld [vmem:[%s1231 + $0xa2] sm:$0xff]
    %v2059 = vld [vmem:[%s1231 + $0xb2] sm:$0xff]
    %v2060 = vld [vmem:[%s1231 + $0xc2] sm:$0xff]
    %v2061 = vld [vmem:[%s1231 + $0xd2] sm:$0xff]
    %v2062 = vld [vmem:[%s1231 + $0xe2] sm:$0xff]
    %v2063 = vld [vmem:[%s1231 + $0xf2] sm:$0xff]
    %v2064 = vld [vmem:[%s1231 + $0x102] sm:$0xff]
    %v2065 = vld [vmem:[%s1231 + $0x112] sm:$0xff]
    %s2066 = scalar_lea.vmem %s3, 15
    %v2067 = vld [vmem:[%s2066] sm:$0x1]
    %2069 = vset.pattern.permute.xlu0 0
    %2070 = vperm.xlu0 %2069, %v2050
    %v2071 = vpop.permute.xlu0 %2070
    %2074 = vset.pattern.permute.xlu0 0
    %2075 = vperm.xlu0 %2074, %v2051
    %v2076 = vpop.permute.xlu0 %2075
    %2079 = vset.pattern.permute.xlu0 0
    %2080 = vperm.xlu0 %2079, %v2052
    %v2081 = vpop.permute.xlu0 %2080
    %2084 = vset.pattern.permute.xlu0 0
    %2085 = vperm.xlu0 %2084, %v2053
    %v2086 = vpop.permute.xlu0 %2085
    %2089 = vset.pattern.permute.xlu0 0
    %2090 = vperm.xlu0 %2089, %v2054
    %v2091 = vpop.permute.xlu0 %2090
    %2094 = vset.pattern.permute.xlu0 0
    %2095 = vperm.xlu0 %2094, %v2055
    %v2096 = vpop.permute.xlu0 %2095
    %2099 = vset.pattern.permute.xlu0 0
    %2100 = vperm.xlu0 %2099, %v2056
    %v2101 = vpop.permute.xlu0 %2100
    %2104 = vset.pattern.permute.xlu0 0
    %2105 = vperm.xlu0 %2104, %v2057
    %v2106 = vpop.permute.xlu0 %2105
    %2109 = vset.pattern.permute.xlu0 0
    %2110 = vperm.xlu0 %2109, %v2058
    %v2111 = vpop.permute.xlu0 %2110
    %2114 = vset.pattern.permute.xlu0 0
    %2115 = vperm.xlu0 %2114, %v2059
    %v2116 = vpop.permute.xlu0 %2115
    %2119 = vset.pattern.permute.xlu0 0
    %2120 = vperm.xlu0 %2119, %v2060
    %v2121 = vpop.permute.xlu0 %2120
    %2124 = vset.pattern.permute.xlu0 0
    %2125 = vperm.xlu0 %2124, %v2061
    %v2126 = vpop.permute.xlu0 %2125
    %2129 = vset.pattern.permute.xlu0 0
    %2130 = vperm.xlu0 %2129, %v2062
    %v2131 = vpop.permute.xlu0 %2130
    %2134 = vset.pattern.permute.xlu0 0
    %2135 = vperm.xlu0 %2134, %v2063
    %v2136 = vpop.permute.xlu0 %2135
    %2139 = vset.pattern.permute.xlu0 0
    %2140 = vperm.xlu0 %2139, %v2064
    %v2141 = vpop.permute.xlu0 %2140
    %2144 = vset.pattern.permute.xlu0 0
    %2145 = vperm.xlu0 %2144, %v2065
    %v2146 = vpop.permute.xlu0 %2145
    %v2149 = vlaneseq
    %v2150 = vshrl.u32 %v2149, 7
    %v2151 = vsub.s32 0, %v2150
    %v2152 = vrot.slane %v2067, %v2151
    %v2154 = vmul.f32 %v2071, %v2152
    %v2155 = vmul.f32 %v2076, %v2152
    %v2156 = vmul.f32 %v2081, %v2152
    %v2157 = vmul.f32 %v2086, %v2152
    %v2158 = vmul.f32 %v2091, %v2152
    %v2159 = vmul.f32 %v2096, %v2152
    %v2160 = vmul.f32 %v2101, %v2152
    %v2161 = vmul.f32 %v2106, %v2152
    %v2162 = vmul.f32 %v2111, %v2152
    %v2163 = vmul.f32 %v2116, %v2152
    %v2164 = vmul.f32 %v2121, %v2152
    %v2165 = vmul.f32 %v2126, %v2152
    %v2166 = vmul.f32 %v2131, %v2152
    %v2167 = vmul.f32 %v2136, %v2152
    %v2168 = vmul.f32 %v2141, %v2152
    %v2169 = vmul.f32 %v2146, %v2152
    %v2170 = vadd.f32 %v2034, %v2154
    %v2171 = vadd.f32 %v2035, %v2155
    %v2172 = vadd.f32 %v2036, %v2156
    %v2173 = vadd.f32 %v2037, %v2157
    %v2174 = vadd.f32 %v2038, %v2158
    %v2175 = vadd.f32 %v2039, %v2159
    %v2176 = vadd.f32 %v2040, %v2160
    %v2177 = vadd.f32 %v2041, %v2161
    %v2178 = vadd.f32 %v2042, %v2162
    %v2179 = vadd.f32 %v2043, %v2163
    %v2180 = vadd.f32 %v2044, %v2164
    %v2181 = vadd.f32 %v2045, %v2165
    %v2182 = vadd.f32 %v2046, %v2166
    %v2183 = vadd.f32 %v2047, %v2167
    %v2184 = vadd.f32 %v2048, %v2168
    %v2185 = vadd.f32 %v2049, %v2169
    %v2186 = vld [vmem:[%s1368 + $0x2] sm:$0xff]
    %v2187 = vld [vmem:[%s1368 + $0x12] sm:$0xff]
    %v2188 = vld [vmem:[%s1368 + $0x22] sm:$0xff]
    %v2189 = vld [vmem:[%s1368 + $0x32] sm:$0xff]
    %v2190 = vld [vmem:[%s1368 + $0x42] sm:$0xff]
    %v2191 = vld [vmem:[%s1368 + $0x52] sm:$0xff]
    %v2192 = vld [vmem:[%s1368 + $0x62] sm:$0xff]
    %v2193 = vld [vmem:[%s1368 + $0x72] sm:$0xff]
    %v2194 = vld [vmem:[%s1368 + $0xa2] sm:$0xff]
    %v2195 = vld [vmem:[%s1368 + $0xb2] sm:$0xff]
    %v2196 = vld [vmem:[%s1368 + $0xc2] sm:$0xff]
    %v2197 = vld [vmem:[%s1368 + $0xd2] sm:$0xff]
    %v2198 = vld [vmem:[%s1368 + $0xe2] sm:$0xff]
    %v2199 = vld [vmem:[%s1368 + $0xf2] sm:$0xff]
    %v2200 = vld [vmem:[%s1368 + $0x102] sm:$0xff]
    %v2201 = vld [vmem:[%s1368 + $0x112] sm:$0xff]
    %s2202 = scalar_lea.vmem %s3, 16
    %v2203 = vld [vmem:[%s2202] sm:$0x1]
    %2205 = vset.pattern.permute.xlu0 0
    %2206 = vperm.xlu0 %2205, %v2186
    %v2207 = vpop.permute.xlu0 %2206
    %2210 = vset.pattern.permute.xlu0 0
    %2211 = vperm.xlu0 %2210, %v2187
    %v2212 = vpop.permute.xlu0 %2211
    %2215 = vset.pattern.permute.xlu0 0
    %2216 = vperm.xlu0 %2215, %v2188
    %v2217 = vpop.permute.xlu0 %2216
    %2220 = vset.pattern.permute.xlu0 0
    %2221 = vperm.xlu0 %2220, %v2189
    %v2222 = vpop.permute.xlu0 %2221
    %2225 = vset.pattern.permute.xlu0 0
    %2226 = vperm.xlu0 %2225, %v2190
    %v2227 = vpop.permute.xlu0 %2226
    %2230 = vset.pattern.permute.xlu0 0
    %2231 = vperm.xlu0 %2230, %v2191
    %v2232 = vpop.permute.xlu0 %2231
    %2235 = vset.pattern.permute.xlu0 0
    %2236 = vperm.xlu0 %2235, %v2192
    %v2237 = vpop.permute.xlu0 %2236
    %2240 = vset.pattern.permute.xlu0 0
    %2241 = vperm.xlu0 %2240, %v2193
    %v2242 = vpop.permute.xlu0 %2241
    %2245 = vset.pattern.permute.xlu0 0
    %2246 = vperm.xlu0 %2245, %v2194
    %v2247 = vpop.permute.xlu0 %2246
    %2250 = vset.pattern.permute.xlu0 0
    %2251 = vperm.xlu0 %2250, %v2195
    %v2252 = vpop.permute.xlu0 %2251
    %2255 = vset.pattern.permute.xlu0 0
    %2256 = vperm.xlu0 %2255, %v2196
    %v2257 = vpop.permute.xlu0 %2256
    %2260 = vset.pattern.permute.xlu0 0
    %2261 = vperm.xlu0 %2260, %v2197
    %v2262 = vpop.permute.xlu0 %2261
    %2265 = vset.pattern.permute.xlu0 0
    %2266 = vperm.xlu0 %2265, %v2198
    %v2267 = vpop.permute.xlu0 %2266
    %2270 = vset.pattern.permute.xlu0 0
    %2271 = vperm.xlu0 %2270, %v2199
    %v2272 = vpop.permute.xlu0 %2271
    %2275 = vset.pattern.permute.xlu0 0
    %2276 = vperm.xlu0 %2275, %v2200
    %v2277 = vpop.permute.xlu0 %2276
    %2280 = vset.pattern.permute.xlu0 0
    %2281 = vperm.xlu0 %2280, %v2201
    %v2282 = vpop.permute.xlu0 %2281
    %v2285 = vlaneseq
    %v2286 = vshrl.u32 %v2285, 7
    %v2287 = vsub.s32 0, %v2286
    %v2288 = vrot.slane %v2203, %v2287
    %v2290 = vmul.f32 %v2207, %v2288
    %v2291 = vmul.f32 %v2212, %v2288
    %v2292 = vmul.f32 %v2217, %v2288
    %v2293 = vmul.f32 %v2222, %v2288
    %v2294 = vmul.f32 %v2227, %v2288
    %v2295 = vmul.f32 %v2232, %v2288
    %v2296 = vmul.f32 %v2237, %v2288
    %v2297 = vmul.f32 %v2242, %v2288
    %v2298 = vmul.f32 %v2247, %v2288
    %v2299 = vmul.f32 %v2252, %v2288
    %v2300 = vmul.f32 %v2257, %v2288
    %v2301 = vmul.f32 %v2262, %v2288
    %v2302 = vmul.f32 %v2267, %v2288
    %v2303 = vmul.f32 %v2272, %v2288
    %v2304 = vmul.f32 %v2277, %v2288
    %v2305 = vmul.f32 %v2282, %v2288
    %v2306 = vadd.f32 %v2170, %v2290
    %v2307 = vadd.f32 %v2171, %v2291
    %v2308 = vadd.f32 %v2172, %v2292
    %v2309 = vadd.f32 %v2173, %v2293
    %v2310 = vadd.f32 %v2174, %v2294
    %v2311 = vadd.f32 %v2175, %v2295
    %v2312 = vadd.f32 %v2176, %v2296
    %v2313 = vadd.f32 %v2177, %v2297
    %v2314 = vadd.f32 %v2178, %v2298
    %v2315 = vadd.f32 %v2179, %v2299
    %v2316 = vadd.f32 %v2180, %v2300
    %v2317 = vadd.f32 %v2181, %v2301
    %v2318 = vadd.f32 %v2182, %v2302
    %v2319 = vadd.f32 %v2183, %v2303
    %v2320 = vadd.f32 %v2184, %v2304
    %v2321 = vadd.f32 %v2185, %v2305
    %v2322 = vld [vmem:[%s1505 + $0x2] sm:$0xff]
    %v2323 = vld [vmem:[%s1505 + $0x12] sm:$0xff]
    %v2324 = vld [vmem:[%s1505 + $0x22] sm:$0xff]
    %v2325 = vld [vmem:[%s1505 + $0x32] sm:$0xff]
    %v2326 = vld [vmem:[%s1505 + $0x42] sm:$0xff]
    %v2327 = vld [vmem:[%s1505 + $0x52] sm:$0xff]
    %v2328 = vld [vmem:[%s1505 + $0x62] sm:$0xff]
    %v2329 = vld [vmem:[%s1505 + $0x72] sm:$0xff]
    %v2330 = vld [vmem:[%s1505 + $0xa2] sm:$0xff]
    %v2331 = vld [vmem:[%s1505 + $0xb2] sm:$0xff]
    %v2332 = vld [vmem:[%s1505 + $0xc2] sm:$0xff]
    %v2333 = vld [vmem:[%s1505 + $0xd2] sm:$0xff]
    %v2334 = vld [vmem:[%s1505 + $0xe2] sm:$0xff]
    %v2335 = vld [vmem:[%s1505 + $0xf2] sm:$0xff]
    %v2336 = vld [vmem:[%s1505 + $0x102] sm:$0xff]
    %v2337 = vld [vmem:[%s1505 + $0x112] sm:$0xff]
    %s2338 = scalar_lea.vmem %s3, 17
    %v2339 = vld [vmem:[%s2338] sm:$0x1]
    %2341 = vset.pattern.permute.xlu0 0
    %2342 = vperm.xlu0 %2341, %v2322
    %v2343 = vpop.permute.xlu0 %2342
    %2346 = vset.pattern.permute.xlu0 0
    %2347 = vperm.xlu0 %2346, %v2323
    %v2348 = vpop.permute.xlu0 %2347
    %2351 = vset.pattern.permute.xlu0 0
    %2352 = vperm.xlu0 %2351, %v2324
    %v2353 = vpop.permute.xlu0 %2352
    %2356 = vset.pattern.permute.xlu0 0
    %2357 = vperm.xlu0 %2356, %v2325
    %v2358 = vpop.permute.xlu0 %2357
    %2361 = vset.pattern.permute.xlu0 0
    %2362 = vperm.xlu0 %2361, %v2326
    %v2363 = vpop.permute.xlu0 %2362
    %2366 = vset.pattern.permute.xlu0 0
    %2367 = vperm.xlu0 %2366, %v2327
    %v2368 = vpop.permute.xlu0 %2367
    %2371 = vset.pattern.permute.xlu0 0
    %2372 = vperm.xlu0 %2371, %v2328
    %v2373 = vpop.permute.xlu0 %2372
    %2376 = vset.pattern.permute.xlu0 0
    %2377 = vperm.xlu0 %2376, %v2329
    %v2378 = vpop.permute.xlu0 %2377
    %2381 = vset.pattern.permute.xlu0 0
    %2382 = vperm.xlu0 %2381, %v2330
    %v2383 = vpop.permute.xlu0 %2382
    %2386 = vset.pattern.permute.xlu0 0
    %2387 = vperm.xlu0 %2386, %v2331
    %v2388 = vpop.permute.xlu0 %2387
    %2391 = vset.pattern.permute.xlu0 0
    %2392 = vperm.xlu0 %2391, %v2332
    %v2393 = vpop.permute.xlu0 %2392
    %2396 = vset.pattern.permute.xlu0 0
    %2397 = vperm.xlu0 %2396, %v2333
    %v2398 = vpop.permute.xlu0 %2397
    %2401 = vset.pattern.permute.xlu0 0
    %2402 = vperm.xlu0 %2401, %v2334
    %v2403 = vpop.permute.xlu0 %2402
    %2406 = vset.pattern.permute.xlu0 0
    %2407 = vperm.xlu0 %2406, %v2335
    %v2408 = vpop.permute.xlu0 %2407
    %2411 = vset.pattern.permute.xlu0 0
    %2412 = vperm.xlu0 %2411, %v2336
    %v2413 = vpop.permute.xlu0 %2412
    %2416 = vset.pattern.permute.xlu0 0
    %2417 = vperm.xlu0 %2416, %v2337
    %v2418 = vpop.permute.xlu0 %2417
    %v2421 = vlaneseq
    %v2422 = vshrl.u32 %v2421, 7
    %v2423 = vsub.s32 0, %v2422
    %v2424 = vrot.slane %v2339, %v2423
    %v2426 = vmul.f32 %v2343, %v2424
    %v2427 = vmul.f32 %v2348, %v2424
    %v2428 = vmul.f32 %v2353, %v2424
    %v2429 = vmul.f32 %v2358, %v2424
    %v2430 = vmul.f32 %v2363, %v2424
    %v2431 = vmul.f32 %v2368, %v2424
    %v2432 = vmul.f32 %v2373, %v2424
    %v2433 = vmul.f32 %v2378, %v2424
    %v2434 = vmul.f32 %v2383, %v2424
    %v2435 = vmul.f32 %v2388, %v2424
    %v2436 = vmul.f32 %v2393, %v2424
    %v2437 = vmul.f32 %v2398, %v2424
    %v2438 = vmul.f32 %v2403, %v2424
    %v2439 = vmul.f32 %v2408, %v2424
    %v2440 = vmul.f32 %v2413, %v2424
    %v2441 = vmul.f32 %v2418, %v2424
    %v2442 = vadd.f32 %v2306, %v2426
    %v2443 = vadd.f32 %v2307, %v2427
    %v2444 = vadd.f32 %v2308, %v2428
    %v2445 = vadd.f32 %v2309, %v2429
    %v2446 = vadd.f32 %v2310, %v2430
    %v2447 = vadd.f32 %v2311, %v2431
    %v2448 = vadd.f32 %v2312, %v2432
    %v2449 = vadd.f32 %v2313, %v2433
    %v2450 = vadd.f32 %v2314, %v2434
    %v2451 = vadd.f32 %v2315, %v2435
    %v2452 = vadd.f32 %v2316, %v2436
    %v2453 = vadd.f32 %v2317, %v2437
    %v2454 = vadd.f32 %v2318, %v2438
    %v2455 = vadd.f32 %v2319, %v2439
    %v2456 = vadd.f32 %v2320, %v2440
    %v2457 = vadd.f32 %v2321, %v2441
    %s2458 = scalar_lea.vmem %s0, 32
    %v2459 = vld [vmem:[%s2458] sm:$0xff]
    %v2460 = vld [vmem:[%s2458 + $0x10] sm:$0xff]
    %v2461 = vld [vmem:[%s2458 + $0x20] sm:$0xff]
    %v2462 = vld [vmem:[%s2458 + $0x30] sm:$0xff]
    %v2463 = vld [vmem:[%s2458 + $0x40] sm:$0xff]
    %v2464 = vld [vmem:[%s2458 + $0x50] sm:$0xff]
    %v2465 = vld [vmem:[%s2458 + $0x60] sm:$0xff]
    %v2466 = vld [vmem:[%s2458 + $0x70] sm:$0xff]
    %v2467 = vld [vmem:[%s2458 + $0xa0] sm:$0xff]
    %v2468 = vld [vmem:[%s2458 + $0xb0] sm:$0xff]
    %v2469 = vld [vmem:[%s2458 + $0xc0] sm:$0xff]
    %v2470 = vld [vmem:[%s2458 + $0xd0] sm:$0xff]
    %v2471 = vld [vmem:[%s2458 + $0xe0] sm:$0xff]
    %v2472 = vld [vmem:[%s2458 + $0xf0] sm:$0xff]
    %v2473 = vld [vmem:[%s2458 + $0x100] sm:$0xff]
    %v2474 = vld [vmem:[%s2458 + $0x110] sm:$0xff]
    %s2475 = scalar_lea.vmem %s3, 18
    %v2476 = vld [vmem:[%s2475] sm:$0x1]
    %2478 = vset.pattern.permute.xlu0 0
    %2479 = vperm.xlu0 %2478, %v2459
    %v2480 = vpop.permute.xlu0 %2479
    %2483 = vset.pattern.permute.xlu0 0
    %2484 = vperm.xlu0 %2483, %v2460
    %v2485 = vpop.permute.xlu0 %2484
    %2488 = vset.pattern.permute.xlu0 0
    %2489 = vperm.xlu0 %2488, %v2461
    %v2490 = vpop.permute.xlu0 %2489
    %2493 = vset.pattern.permute.xlu0 0
    %2494 = vperm.xlu0 %2493, %v2462
    %v2495 = vpop.permute.xlu0 %2494
    %2498 = vset.pattern.permute.xlu0 0
    %2499 = vperm.xlu0 %2498, %v2463
    %v2500 = vpop.permute.xlu0 %2499
    %2503 = vset.pattern.permute.xlu0 0
    %2504 = vperm.xlu0 %2503, %v2464
    %v2505 = vpop.permute.xlu0 %2504
    %2508 = vset.pattern.permute.xlu0 0
    %2509 = vperm.xlu0 %2508, %v2465
    %v2510 = vpop.permute.xlu0 %2509
    %2513 = vset.pattern.permute.xlu0 0
    %2514 = vperm.xlu0 %2513, %v2466
    %v2515 = vpop.permute.xlu0 %2514
    %2518 = vset.pattern.permute.xlu0 0
    %2519 = vperm.xlu0 %2518, %v2467
    %v2520 = vpop.permute.xlu0 %2519
    %2523 = vset.pattern.permute.xlu0 0
    %2524 = vperm.xlu0 %2523, %v2468
    %v2525 = vpop.permute.xlu0 %2524
    %2528 = vset.pattern.permute.xlu0 0
    %2529 = vperm.xlu0 %2528, %v2469
    %v2530 = vpop.permute.xlu0 %2529
    %2533 = vset.pattern.permute.xlu0 0
    %2534 = vperm.xlu0 %2533, %v2470
    %v2535 = vpop.permute.xlu0 %2534
    %2538 = vset.pattern.permute.xlu0 0
    %2539 = vperm.xlu0 %2538, %v2471
    %v2540 = vpop.permute.xlu0 %2539
    %2543 = vset.pattern.permute.xlu0 0
    %2544 = vperm.xlu0 %2543, %v2472
    %v2545 = vpop.permute.xlu0 %2544
    %2548 = vset.pattern.permute.xlu0 0
    %2549 = vperm.xlu0 %2548, %v2473
    %v2550 = vpop.permute.xlu0 %2549
    %2553 = vset.pattern.permute.xlu0 0
    %2554 = vperm.xlu0 %2553, %v2474
    %v2555 = vpop.permute.xlu0 %2554
    %v2558 = vlaneseq
    %v2559 = vshrl.u32 %v2558, 7
    %v2560 = vsub.s32 0, %v2559
    %v2561 = vrot.slane %v2476, %v2560
    %v2563 = vmul.f32 %v2480, %v2561
    %v2564 = vmul.f32 %v2485, %v2561
    %v2565 = vmul.f32 %v2490, %v2561
    %v2566 = vmul.f32 %v2495, %v2561
    %v2567 = vmul.f32 %v2500, %v2561
    %v2568 = vmul.f32 %v2505, %v2561
    %v2569 = vmul.f32 %v2510, %v2561
    %v2570 = vmul.f32 %v2515, %v2561
    %v2571 = vmul.f32 %v2520, %v2561
    %v2572 = vmul.f32 %v2525, %v2561
    %v2573 = vmul.f32 %v2530, %v2561
    %v2574 = vmul.f32 %v2535, %v2561
    %v2575 = vmul.f32 %v2540, %v2561
    %v2576 = vmul.f32 %v2545, %v2561
    %v2577 = vmul.f32 %v2550, %v2561
    %v2578 = vmul.f32 %v2555, %v2561
    %v2579 = vadd.f32 %v2442, %v2563
    %v2580 = vadd.f32 %v2443, %v2564
    %v2581 = vadd.f32 %v2444, %v2565
    %v2582 = vadd.f32 %v2445, %v2566
    %v2583 = vadd.f32 %v2446, %v2567
    %v2584 = vadd.f32 %v2447, %v2568
    %v2585 = vadd.f32 %v2448, %v2569
    %v2586 = vadd.f32 %v2449, %v2570
    %v2587 = vadd.f32 %v2450, %v2571
    %v2588 = vadd.f32 %v2451, %v2572
    %v2589 = vadd.f32 %v2452, %v2573
    %v2590 = vadd.f32 %v2453, %v2574
    %v2591 = vadd.f32 %v2454, %v2575
    %v2592 = vadd.f32 %v2455, %v2576
    %v2593 = vadd.f32 %v2456, %v2577
    %v2594 = vadd.f32 %v2457, %v2578
    %s2595 = scalar_lea.vmem %s1, 32
    %v2596 = vld [vmem:[%s2595] sm:$0xff]
    %v2597 = vld [vmem:[%s2595 + $0x10] sm:$0xff]
    %v2598 = vld [vmem:[%s2595 + $0x20] sm:$0xff]
    %v2599 = vld [vmem:[%s2595 + $0x30] sm:$0xff]
    %v2600 = vld [vmem:[%s2595 + $0x40] sm:$0xff]
    %v2601 = vld [vmem:[%s2595 + $0x50] sm:$0xff]
    %v2602 = vld [vmem:[%s2595 + $0x60] sm:$0xff]
    %v2603 = vld [vmem:[%s2595 + $0x70] sm:$0xff]
    %v2604 = vld [vmem:[%s2595 + $0xa0] sm:$0xff]
    %v2605 = vld [vmem:[%s2595 + $0xb0] sm:$0xff]
    %v2606 = vld [vmem:[%s2595 + $0xc0] sm:$0xff]
    %v2607 = vld [vmem:[%s2595 + $0xd0] sm:$0xff]
    %v2608 = vld [vmem:[%s2595 + $0xe0] sm:$0xff]
    %v2609 = vld [vmem:[%s2595 + $0xf0] sm:$0xff]
    %v2610 = vld [vmem:[%s2595 + $0x100] sm:$0xff]
    %v2611 = vld [vmem:[%s2595 + $0x110] sm:$0xff]
    %s2612 = scalar_lea.vmem %s3, 19
    %v2613 = vld [vmem:[%s2612] sm:$0x1]
    %2615 = vset.pattern.permute.xlu0 0
    %2616 = vperm.xlu0 %2615, %v2596
    %v2617 = vpop.permute.xlu0 %2616
    %2620 = vset.pattern.permute.xlu0 0
    %2621 = vperm.xlu0 %2620, %v2597
    %v2622 = vpop.permute.xlu0 %2621
    %2625 = vset.pattern.permute.xlu0 0
    %2626 = vperm.xlu0 %2625, %v2598
    %v2627 = vpop.permute.xlu0 %2626
    %2630 = vset.pattern.permute.xlu0 0
    %2631 = vperm.xlu0 %2630, %v2599
    %v2632 = vpop.permute.xlu0 %2631
    %2635 = vset.pattern.permute.xlu0 0
    %2636 = vperm.xlu0 %2635, %v2600
    %v2637 = vpop.permute.xlu0 %2636
    %2640 = vset.pattern.permute.xlu0 0
    %2641 = vperm.xlu0 %2640, %v2601
    %v2642 = vpop.permute.xlu0 %2641
    %2645 = vset.pattern.permute.xlu0 0
    %2646 = vperm.xlu0 %2645, %v2602
    %v2647 = vpop.permute.xlu0 %2646
    %2650 = vset.pattern.permute.xlu0 0
    %2651 = vperm.xlu0 %2650, %v2603
    %v2652 = vpop.permute.xlu0 %2651
    %2655 = vset.pattern.permute.xlu0 0
    %2656 = vperm.xlu0 %2655, %v2604
    %v2657 = vpop.permute.xlu0 %2656
    %2660 = vset.pattern.permute.xlu0 0
    %2661 = vperm.xlu0 %2660, %v2605
    %v2662 = vpop.permute.xlu0 %2661
    %2665 = vset.pattern.permute.xlu0 0
    %2666 = vperm.xlu0 %2665, %v2606
    %v2667 = vpop.permute.xlu0 %2666
    %2670 = vset.pattern.permute.xlu0 0
    %2671 = vperm.xlu0 %2670, %v2607
    %v2672 = vpop.permute.xlu0 %2671
    %2675 = vset.pattern.permute.xlu0 0
    %2676 = vperm.xlu0 %2675, %v2608
    %v2677 = vpop.permute.xlu0 %2676
    %2680 = vset.pattern.permute.xlu0 0
    %2681 = vperm.xlu0 %2680, %v2609
    %v2682 = vpop.permute.xlu0 %2681
    %2685 = vset.pattern.permute.xlu0 0
    %2686 = vperm.xlu0 %2685, %v2610
    %v2687 = vpop.permute.xlu0 %2686
    %2690 = vset.pattern.permute.xlu0 0
    %2691 = vperm.xlu0 %2690, %v2611
    %v2692 = vpop.permute.xlu0 %2691
    %v2695 = vlaneseq
    %v2696 = vshrl.u32 %v2695, 7
    %v2697 = vsub.s32 0, %v2696
    %v2698 = vrot.slane %v2613, %v2697
    %v2700 = vmul.f32 %v2617, %v2698
    %v2701 = vmul.f32 %v2622, %v2698
    %v2702 = vmul.f32 %v2627, %v2698
    %v2703 = vmul.f32 %v2632, %v2698
    %v2704 = vmul.f32 %v2637, %v2698
    %v2705 = vmul.f32 %v2642, %v2698
    %v2706 = vmul.f32 %v2647, %v2698
    %v2707 = vmul.f32 %v2652, %v2698
    %v2708 = vmul.f32 %v2657, %v2698
    %v2709 = vmul.f32 %v2662, %v2698
    %v2710 = vmul.f32 %v2667, %v2698
    %v2711 = vmul.f32 %v2672, %v2698
    %v2712 = vmul.f32 %v2677, %v2698
    %v2713 = vmul.f32 %v2682, %v2698
    %v2714 = vmul.f32 %v2687, %v2698
    %v2715 = vmul.f32 %v2692, %v2698
    %v2716 = vadd.f32 %v2579, %v2700
    %v2717 = vadd.f32 %v2580, %v2701
    %v2718 = vadd.f32 %v2581, %v2702
    %v2719 = vadd.f32 %v2582, %v2703
    %v2720 = vadd.f32 %v2583, %v2704
    %v2721 = vadd.f32 %v2584, %v2705
    %v2722 = vadd.f32 %v2585, %v2706
    %v2723 = vadd.f32 %v2586, %v2707
    %v2724 = vadd.f32 %v2587, %v2708
    %v2725 = vadd.f32 %v2588, %v2709
    %v2726 = vadd.f32 %v2589, %v2710
    %v2727 = vadd.f32 %v2590, %v2711
    %v2728 = vadd.f32 %v2591, %v2712
    %v2729 = vadd.f32 %v2592, %v2713
    %v2730 = vadd.f32 %v2593, %v2714
    %v2731 = vadd.f32 %v2594, %v2715
    %s2732 = scalar_lea.vmem %s2, 32
    %v2733 = vld [vmem:[%s2732] sm:$0xff]
    %v2734 = vld [vmem:[%s2732 + $0x10] sm:$0xff]
    %v2735 = vld [vmem:[%s2732 + $0x20] sm:$0xff]
    %v2736 = vld [vmem:[%s2732 + $0x30] sm:$0xff]
    %v2737 = vld [vmem:[%s2732 + $0x40] sm:$0xff]
    %v2738 = vld [vmem:[%s2732 + $0x50] sm:$0xff]
    %v2739 = vld [vmem:[%s2732 + $0x60] sm:$0xff]
    %v2740 = vld [vmem:[%s2732 + $0x70] sm:$0xff]
    %v2741 = vld [vmem:[%s2732 + $0xa0] sm:$0xff]
    %v2742 = vld [vmem:[%s2732 + $0xb0] sm:$0xff]
    %v2743 = vld [vmem:[%s2732 + $0xc0] sm:$0xff]
    %v2744 = vld [vmem:[%s2732 + $0xd0] sm:$0xff]
    %v2745 = vld [vmem:[%s2732 + $0xe0] sm:$0xff]
    %v2746 = vld [vmem:[%s2732 + $0xf0] sm:$0xff]
    %v2747 = vld [vmem:[%s2732 + $0x100] sm:$0xff]
    %v2748 = vld [vmem:[%s2732 + $0x110] sm:$0xff]
    %s2749 = scalar_lea.vmem %s3, 20
    %v2750 = vld [vmem:[%s2749] sm:$0x1]
    %2752 = vset.pattern.permute.xlu0 0
    %2753 = vperm.xlu0 %2752, %v2733
    %v2754 = vpop.permute.xlu0 %2753
    %2757 = vset.pattern.permute.xlu0 0
    %2758 = vperm.xlu0 %2757, %v2734
    %v2759 = vpop.permute.xlu0 %2758
    %2762 = vset.pattern.permute.xlu0 0
    %2763 = vperm.xlu0 %2762, %v2735
    %v2764 = vpop.permute.xlu0 %2763
    %2767 = vset.pattern.permute.xlu0 0
    %2768 = vperm.xlu0 %2767, %v2736
    %v2769 = vpop.permute.xlu0 %2768
    %2772 = vset.pattern.permute.xlu0 0
    %2773 = vperm.xlu0 %2772, %v2737
    %v2774 = vpop.permute.xlu0 %2773
    %2777 = vset.pattern.permute.xlu0 0
    %2778 = vperm.xlu0 %2777, %v2738
    %v2779 = vpop.permute.xlu0 %2778
    %2782 = vset.pattern.permute.xlu0 0
    %2783 = vperm.xlu0 %2782, %v2739
    %v2784 = vpop.permute.xlu0 %2783
    %2787 = vset.pattern.permute.xlu0 0
    %2788 = vperm.xlu0 %2787, %v2740
    %v2789 = vpop.permute.xlu0 %2788
    %2792 = vset.pattern.permute.xlu0 0
    %2793 = vperm.xlu0 %2792, %v2741
    %v2794 = vpop.permute.xlu0 %2793
    %2797 = vset.pattern.permute.xlu0 0
    %2798 = vperm.xlu0 %2797, %v2742
    %v2799 = vpop.permute.xlu0 %2798
    %2802 = vset.pattern.permute.xlu0 0
    %2803 = vperm.xlu0 %2802, %v2743
    %v2804 = vpop.permute.xlu0 %2803
    %2807 = vset.pattern.permute.xlu0 0
    %2808 = vperm.xlu0 %2807, %v2744
    %v2809 = vpop.permute.xlu0 %2808
    %2812 = vset.pattern.permute.xlu0 0
    %2813 = vperm.xlu0 %2812, %v2745
    %v2814 = vpop.permute.xlu0 %2813
    %2817 = vset.pattern.permute.xlu0 0
    %2818 = vperm.xlu0 %2817, %v2746
    %v2819 = vpop.permute.xlu0 %2818
    %2822 = vset.pattern.permute.xlu0 0
    %2823 = vperm.xlu0 %2822, %v2747
    %v2824 = vpop.permute.xlu0 %2823
    %2827 = vset.pattern.permute.xlu0 0
    %2828 = vperm.xlu0 %2827, %v2748
    %v2829 = vpop.permute.xlu0 %2828
    %v2832 = vlaneseq
    %v2833 = vshrl.u32 %v2832, 7
    %v2834 = vsub.s32 0, %v2833
    %v2835 = vrot.slane %v2750, %v2834
    %v2837 = vmul.f32 %v2754, %v2835
    %v2838 = vmul.f32 %v2759, %v2835
    %v2839 = vmul.f32 %v2764, %v2835
    %v2840 = vmul.f32 %v2769, %v2835
    %v2841 = vmul.f32 %v2774, %v2835
    %v2842 = vmul.f32 %v2779, %v2835
    %v2843 = vmul.f32 %v2784, %v2835
    %v2844 = vmul.f32 %v2789, %v2835
    %v2845 = vmul.f32 %v2794, %v2835
    %v2846 = vmul.f32 %v2799, %v2835
    %v2847 = vmul.f32 %v2804, %v2835
    %v2848 = vmul.f32 %v2809, %v2835
    %v2849 = vmul.f32 %v2814, %v2835
    %v2850 = vmul.f32 %v2819, %v2835
    %v2851 = vmul.f32 %v2824, %v2835
    %v2852 = vmul.f32 %v2829, %v2835
    %v2853 = vadd.f32 %v2716, %v2837
    %v2854 = vadd.f32 %v2717, %v2838
    %v2855 = vadd.f32 %v2718, %v2839
    %v2856 = vadd.f32 %v2719, %v2840
    %v2857 = vadd.f32 %v2720, %v2841
    %v2858 = vadd.f32 %v2721, %v2842
    %v2859 = vadd.f32 %v2722, %v2843
    %v2860 = vadd.f32 %v2723, %v2844
    %v2861 = vadd.f32 %v2724, %v2845
    %v2862 = vadd.f32 %v2725, %v2846
    %v2863 = vadd.f32 %v2726, %v2847
    %v2864 = vadd.f32 %v2727, %v2848
    %v2865 = vadd.f32 %v2728, %v2849
    %v2866 = vadd.f32 %v2729, %v2850
    %v2867 = vadd.f32 %v2730, %v2851
    %v2868 = vadd.f32 %v2731, %v2852
    %v2869 = vld [vmem:[%s2458 + $0x1] sm:$0xff]
    %v2870 = vld [vmem:[%s2458 + $0x11] sm:$0xff]
    %v2871 = vld [vmem:[%s2458 + $0x21] sm:$0xff]
    %v2872 = vld [vmem:[%s2458 + $0x31] sm:$0xff]
    %v2873 = vld [vmem:[%s2458 + $0x41] sm:$0xff]
    %v2874 = vld [vmem:[%s2458 + $0x51] sm:$0xff]
    %v2875 = vld [vmem:[%s2458 + $0x61] sm:$0xff]
    %v2876 = vld [vmem:[%s2458 + $0x71] sm:$0xff]
    %v2877 = vld [vmem:[%s2458 + $0xa1] sm:$0xff]
    %v2878 = vld [vmem:[%s2458 + $0xb1] sm:$0xff]
    %v2879 = vld [vmem:[%s2458 + $0xc1] sm:$0xff]
    %v2880 = vld [vmem:[%s2458 + $0xd1] sm:$0xff]
    %v2881 = vld [vmem:[%s2458 + $0xe1] sm:$0xff]
    %v2882 = vld [vmem:[%s2458 + $0xf1] sm:$0xff]
    %v2883 = vld [vmem:[%s2458 + $0x101] sm:$0xff]
    %v2884 = vld [vmem:[%s2458 + $0x111] sm:$0xff]
    %s2885 = scalar_lea.vmem %s3, 21
    %v2886 = vld [vmem:[%s2885] sm:$0x1]
    %2888 = vset.pattern.permute.xlu0 0
    %2889 = vperm.xlu0 %2888, %v2869
    %v2890 = vpop.permute.xlu0 %2889
    %2893 = vset.pattern.permute.xlu0 0
    %2894 = vperm.xlu0 %2893, %v2870
    %v2895 = vpop.permute.xlu0 %2894
    %2898 = vset.pattern.permute.xlu0 0
    %2899 = vperm.xlu0 %2898, %v2871
    %v2900 = vpop.permute.xlu0 %2899
    %2903 = vset.pattern.permute.xlu0 0
    %2904 = vperm.xlu0 %2903, %v2872
    %v2905 = vpop.permute.xlu0 %2904
    %2908 = vset.pattern.permute.xlu0 0
    %2909 = vperm.xlu0 %2908, %v2873
    %v2910 = vpop.permute.xlu0 %2909
    %2913 = vset.pattern.permute.xlu0 0
    %2914 = vperm.xlu0 %2913, %v2874
    %v2915 = vpop.permute.xlu0 %2914
    %2918 = vset.pattern.permute.xlu0 0
    %2919 = vperm.xlu0 %2918, %v2875
    %v2920 = vpop.permute.xlu0 %2919
    %2923 = vset.pattern.permute.xlu0 0
    %2924 = vperm.xlu0 %2923, %v2876
    %v2925 = vpop.permute.xlu0 %2924
    %2928 = vset.pattern.permute.xlu0 0
    %2929 = vperm.xlu0 %2928, %v2877
    %v2930 = vpop.permute.xlu0 %2929
    %2933 = vset.pattern.permute.xlu0 0
    %2934 = vperm.xlu0 %2933, %v2878
    %v2935 = vpop.permute.xlu0 %2934
    %2938 = vset.pattern.permute.xlu0 0
    %2939 = vperm.xlu0 %2938, %v2879
    %v2940 = vpop.permute.xlu0 %2939
    %2943 = vset.pattern.permute.xlu0 0
    %2944 = vperm.xlu0 %2943, %v2880
    %v2945 = vpop.permute.xlu0 %2944
    %2948 = vset.pattern.permute.xlu0 0
    %2949 = vperm.xlu0 %2948, %v2881
    %v2950 = vpop.permute.xlu0 %2949
    %2953 = vset.pattern.permute.xlu0 0
    %2954 = vperm.xlu0 %2953, %v2882
    %v2955 = vpop.permute.xlu0 %2954
    %2958 = vset.pattern.permute.xlu0 0
    %2959 = vperm.xlu0 %2958, %v2883
    %v2960 = vpop.permute.xlu0 %2959
    %2963 = vset.pattern.permute.xlu0 0
    %2964 = vperm.xlu0 %2963, %v2884
    %v2965 = vpop.permute.xlu0 %2964
    %v2968 = vlaneseq
    %v2969 = vshrl.u32 %v2968, 7
    %v2970 = vsub.s32 0, %v2969
    %v2971 = vrot.slane %v2886, %v2970
    %v2973 = vmul.f32 %v2890, %v2971
    %v2974 = vmul.f32 %v2895, %v2971
    %v2975 = vmul.f32 %v2900, %v2971
    %v2976 = vmul.f32 %v2905, %v2971
    %v2977 = vmul.f32 %v2910, %v2971
    %v2978 = vmul.f32 %v2915, %v2971
    %v2979 = vmul.f32 %v2920, %v2971
    %v2980 = vmul.f32 %v2925, %v2971
    %v2981 = vmul.f32 %v2930, %v2971
    %v2982 = vmul.f32 %v2935, %v2971
    %v2983 = vmul.f32 %v2940, %v2971
    %v2984 = vmul.f32 %v2945, %v2971
    %v2985 = vmul.f32 %v2950, %v2971
    %v2986 = vmul.f32 %v2955, %v2971
    %v2987 = vmul.f32 %v2960, %v2971
    %v2988 = vmul.f32 %v2965, %v2971
    %v2989 = vadd.f32 %v2853, %v2973
    %v2990 = vadd.f32 %v2854, %v2974
    %v2991 = vadd.f32 %v2855, %v2975
    %v2992 = vadd.f32 %v2856, %v2976
    %v2993 = vadd.f32 %v2857, %v2977
    %v2994 = vadd.f32 %v2858, %v2978
    %v2995 = vadd.f32 %v2859, %v2979
    %v2996 = vadd.f32 %v2860, %v2980
    %v2997 = vadd.f32 %v2861, %v2981
    %v2998 = vadd.f32 %v2862, %v2982
    %v2999 = vadd.f32 %v2863, %v2983
    %v3000 = vadd.f32 %v2864, %v2984
    %v3001 = vadd.f32 %v2865, %v2985
    %v3002 = vadd.f32 %v2866, %v2986
    %v3003 = vadd.f32 %v2867, %v2987
    %v3004 = vadd.f32 %v2868, %v2988
    %v3005 = vld [vmem:[%s2595 + $0x1] sm:$0xff]
    %v3006 = vld [vmem:[%s2595 + $0x11] sm:$0xff]
    %v3007 = vld [vmem:[%s2595 + $0x21] sm:$0xff]
    %v3008 = vld [vmem:[%s2595 + $0x31] sm:$0xff]
    %v3009 = vld [vmem:[%s2595 + $0x41] sm:$0xff]
    %v3010 = vld [vmem:[%s2595 + $0x51] sm:$0xff]
    %v3011 = vld [vmem:[%s2595 + $0x61] sm:$0xff]
    %v3012 = vld [vmem:[%s2595 + $0x71] sm:$0xff]
    %v3013 = vld [vmem:[%s2595 + $0xa1] sm:$0xff]
    %v3014 = vld [vmem:[%s2595 + $0xb1] sm:$0xff]
    %v3015 = vld [vmem:[%s2595 + $0xc1] sm:$0xff]
    %v3016 = vld [vmem:[%s2595 + $0xd1] sm:$0xff]
    %v3017 = vld [vmem:[%s2595 + $0xe1] sm:$0xff]
    %v3018 = vld [vmem:[%s2595 + $0xf1] sm:$0xff]
    %v3019 = vld [vmem:[%s2595 + $0x101] sm:$0xff]
    %v3020 = vld [vmem:[%s2595 + $0x111] sm:$0xff]
    %s3021 = scalar_lea.vmem %s3, 22
    %v3022 = vld [vmem:[%s3021] sm:$0x1]
    %3024 = vset.pattern.permute.xlu0 0
    %3025 = vperm.xlu0 %3024, %v3005
    %v3026 = vpop.permute.xlu0 %3025
    %3029 = vset.pattern.permute.xlu0 0
    %3030 = vperm.xlu0 %3029, %v3006
    %v3031 = vpop.permute.xlu0 %3030
    %3034 = vset.pattern.permute.xlu0 0
    %3035 = vperm.xlu0 %3034, %v3007
    %v3036 = vpop.permute.xlu0 %3035
    %3039 = vset.pattern.permute.xlu0 0
    %3040 = vperm.xlu0 %3039, %v3008
    %v3041 = vpop.permute.xlu0 %3040
    %3044 = vset.pattern.permute.xlu0 0
    %3045 = vperm.xlu0 %3044, %v3009
    %v3046 = vpop.permute.xlu0 %3045
    %3049 = vset.pattern.permute.xlu0 0
    %3050 = vperm.xlu0 %3049, %v3010
    %v3051 = vpop.permute.xlu0 %3050
    %3054 = vset.pattern.permute.xlu0 0
    %3055 = vperm.xlu0 %3054, %v3011
    %v3056 = vpop.permute.xlu0 %3055
    %3059 = vset.pattern.permute.xlu0 0
    %3060 = vperm.xlu0 %3059, %v3012
    %v3061 = vpop.permute.xlu0 %3060
    %3064 = vset.pattern.permute.xlu0 0
    %3065 = vperm.xlu0 %3064, %v3013
    %v3066 = vpop.permute.xlu0 %3065
    %3069 = vset.pattern.permute.xlu0 0
    %3070 = vperm.xlu0 %3069, %v3014
    %v3071 = vpop.permute.xlu0 %3070
    %3074 = vset.pattern.permute.xlu0 0
    %3075 = vperm.xlu0 %3074, %v3015
    %v3076 = vpop.permute.xlu0 %3075
    %3079 = vset.pattern.permute.xlu0 0
    %3080 = vperm.xlu0 %3079, %v3016
    %v3081 = vpop.permute.xlu0 %3080
    %3084 = vset.pattern.permute.xlu0 0
    %3085 = vperm.xlu0 %3084, %v3017
    %v3086 = vpop.permute.xlu0 %3085
    %3089 = vset.pattern.permute.xlu0 0
    %3090 = vperm.xlu0 %3089, %v3018
    %v3091 = vpop.permute.xlu0 %3090
    %3094 = vset.pattern.permute.xlu0 0
    %3095 = vperm.xlu0 %3094, %v3019
    %v3096 = vpop.permute.xlu0 %3095
    %3099 = vset.pattern.permute.xlu0 0
    %3100 = vperm.xlu0 %3099, %v3020
    %v3101 = vpop.permute.xlu0 %3100
    %v3104 = vlaneseq
    %v3105 = vshrl.u32 %v3104, 7
    %v3106 = vsub.s32 0, %v3105
    %v3107 = vrot.slane %v3022, %v3106
    %v3109 = vmul.f32 %v3026, %v3107
    %v3110 = vmul.f32 %v3031, %v3107
    %v3111 = vmul.f32 %v3036, %v3107
    %v3112 = vmul.f32 %v3041, %v3107
    %v3113 = vmul.f32 %v3046, %v3107
    %v3114 = vmul.f32 %v3051, %v3107
    %v3115 = vmul.f32 %v3056, %v3107
    %v3116 = vmul.f32 %v3061, %v3107
    %v3117 = vmul.f32 %v3066, %v3107
    %v3118 = vmul.f32 %v3071, %v3107
    %v3119 = vmul.f32 %v3076, %v3107
    %v3120 = vmul.f32 %v3081, %v3107
    %v3121 = vmul.f32 %v3086, %v3107
    %v3122 = vmul.f32 %v3091, %v3107
    %v3123 = vmul.f32 %v3096, %v3107
    %v3124 = vmul.f32 %v3101, %v3107
    %v3125 = vadd.f32 %v2989, %v3109
    %v3126 = vadd.f32 %v2990, %v3110
    %v3127 = vadd.f32 %v2991, %v3111
    %v3128 = vadd.f32 %v2992, %v3112
    %v3129 = vadd.f32 %v2993, %v3113
    %v3130 = vadd.f32 %v2994, %v3114
    %v3131 = vadd.f32 %v2995, %v3115
    %v3132 = vadd.f32 %v2996, %v3116
    %v3133 = vadd.f32 %v2997, %v3117
    %v3134 = vadd.f32 %v2998, %v3118
    %v3135 = vadd.f32 %v2999, %v3119
    %v3136 = vadd.f32 %v3000, %v3120
    %v3137 = vadd.f32 %v3001, %v3121
    %v3138 = vadd.f32 %v3002, %v3122
    %v3139 = vadd.f32 %v3003, %v3123
    %v3140 = vadd.f32 %v3004, %v3124
    %v3141 = vld [vmem:[%s2732 + $0x1] sm:$0xff]
    %v3142 = vld [vmem:[%s2732 + $0x11] sm:$0xff]
    %v3143 = vld [vmem:[%s2732 + $0x21] sm:$0xff]
    %v3144 = vld [vmem:[%s2732 + $0x31] sm:$0xff]
    %v3145 = vld [vmem:[%s2732 + $0x41] sm:$0xff]
    %v3146 = vld [vmem:[%s2732 + $0x51] sm:$0xff]
    %v3147 = vld [vmem:[%s2732 + $0x61] sm:$0xff]
    %v3148 = vld [vmem:[%s2732 + $0x71] sm:$0xff]
    %v3149 = vld [vmem:[%s2732 + $0xa1] sm:$0xff]
    %v3150 = vld [vmem:[%s2732 + $0xb1] sm:$0xff]
    %v3151 = vld [vmem:[%s2732 + $0xc1] sm:$0xff]
    %v3152 = vld [vmem:[%s2732 + $0xd1] sm:$0xff]
    %v3153 = vld [vmem:[%s2732 + $0xe1] sm:$0xff]
    %v3154 = vld [vmem:[%s2732 + $0xf1] sm:$0xff]
    %v3155 = vld [vmem:[%s2732 + $0x101] sm:$0xff]
    %v3156 = vld [vmem:[%s2732 + $0x111] sm:$0xff]
    %s3157 = scalar_lea.vmem %s3, 23
    %v3158 = vld [vmem:[%s3157] sm:$0x1]
    %3160 = vset.pattern.permute.xlu0 0
    %3161 = vperm.xlu0 %3160, %v3141
    %v3162 = vpop.permute.xlu0 %3161
    %3165 = vset.pattern.permute.xlu0 0
    %3166 = vperm.xlu0 %3165, %v3142
    %v3167 = vpop.permute.xlu0 %3166
    %3170 = vset.pattern.permute.xlu0 0
    %3171 = vperm.xlu0 %3170, %v3143
    %v3172 = vpop.permute.xlu0 %3171
    %3175 = vset.pattern.permute.xlu0 0
    %3176 = vperm.xlu0 %3175, %v3144
    %v3177 = vpop.permute.xlu0 %3176
    %3180 = vset.pattern.permute.xlu0 0
    %3181 = vperm.xlu0 %3180, %v3145
    %v3182 = vpop.permute.xlu0 %3181
    %3185 = vset.pattern.permute.xlu0 0
    %3186 = vperm.xlu0 %3185, %v3146
    %v3187 = vpop.permute.xlu0 %3186
    %3190 = vset.pattern.permute.xlu0 0
    %3191 = vperm.xlu0 %3190, %v3147
    %v3192 = vpop.permute.xlu0 %3191
    %3195 = vset.pattern.permute.xlu0 0
    %3196 = vperm.xlu0 %3195, %v3148
    %v3197 = vpop.permute.xlu0 %3196
    %3200 = vset.pattern.permute.xlu0 0
    %3201 = vperm.xlu0 %3200, %v3149
    %v3202 = vpop.permute.xlu0 %3201
    %3205 = vset.pattern.permute.xlu0 0
    %3206 = vperm.xlu0 %3205, %v3150
    %v3207 = vpop.permute.xlu0 %3206
    %3210 = vset.pattern.permute.xlu0 0
    %3211 = vperm.xlu0 %3210, %v3151
    %v3212 = vpop.permute.xlu0 %3211
    %3215 = vset.pattern.permute.xlu0 0
    %3216 = vperm.xlu0 %3215, %v3152
    %v3217 = vpop.permute.xlu0 %3216
    %3220 = vset.pattern.permute.xlu0 0
    %3221 = vperm.xlu0 %3220, %v3153
    %v3222 = vpop.permute.xlu0 %3221
    %3225 = vset.pattern.permute.xlu0 0
    %3226 = vperm.xlu0 %3225, %v3154
    %v3227 = vpop.permute.xlu0 %3226
    %3230 = vset.pattern.permute.xlu0 0
    %3231 = vperm.xlu0 %3230, %v3155
    %v3232 = vpop.permute.xlu0 %3231
    %3235 = vset.pattern.permute.xlu0 0
    %3236 = vperm.xlu0 %3235, %v3156
    %v3237 = vpop.permute.xlu0 %3236
    %v3240 = vlaneseq
    %v3241 = vshrl.u32 %v3240, 7
    %v3242 = vsub.s32 0, %v3241
    %v3243 = vrot.slane %v3158, %v3242
    %v3245 = vmul.f32 %v3162, %v3243
    %v3246 = vmul.f32 %v3167, %v3243
    %v3247 = vmul.f32 %v3172, %v3243
    %v3248 = vmul.f32 %v3177, %v3243
    %v3249 = vmul.f32 %v3182, %v3243
    %v3250 = vmul.f32 %v3187, %v3243
    %v3251 = vmul.f32 %v3192, %v3243
    %v3252 = vmul.f32 %v3197, %v3243
    %v3253 = vmul.f32 %v3202, %v3243
    %v3254 = vmul.f32 %v3207, %v3243
    %v3255 = vmul.f32 %v3212, %v3243
    %v3256 = vmul.f32 %v3217, %v3243
    %v3257 = vmul.f32 %v3222, %v3243
    %v3258 = vmul.f32 %v3227, %v3243
    %v3259 = vmul.f32 %v3232, %v3243
    %v3260 = vmul.f32 %v3237, %v3243
    %v3261 = vadd.f32 %v3125, %v3245
    %v3262 = vadd.f32 %v3126, %v3246
    %v3263 = vadd.f32 %v3127, %v3247
    %v3264 = vadd.f32 %v3128, %v3248
    %v3265 = vadd.f32 %v3129, %v3249
    %v3266 = vadd.f32 %v3130, %v3250
    %v3267 = vadd.f32 %v3131, %v3251
    %v3268 = vadd.f32 %v3132, %v3252
    %v3269 = vadd.f32 %v3133, %v3253
    %v3270 = vadd.f32 %v3134, %v3254
    %v3271 = vadd.f32 %v3135, %v3255
    %v3272 = vadd.f32 %v3136, %v3256
    %v3273 = vadd.f32 %v3137, %v3257
    %v3274 = vadd.f32 %v3138, %v3258
    %v3275 = vadd.f32 %v3139, %v3259
    %v3276 = vadd.f32 %v3140, %v3260
    %v3277 = vld [vmem:[%s2458 + $0x2] sm:$0xff]
    %v3278 = vld [vmem:[%s2458 + $0x12] sm:$0xff]
    %v3279 = vld [vmem:[%s2458 + $0x22] sm:$0xff]
    %v3280 = vld [vmem:[%s2458 + $0x32] sm:$0xff]
    %v3281 = vld [vmem:[%s2458 + $0x42] sm:$0xff]
    %v3282 = vld [vmem:[%s2458 + $0x52] sm:$0xff]
    %v3283 = vld [vmem:[%s2458 + $0x62] sm:$0xff]
    %v3284 = vld [vmem:[%s2458 + $0x72] sm:$0xff]
    %v3285 = vld [vmem:[%s2458 + $0xa2] sm:$0xff]
    %v3286 = vld [vmem:[%s2458 + $0xb2] sm:$0xff]
    %v3287 = vld [vmem:[%s2458 + $0xc2] sm:$0xff]
    %v3288 = vld [vmem:[%s2458 + $0xd2] sm:$0xff]
    %v3289 = vld [vmem:[%s2458 + $0xe2] sm:$0xff]
    %v3290 = vld [vmem:[%s2458 + $0xf2] sm:$0xff]
    %v3291 = vld [vmem:[%s2458 + $0x102] sm:$0xff]
    %v3292 = vld [vmem:[%s2458 + $0x112] sm:$0xff]
    %s3293 = scalar_lea.vmem %s3, 24
    %v3294 = vld [vmem:[%s3293] sm:$0x1]
    %3296 = vset.pattern.permute.xlu0 0
    %3297 = vperm.xlu0 %3296, %v3277
    %v3298 = vpop.permute.xlu0 %3297
    %3301 = vset.pattern.permute.xlu0 0
    %3302 = vperm.xlu0 %3301, %v3278
    %v3303 = vpop.permute.xlu0 %3302
    %3306 = vset.pattern.permute.xlu0 0
    %3307 = vperm.xlu0 %3306, %v3279
    %v3308 = vpop.permute.xlu0 %3307
    %3311 = vset.pattern.permute.xlu0 0
    %3312 = vperm.xlu0 %3311, %v3280
    %v3313 = vpop.permute.xlu0 %3312
    %3316 = vset.pattern.permute.xlu0 0
    %3317 = vperm.xlu0 %3316, %v3281
    %v3318 = vpop.permute.xlu0 %3317
    %3321 = vset.pattern.permute.xlu0 0
    %3322 = vperm.xlu0 %3321, %v3282
    %v3323 = vpop.permute.xlu0 %3322
    %3326 = vset.pattern.permute.xlu0 0
    %3327 = vperm.xlu0 %3326, %v3283
    %v3328 = vpop.permute.xlu0 %3327
    %3331 = vset.pattern.permute.xlu0 0
    %3332 = vperm.xlu0 %3331, %v3284
    %v3333 = vpop.permute.xlu0 %3332
    %3336 = vset.pattern.permute.xlu0 0
    %3337 = vperm.xlu0 %3336, %v3285
    %v3338 = vpop.permute.xlu0 %3337
    %3341 = vset.pattern.permute.xlu0 0
    %3342 = vperm.xlu0 %3341, %v3286
    %v3343 = vpop.permute.xlu0 %3342
    %3346 = vset.pattern.permute.xlu0 0
    %3347 = vperm.xlu0 %3346, %v3287
    %v3348 = vpop.permute.xlu0 %3347
    %3351 = vset.pattern.permute.xlu0 0
    %3352 = vperm.xlu0 %3351, %v3288
    %v3353 = vpop.permute.xlu0 %3352
    %3356 = vset.pattern.permute.xlu0 0
    %3357 = vperm.xlu0 %3356, %v3289
    %v3358 = vpop.permute.xlu0 %3357
    %3361 = vset.pattern.permute.xlu0 0
    %3362 = vperm.xlu0 %3361, %v3290
    %v3363 = vpop.permute.xlu0 %3362
    %3366 = vset.pattern.permute.xlu0 0
    %3367 = vperm.xlu0 %3366, %v3291
    %v3368 = vpop.permute.xlu0 %3367
    %3371 = vset.pattern.permute.xlu0 0
    %3372 = vperm.xlu0 %3371, %v3292
    %v3373 = vpop.permute.xlu0 %3372
    %v3376 = vlaneseq
    %v3377 = vshrl.u32 %v3376, 7
    %v3378 = vsub.s32 0, %v3377
    %v3379 = vrot.slane %v3294, %v3378
    %v3381 = vmul.f32 %v3298, %v3379
    %v3382 = vmul.f32 %v3303, %v3379
    %v3383 = vmul.f32 %v3308, %v3379
    %v3384 = vmul.f32 %v3313, %v3379
    %v3385 = vmul.f32 %v3318, %v3379
    %v3386 = vmul.f32 %v3323, %v3379
    %v3387 = vmul.f32 %v3328, %v3379
    %v3388 = vmul.f32 %v3333, %v3379
    %v3389 = vmul.f32 %v3338, %v3379
    %v3390 = vmul.f32 %v3343, %v3379
    %v3391 = vmul.f32 %v3348, %v3379
    %v3392 = vmul.f32 %v3353, %v3379
    %v3393 = vmul.f32 %v3358, %v3379
    %v3394 = vmul.f32 %v3363, %v3379
    %v3395 = vmul.f32 %v3368, %v3379
    %v3396 = vmul.f32 %v3373, %v3379
    %v3397 = vadd.f32 %v3261, %v3381
    %v3398 = vadd.f32 %v3262, %v3382
    %v3399 = vadd.f32 %v3263, %v3383
    %v3400 = vadd.f32 %v3264, %v3384
    %v3401 = vadd.f32 %v3265, %v3385
    %v3402 = vadd.f32 %v3266, %v3386
    %v3403 = vadd.f32 %v3267, %v3387
    %v3404 = vadd.f32 %v3268, %v3388
    %v3405 = vadd.f32 %v3269, %v3389
    %v3406 = vadd.f32 %v3270, %v3390
    %v3407 = vadd.f32 %v3271, %v3391
    %v3408 = vadd.f32 %v3272, %v3392
    %v3409 = vadd.f32 %v3273, %v3393
    %v3410 = vadd.f32 %v3274, %v3394
    %v3411 = vadd.f32 %v3275, %v3395
    %v3412 = vadd.f32 %v3276, %v3396
    %v3413 = vld [vmem:[%s2595 + $0x2] sm:$0xff]
    %v3414 = vld [vmem:[%s2595 + $0x12] sm:$0xff]
    %v3415 = vld [vmem:[%s2595 + $0x22] sm:$0xff]
    %v3416 = vld [vmem:[%s2595 + $0x32] sm:$0xff]
    %v3417 = vld [vmem:[%s2595 + $0x42] sm:$0xff]
    %v3418 = vld [vmem:[%s2595 + $0x52] sm:$0xff]
    %v3419 = vld [vmem:[%s2595 + $0x62] sm:$0xff]
    %v3420 = vld [vmem:[%s2595 + $0x72] sm:$0xff]
    %v3421 = vld [vmem:[%s2595 + $0xa2] sm:$0xff]
    %v3422 = vld [vmem:[%s2595 + $0xb2] sm:$0xff]
    %v3423 = vld [vmem:[%s2595 + $0xc2] sm:$0xff]
    %v3424 = vld [vmem:[%s2595 + $0xd2] sm:$0xff]
    %v3425 = vld [vmem:[%s2595 + $0xe2] sm:$0xff]
    %v3426 = vld [vmem:[%s2595 + $0xf2] sm:$0xff]
    %v3427 = vld [vmem:[%s2595 + $0x102] sm:$0xff]
    %v3428 = vld [vmem:[%s2595 + $0x112] sm:$0xff]
    %s3429 = scalar_lea.vmem %s3, 25
    %v3430 = vld [vmem:[%s3429] sm:$0x1]
    %3432 = vset.pattern.permute.xlu0 0
    %3433 = vperm.xlu0 %3432, %v3413
    %v3434 = vpop.permute.xlu0 %3433
    %3437 = vset.pattern.permute.xlu0 0
    %3438 = vperm.xlu0 %3437, %v3414
    %v3439 = vpop.permute.xlu0 %3438
    %3442 = vset.pattern.permute.xlu0 0
    %3443 = vperm.xlu0 %3442, %v3415
    %v3444 = vpop.permute.xlu0 %3443
    %3447 = vset.pattern.permute.xlu0 0
    %3448 = vperm.xlu0 %3447, %v3416
    %v3449 = vpop.permute.xlu0 %3448
    %3452 = vset.pattern.permute.xlu0 0
    %3453 = vperm.xlu0 %3452, %v3417
    %v3454 = vpop.permute.xlu0 %3453
    %3457 = vset.pattern.permute.xlu0 0
    %3458 = vperm.xlu0 %3457, %v3418
    %v3459 = vpop.permute.xlu0 %3458
    %3462 = vset.pattern.permute.xlu0 0
    %3463 = vperm.xlu0 %3462, %v3419
    %v3464 = vpop.permute.xlu0 %3463
    %3467 = vset.pattern.permute.xlu0 0
    %3468 = vperm.xlu0 %3467, %v3420
    %v3469 = vpop.permute.xlu0 %3468
    %3472 = vset.pattern.permute.xlu0 0
    %3473 = vperm.xlu0 %3472, %v3421
    %v3474 = vpop.permute.xlu0 %3473
    %3477 = vset.pattern.permute.xlu0 0
    %3478 = vperm.xlu0 %3477, %v3422
    %v3479 = vpop.permute.xlu0 %3478
    %3482 = vset.pattern.permute.xlu0 0
    %3483 = vperm.xlu0 %3482, %v3423
    %v3484 = vpop.permute.xlu0 %3483
    %3487 = vset.pattern.permute.xlu0 0
    %3488 = vperm.xlu0 %3487, %v3424
    %v3489 = vpop.permute.xlu0 %3488
    %3492 = vset.pattern.permute.xlu0 0
    %3493 = vperm.xlu0 %3492, %v3425
    %v3494 = vpop.permute.xlu0 %3493
    %3497 = vset.pattern.permute.xlu0 0
    %3498 = vperm.xlu0 %3497, %v3426
    %v3499 = vpop.permute.xlu0 %3498
    %3502 = vset.pattern.permute.xlu0 0
    %3503 = vperm.xlu0 %3502, %v3427
    %v3504 = vpop.permute.xlu0 %3503
    %3507 = vset.pattern.permute.xlu0 0
    %3508 = vperm.xlu0 %3507, %v3428
    %v3509 = vpop.permute.xlu0 %3508
    %v3512 = vlaneseq
    %v3513 = vshrl.u32 %v3512, 7
    %v3514 = vsub.s32 0, %v3513
    %v3515 = vrot.slane %v3430, %v3514
    %v3517 = vmul.f32 %v3434, %v3515
    %v3518 = vmul.f32 %v3439, %v3515
    %v3519 = vmul.f32 %v3444, %v3515
    %v3520 = vmul.f32 %v3449, %v3515
    %v3521 = vmul.f32 %v3454, %v3515
    %v3522 = vmul.f32 %v3459, %v3515
    %v3523 = vmul.f32 %v3464, %v3515
    %v3524 = vmul.f32 %v3469, %v3515
    %v3525 = vmul.f32 %v3474, %v3515
    %v3526 = vmul.f32 %v3479, %v3515
    %v3527 = vmul.f32 %v3484, %v3515
    %v3528 = vmul.f32 %v3489, %v3515
    %v3529 = vmul.f32 %v3494, %v3515
    %v3530 = vmul.f32 %v3499, %v3515
    %v3531 = vmul.f32 %v3504, %v3515
    %v3532 = vmul.f32 %v3509, %v3515
    %v3533 = vadd.f32 %v3397, %v3517
    %v3534 = vadd.f32 %v3398, %v3518
    %v3535 = vadd.f32 %v3399, %v3519
    %v3536 = vadd.f32 %v3400, %v3520
    %v3537 = vadd.f32 %v3401, %v3521
    %v3538 = vadd.f32 %v3402, %v3522
    %v3539 = vadd.f32 %v3403, %v3523
    %v3540 = vadd.f32 %v3404, %v3524
    %v3541 = vadd.f32 %v3405, %v3525
    %v3542 = vadd.f32 %v3406, %v3526
    %v3543 = vadd.f32 %v3407, %v3527
    %v3544 = vadd.f32 %v3408, %v3528
    %v3545 = vadd.f32 %v3409, %v3529
    %v3546 = vadd.f32 %v3410, %v3530
    %v3547 = vadd.f32 %v3411, %v3531
    %v3548 = vadd.f32 %v3412, %v3532
    %v3549 = vld [vmem:[%s2732 + $0x2] sm:$0xff]
    %v3550 = vld [vmem:[%s2732 + $0x12] sm:$0xff]
    %v3551 = vld [vmem:[%s2732 + $0x22] sm:$0xff]
    %v3552 = vld [vmem:[%s2732 + $0x32] sm:$0xff]
    %v3553 = vld [vmem:[%s2732 + $0x42] sm:$0xff]
    %v3554 = vld [vmem:[%s2732 + $0x52] sm:$0xff]
    %v3555 = vld [vmem:[%s2732 + $0x62] sm:$0xff]
    %v3556 = vld [vmem:[%s2732 + $0x72] sm:$0xff]
    %v3557 = vld [vmem:[%s2732 + $0xa2] sm:$0xff]
    %v3558 = vld [vmem:[%s2732 + $0xb2] sm:$0xff]
    %v3559 = vld [vmem:[%s2732 + $0xc2] sm:$0xff]
    %v3560 = vld [vmem:[%s2732 + $0xd2] sm:$0xff]
    %v3561 = vld [vmem:[%s2732 + $0xe2] sm:$0xff]
    %v3562 = vld [vmem:[%s2732 + $0xf2] sm:$0xff]
    %v3563 = vld [vmem:[%s2732 + $0x102] sm:$0xff]
    %v3564 = vld [vmem:[%s2732 + $0x112] sm:$0xff]
    %s3565 = scalar_lea.vmem %s3, 26
    %v3566 = vld [vmem:[%s3565] sm:$0x1]
    %3568 = vset.pattern.permute.xlu0 0
    %3569 = vperm.xlu0 %3568, %v3549
    %v3570 = vpop.permute.xlu0 %3569
    %3573 = vset.pattern.permute.xlu0 0
    %3574 = vperm.xlu0 %3573, %v3550
    %v3575 = vpop.permute.xlu0 %3574
    %3578 = vset.pattern.permute.xlu0 0
    %3579 = vperm.xlu0 %3578, %v3551
    %v3580 = vpop.permute.xlu0 %3579
    %3583 = vset.pattern.permute.xlu0 0
    %3584 = vperm.xlu0 %3583, %v3552
    %v3585 = vpop.permute.xlu0 %3584
    %3588 = vset.pattern.permute.xlu0 0
    %3589 = vperm.xlu0 %3588, %v3553
    %v3590 = vpop.permute.xlu0 %3589
    %3593 = vset.pattern.permute.xlu0 0
    %3594 = vperm.xlu0 %3593, %v3554
    %v3595 = vpop.permute.xlu0 %3594
    %3598 = vset.pattern.permute.xlu0 0
    %3599 = vperm.xlu0 %3598, %v3555
    %v3600 = vpop.permute.xlu0 %3599
    %3603 = vset.pattern.permute.xlu0 0
    %3604 = vperm.xlu0 %3603, %v3556
    %v3605 = vpop.permute.xlu0 %3604
    %3608 = vset.pattern.permute.xlu0 0
    %3609 = vperm.xlu0 %3608, %v3557
    %v3610 = vpop.permute.xlu0 %3609
    %3613 = vset.pattern.permute.xlu0 0
    %3614 = vperm.xlu0 %3613, %v3558
    %v3615 = vpop.permute.xlu0 %3614
    %3618 = vset.pattern.permute.xlu0 0
    %3619 = vperm.xlu0 %3618, %v3559
    %v3620 = vpop.permute.xlu0 %3619
    %3623 = vset.pattern.permute.xlu0 0
    %3624 = vperm.xlu0 %3623, %v3560
    %v3625 = vpop.permute.xlu0 %3624
    %3628 = vset.pattern.permute.xlu0 0
    %3629 = vperm.xlu0 %3628, %v3561
    %v3630 = vpop.permute.xlu0 %3629
    %3633 = vset.pattern.permute.xlu0 0
    %3634 = vperm.xlu0 %3633, %v3562
    %v3635 = vpop.permute.xlu0 %3634
    %3638 = vset.pattern.permute.xlu0 0
    %3639 = vperm.xlu0 %3638, %v3563
    %v3640 = vpop.permute.xlu0 %3639
    %3643 = vset.pattern.permute.xlu0 0
    %3644 = vperm.xlu0 %3643, %v3564
    %v3645 = vpop.permute.xlu0 %3644
    %v3648 = vlaneseq
    %v3649 = vshrl.u32 %v3648, 7
    %v3650 = vsub.s32 0, %v3649
    %v3651 = vrot.slane %v3566, %v3650
    %v3653 = vmul.f32 %v3570, %v3651
    %v3654 = vmul.f32 %v3575, %v3651
    %v3655 = vmul.f32 %v3580, %v3651
    %v3656 = vmul.f32 %v3585, %v3651
    %v3657 = vmul.f32 %v3590, %v3651
    %v3658 = vmul.f32 %v3595, %v3651
    %v3659 = vmul.f32 %v3600, %v3651
    %v3660 = vmul.f32 %v3605, %v3651
    %v3661 = vmul.f32 %v3610, %v3651
    %v3662 = vmul.f32 %v3615, %v3651
    %v3663 = vmul.f32 %v3620, %v3651
    %v3664 = vmul.f32 %v3625, %v3651
    %v3665 = vmul.f32 %v3630, %v3651
    %v3666 = vmul.f32 %v3635, %v3651
    %v3667 = vmul.f32 %v3640, %v3651
    %v3668 = vmul.f32 %v3645, %v3651
    %v3669 = vadd.f32 %v3533, %v3653
    %v3670 = vadd.f32 %v3534, %v3654
    %v3671 = vadd.f32 %v3535, %v3655
    %v3672 = vadd.f32 %v3536, %v3656
    %v3673 = vadd.f32 %v3537, %v3657
    %v3674 = vadd.f32 %v3538, %v3658
    %v3675 = vadd.f32 %v3539, %v3659
    %v3676 = vadd.f32 %v3540, %v3660
    %v3677 = vadd.f32 %v3541, %v3661
    %v3678 = vadd.f32 %v3542, %v3662
    %v3679 = vadd.f32 %v3543, %v3663
    %v3680 = vadd.f32 %v3544, %v3664
    %v3681 = vadd.f32 %v3545, %v3665
    %v3682 = vadd.f32 %v3546, %v3666
    %v3683 = vadd.f32 %v3547, %v3667
    %v3684 = vadd.f32 %v3548, %v3668
    %vm3685 = vcmask 97280
    %v3686 = vsel %vm3685, %v3669, 0.0
    %v3687 = vsel %vm3685, %v3677, 0.0
    %v3688 = vadd.f32 %v3686, %v3687
    %v3689 = vsel %vm3685, %v3670, 0.0
    %v3690 = vsel %vm3685, %v3678, 0.0
    %v3691 = vadd.f32 %v3689, %v3690
    %v3692 = vsel %vm3685, %v3671, 0.0
    %v3693 = vsel %vm3685, %v3679, 0.0
    %v3694 = vadd.f32 %v3692, %v3693
    %v3695 = vsel %vm3685, %v3672, 0.0
    %v3696 = vsel %vm3685, %v3680, 0.0
    %v3697 = vadd.f32 %v3695, %v3696
    %v3698 = vsel %vm3685, %v3673, 0.0
    %v3699 = vsel %vm3685, %v3681, 0.0
    %v3700 = vadd.f32 %v3698, %v3699
    %v3701 = vsel %vm3685, %v3674, 0.0
    %v3702 = vsel %vm3685, %v3682, 0.0
    %v3703 = vadd.f32 %v3701, %v3702
    %v3704 = vsel %vm3685, %v3675, 0.0
    %v3705 = vsel %vm3685, %v3683, 0.0
    %v3706 = vadd.f32 %v3704, %v3705
    %v3707 = vsel %vm3685, %v3676, 0.0
    %v3708 = vsel %vm3685, %v3684, 0.0
    %v3709 = vadd.f32 %v3707, %v3708
    %v3710 = vrcp.pop 2.0
    %v3711 = vmul.f32 %v3688, %v3710
    %v3712 = vmul.f32 %v3691, %v3710
    %v3713 = vmul.f32 %v3694, %v3710
    %v3714 = vmul.f32 %v3697, %v3710
    %v3715 = vmul.f32 %v3700, %v3710
    %v3716 = vmul.f32 %v3703, %v3710
    %v3717 = vmul.f32 %v3706, %v3710
    %v3718 = vmul.f32 %v3709, %v3710
    %v3719 = vsel %vm3685, %v3711, 0.0
    %v3720 = vsel %vm3685, %v3712, 0.0
    %v3721 = vadd.f32 %v3719, %v3720
    %v3722 = vsel %vm3685, %v3713, 0.0
    %v3723 = vadd.f32 %v3721, %v3722
    %v3724 = vsel %vm3685, %v3714, 0.0
    %v3725 = vadd.f32 %v3723, %v3724
    %v3726 = vsel %vm3685, %v3715, 0.0
    %v3727 = vadd.f32 %v3725, %v3726
    %v3728 = vsel %vm3685, %v3716, 0.0
    %v3729 = vadd.f32 %v3727, %v3728
    %v3730 = vsel %vm3685, %v3717, 0.0
    %v3731 = vadd.f32 %v3729, %v3730
    %v3732 = vsel %vm3685, %v3718, 0.0
    %v3733 = vadd.f32 %v3731, %v3732
    %v3734 = vrcp.pop 8.0
    %v3735 = vmul.f32 %v3733, %v3734
    %v3736 = vsel %vm3685, %v3735, 0.0
    %v3737 = vrot.slane %v3736, 4
    %v3738 = vadd.f32 %v3736, %v3737
    %v3739 = vrot.slane %v3738, 2
    %v3740 = vadd.f32 %v3738, %v3739
    %v3741 = vrot.slane %v3740, 1
    %v3742 = vadd.f32 %v3740, %v3741
    %v3743 = vmul.f32 %v3742, %v3734
    %v3744 = vsub.f32 %v3669, %v3743
    %v3745 = vsub.f32 %v3670, %v3743
    %v3746 = vsub.f32 %v3671, %v3743
    %v3747 = vsub.f32 %v3672, %v3743
    %v3748 = vsub.f32 %v3673, %v3743
    %v3749 = vsub.f32 %v3674, %v3743
    %v3750 = vsub.f32 %v3675, %v3743
    %v3751 = vsub.f32 %v3676, %v3743
    %v3752 = vsub.f32 %v3677, %v3743
    %v3753 = vsub.f32 %v3678, %v3743
    %v3754 = vsub.f32 %v3679, %v3743
    %v3755 = vsub.f32 %v3680, %v3743
    %v3756 = vsub.f32 %v3681, %v3743
    %v3757 = vsub.f32 %v3682, %v3743
    %v3758 = vsub.f32 %v3683, %v3743
    %v3759 = vsub.f32 %v3684, %v3743
    %v3760 = vmul.f32 %v3744, %v3744
    %v3761 = vmul.f32 %v3745, %v3745
    %v3762 = vmul.f32 %v3746, %v3746
    %v3763 = vmul.f32 %v3747, %v3747
    %v3764 = vmul.f32 %v3748, %v3748
    %v3765 = vmul.f32 %v3749, %v3749
    %v3766 = vmul.f32 %v3750, %v3750
    %v3767 = vmul.f32 %v3751, %v3751
    %v3768 = vmul.f32 %v3752, %v3752
    %v3769 = vmul.f32 %v3753, %v3753
    %v3770 = vmul.f32 %v3754, %v3754
    %v3771 = vmul.f32 %v3755, %v3755
    %v3772 = vmul.f32 %v3756, %v3756
    %v3773 = vmul.f32 %v3757, %v3757
    %v3774 = vmul.f32 %v3758, %v3758
    %v3775 = vmul.f32 %v3759, %v3759
    %v3776 = vsel %vm3685, %v3760, 0.0
    %v3777 = vsel %vm3685, %v3768, 0.0
    %v3778 = vadd.f32 %v3776, %v3777
    %v3779 = vsel %vm3685, %v3761, 0.0
    %v3780 = vsel %vm3685, %v3769, 0.0
    %v3781 = vadd.f32 %v3779, %v3780
    %v3782 = vsel %vm3685, %v3762, 0.0
    %v3783 = vsel %vm3685, %v3770, 0.0
    %v3784 = vadd.f32 %v3782, %v3783
    %v3785 = vsel %vm3685, %v3763, 0.0
    %v3786 = vsel %vm3685, %v3771, 0.0
    %v3787 = vadd.f32 %v3785, %v3786
    %v3788 = vsel %vm3685, %v3764, 0.0
    %v3789 = vsel %vm3685, %v3772, 0.0
    %v3790 = vadd.f32 %v3788, %v3789
    %v3791 = vsel %vm3685, %v3765, 0.0
    %v3792 = vsel %vm3685, %v3773, 0.0
    %v3793 = vadd.f32 %v3791, %v3792
    %v3794 = vsel %vm3685, %v3766, 0.0
    %v3795 = vsel %vm3685, %v3774, 0.0
    %v3796 = vadd.f32 %v3794, %v3795
    %v3797 = vsel %vm3685, %v3767, 0.0
    %v3798 = vsel %vm3685, %v3775, 0.0
    %v3799 = vadd.f32 %v3797, %v3798
    %v3800 = vmul.f32 %v3778, %v3710
    %v3801 = vmul.f32 %v3781, %v3710
    %v3802 = vmul.f32 %v3784, %v3710
    %v3803 = vmul.f32 %v3787, %v3710
    %v3804 = vmul.f32 %v3790, %v3710
    %v3805 = vmul.f32 %v3793, %v3710
    %v3806 = vmul.f32 %v3796, %v3710
    %v3807 = vmul.f32 %v3799, %v3710
    %v3808 = vsel %vm3685, %v3800, 0.0
    %v3809 = vsel %vm3685, %v3801, 0.0
    %v3810 = vadd.f32 %v3808, %v3809
    %v3811 = vsel %vm3685, %v3802, 0.0
    %v3812 = vadd.f32 %v3810, %v3811
    %v3813 = vsel %vm3685, %v3803, 0.0
    %v3814 = vadd.f32 %v3812, %v3813
    %v3815 = vsel %vm3685, %v3804, 0.0
    %v3816 = vadd.f32 %v3814, %v3815
    %v3817 = vsel %vm3685, %v3805, 0.0
    %v3818 = vadd.f32 %v3816, %v3817
    %v3819 = vsel %vm3685, %v3806, 0.0
    %v3820 = vadd.f32 %v3818, %v3819
    %v3821 = vsel %vm3685, %v3807, 0.0
    %v3822 = vadd.f32 %v3820, %v3821
    %v3823 = vmul.f32 %v3822, %v3734
    %v3824 = vsel %vm3685, %v3823, 0.0
    %v3825 = vrot.slane %v3824, 4
    %v3826 = vadd.f32 %v3824, %v3825
    %v3827 = vrot.slane %v3826, 2
    %v3828 = vadd.f32 %v3826, %v3827
    %v3829 = vrot.slane %v3828, 1
    %v3830 = vadd.f32 %v3828, %v3829
    %v3831 = vmul.f32 %v3830, %v3734
    %v3832 = vadd.f32 %v3831, 1e-05
    %v3833 = vrsqrt.pop %v3832
    %v3834 = vmul.f32 %v3744, %v3833
    %v3835 = vmul.f32 %v3745, %v3833
    %v3836 = vmul.f32 %v3746, %v3833
    %v3837 = vmul.f32 %v3747, %v3833
    %v3838 = vmul.f32 %v3748, %v3833
    %v3839 = vmul.f32 %v3749, %v3833
    %v3840 = vmul.f32 %v3750, %v3833
    %v3841 = vmul.f32 %v3751, %v3833
    %v3842 = vmul.f32 %v3752, %v3833
    %v3843 = vmul.f32 %v3753, %v3833
    %v3844 = vmul.f32 %v3754, %v3833
    %v3845 = vmul.f32 %v3755, %v3833
    %v3846 = vmul.f32 %v3756, %v3833
    %v3847 = vmul.f32 %v3757, %v3833
    %v3848 = vmul.f32 %v3758, %v3833
    %v3849 = vmul.f32 %v3759, %v3833
    %v3850 = vld [vmem:[%s4] sm:$0x1]
    %v3852 = vlaneseq
    %v3853 = vshrl.u32 %v3852, 7
    %v3854 = vsub.s32 0, %v3853
    %v3855 = vrot.slane %v3850, %v3854
    %v3857 = vmul.f32 %v3834, %v3855
    %v3858 = vmul.f32 %v3835, %v3855
    %v3859 = vmul.f32 %v3836, %v3855
    %v3860 = vmul.f32 %v3837, %v3855
    %v3861 = vmul.f32 %v3838, %v3855
    %v3862 = vmul.f32 %v3839, %v3855
    %v3863 = vmul.f32 %v3840, %v3855
    %v3864 = vmul.f32 %v3841, %v3855
    %v3865 = vmul.f32 %v3842, %v3855
    %v3866 = vmul.f32 %v3843, %v3855
    %v3867 = vmul.f32 %v3844, %v3855
    %v3868 = vmul.f32 %v3845, %v3855
    %v3869 = vmul.f32 %v3846, %v3855
    %v3870 = vmul.f32 %v3847, %v3855
    %v3871 = vmul.f32 %v3848, %v3855
    %v3872 = vmul.f32 %v3849, %v3855
    %v3873 = vld [vmem:[%s5] sm:$0x1]
    %v3875 = vlaneseq
    %v3876 = vshrl.u32 %v3875, 7
    %v3877 = vsub.s32 0, %v3876
    %v3878 = vrot.slane %v3873, %v3877
    %v3880 = vadd.f32 %v3857, %v3878
    %v3881 = vadd.f32 %v3858, %v3878
    %v3882 = vadd.f32 %v3859, %v3878
    %v3883 = vadd.f32 %v3860, %v3878
    %v3884 = vadd.f32 %v3861, %v3878
    %v3885 = vadd.f32 %v3862, %v3878
    %v3886 = vadd.f32 %v3863, %v3878
    %v3887 = vadd.f32 %v3864, %v3878
    %v3888 = vadd.f32 %v3865, %v3878
    %v3889 = vadd.f32 %v3866, %v3878
    %v3890 = vadd.f32 %v3867, %v3878
    %v3891 = vadd.f32 %v3868, %v3878
    %v3892 = vadd.f32 %v3869, %v3878
    %v3893 = vadd.f32 %v3870, %v3878
    %v3894 = vadd.f32 %v3871, %v3878
    %v3895 = vadd.f32 %v3872, %v3878
    %3896 = vst.msk [vmem:[#allocation2] sm:$0xff] %vm3685, %v3880
    %3897 = vst.msk [vmem:[#allocation2 + $0x8] sm:$0xff] %vm3685, %v3881
    %3898 = vst.msk [vmem:[#allocation2 + $0x10] sm:$0xff] %vm3685, %v3882
    %3899 = vst.msk [vmem:[#allocation2 + $0x18] sm:$0xff] %vm3685, %v3883
    %3900 = vst.msk [vmem:[#allocation2 + $0x20] sm:$0xff] %vm3685, %v3884
    %3901 = vst.msk [vmem:[#allocation2 + $0x28] sm:$0xff] %vm3685, %v3885
    %3902 = vst.msk [vmem:[#allocation2 + $0x30] sm:$0xff] %vm3685, %v3886
    %3903 = vst.msk [vmem:[#allocation2 + $0x38] sm:$0xff] %vm3685, %v3887
    %3904 = vst.msk [vmem:[#allocation2 + $0x40] sm:$0xff] %vm3685, %v3888
    %3905 = vst.msk [vmem:[#allocation2 + $0x48] sm:$0xff] %vm3685, %v3889
    %3906 = vst.msk [vmem:[#allocation2 + $0x50] sm:$0xff] %vm3685, %v3890
    %3907 = vst.msk [vmem:[#allocation2 + $0x58] sm:$0xff] %vm3685, %v3891
    %3908 = vst.msk [vmem:[#allocation2 + $0x60] sm:$0xff] %vm3685, %v3892
    %3909 = vst.msk [vmem:[#allocation2 + $0x68] sm:$0xff] %vm3685, %v3893
    %3910 = vst.msk [vmem:[#allocation2 + $0x70] sm:$0xff] %vm3685, %v3894
    %3911 = vst.msk [vmem:[#allocation2 + $0x78] sm:$0xff] %vm3685, %v3895
    // Predicated region
    $region26: #{tpu_custom_call.1} parent=1 // pred_check
      _
    $region27: #{tpu_custom_call.1} parent=1 // pred_check_branch
      %3913 = sbr.rel (0) target = $region29
    $region28: #{tpu_custom_call.1} parent=1 // pred_region
      %s3915 = ssub.s32 2048, 2048
      %3916 = vsyncadd [#allocation3], %s3915
      %s3917 = sshll.u32 [#allocation2], 4
      %s3918 = int_to_ptr.vmem [resolvable:$true] %s3917
      %3923 = dma.vmem_to_hbm [thread:$0]  %s3918, 2048, %s6, [#allocation3], 128, 128, 8
    $region29: #{tpu_custom_call.1} parent=1 // pred_fallthru
      _
    // Predicated region
    $region30: #{tpu_custom_call.1} parent=1 // pred_check
      _
    $region31: #{tpu_custom_call.1} parent=1 // pred_check_branch
      %3925 = sbr.rel (0) target = $region33
    $region32: #{tpu_custom_call.1} parent=1 // pred_region
      %3926 = dma.done [#allocation3], 2048
    $region33: #{tpu_custom_call.1} parent=1 // pred_fallthru
      _
    %3927 = vsyncpa [#allocation3], 1

</llo_original>
